<compile_context>
chip_gen: v5e
topology: v5e:2x2
jax: 0.10.0
libtpu: 0.0.40
codegen_flags: <defaults>
</compile_context>

<pallas_src>
import functools
import numpy as np
import jax
import jax.numpy as jnp
from jax.experimental import pallas as pl
from jax.experimental.pallas import tpu as pltpu


# ----------------------------------------------------------------------------
# Host-side constant builders (depend only on static shapes)
# ----------------------------------------------------------------------------
def _bilinear_matrix_np(out_size, in_size):
    """Interpolation matrix matching F.upsample(mode='bilinear'), align_corners=False."""
    i = np.arange(out_size, dtype=np.float64)
    src = (i + 0.5) * (in_size / out_size) - 0.5
    src = np.maximum(src, 0.0)
    lo = np.minimum(np.floor(src).astype(np.int64), in_size - 1)
    hi = np.minimum(lo + 1, in_size - 1)
    w_hi = src - lo
    w_lo = 1.0 - w_hi
    M = np.zeros((out_size, in_size), np.float64)
    M[np.arange(out_size), lo] += w_lo
    M[np.arange(out_size), hi] += w_hi
    return M


def _upsample_matrix_t(out_h, out_w, in_h, in_w):
    """(in_h*in_w, out_h*out_w) f32: flat (C, in) @ this = flat (C, out) bilinear."""
    U = np.kron(_bilinear_matrix_np(out_h, in_h), _bilinear_matrix_np(out_w, in_w))
    return jnp.asarray(U.T, jnp.float32)


def _pool_gather_matrix_t(H, W):
    """(H*W, 4*Ho*Wo) 0/1 matrix; column block k = 2*dy+dx selects corner (dy, dx).

    Corner indices are clamped to the image, which reproduces
    MaxPool2d(2, stride 2, ceil_mode=True) under the subsequent elementwise max."""
    Ho, Wo = -(-H // 2), -(-W // 2)
    n = Ho * Wo
    S = np.zeros((H * W, 4 * n), np.float32)
    for dy in range(2):
        for dx in range(2):
            k = 2 * dy + dx
            for i in range(Ho):
                for j in range(Wo):
                    r = min(2 * i + dy, H - 1)
                    c = min(2 * j + dx, W - 1)
                    S[r * W + c, k * n + i * Wo + j] = 1.0
    return jnp.asarray(S, jnp.bfloat16)


# ----------------------------------------------------------------------------
# In-kernel building blocks (activations are (C, H*W): spatial on lanes)
# ----------------------------------------------------------------------------
def _conv_bn_relu(x_cf, pad_ref, w, s, b, d, H, W):
    """3x3 dilated conv (zero pad d) + folded BN + ReLU as ONE K-packed matmul.

    x_cf:    (Cin, H*W) bf16 value (channels on sublanes, flat spatial on lanes).
    pad_ref: shared VMEM scratch (C_max, L_max) bf16; this stage uses [0:Cin, 0:L).
    w:       (Cout, 9*Cin) bf16 value.   s, b: (Cout, 1) f32 values.
    Returns (Cout, H*W) f32.
    """
    C, n = x_cf.shape
    assert n == H * W
    off = d * W + d                      # flat offset of pixel (0, 0) in the pad buffer
    L = (H + 2 * d) * W + 2 * d          # flat padded length used by this stage

    # Re-zero only the tiny halo (top/bottom d rows + 2d guard lanes), then write
    # the image interior.  Lanes of the shared buffer beyond L are never read.
    pad_ref[0:C, 0:off] = jnp.zeros((C, off), x_cf.dtype)
    pad_ref[0:C, off + n:L] = jnp.zeros((C, L - off - n), x_cf.dtype)
    pad_ref[0:C, off:off + n] = x_cf

    # Lane masks killing horizontally-wrapped columns of the +/-d taps.
    colx = jax.lax.broadcasted_iota(jnp.int32, (1, n), 1) % W
    mask_l = (colx >= d).astype(x_cf.dtype)        # tap dx = -d is valid
    mask_r = (colx < W - d).astype(x_cf.dtype)     # tap dx = +d is valid

    taps = []
    for ky in range(3):
        for kx in range(3):
            start = ky * d * W + kx * d            # static offset
            win = pad_ref[0:C, start:start + n]    # contiguous lane slice, (Cin, H*W)
            if kx == 0:
                win = win * mask_l
            elif kx == 2:
                win = win * mask_r
            taps.append(win)
    col = jnp.concatenate(taps, axis=0)            # (9*Cin, H*W)

    y = jnp.dot(w, col, preferred_element_type=jnp.float32)   # (Cout, H*W) f32
    return jnp.maximum(y * s + b, 0.0)


def _maxpool(x_cf, st_ref, n_out):
    """MaxPool2d(2, stride 2, ceil_mode=True) via exact 0/1 gather matmul + max.

    x_cf: (C, H*W) bf16.  st_ref: (H*W, 4*n_out) bf16.  Returns (C, n_out) f32."""
    p = jnp.dot(x_cf, st_ref[...], preferred_element_type=jnp.float32)
    return jnp.maximum(jnp.maximum(p[:, 0:n_out], p[:, n_out:2 * n_out]),
                       jnp.maximum(p[:, 2 * n_out:3 * n_out], p[:, 3 * n_out:4 * n_out]))


# ----------------------------------------------------------------------------
# The fused RSU4 kernel (one grid step = one batch element, all stages fused)
# ----------------------------------------------------------------------------
def rsu4_kernel(x_ref, s1_ref, s2_ref, u3_ref, u2_ref, w_ref, sb_ref,
                o_ref, pad_ref, *, meta, H, W, H2, W2, H4, W4):
    bf16 = jnp.bfloat16

    def conv(x_cf, name, Hs, Ws):
        r0, cin, cout, d = meta[name]
        w = w_ref[r0:r0 + cout, 0:9 * cin]          # (Cout, 9*Cin) bf16
        s = sb_ref[r0:r0 + cout, 0:1]               # (Cout, 1) f32
        b = sb_ref[r0:r0 + cout, 1:2]               # (Cout, 1) f32
        return _conv_bn_relu(x_cf, pad_ref, w, s, b, d, Hs, Ws)

    x = x_ref[0]                                                   # (in_ch, H*W) bf16

    # ---------------- encoder ----------------
    hxin_f32 = conv(x, 'in', H, W)                                 # (out_ch, H*W) f32
    hxin = hxin_f32.astype(bf16)
    hx1 = conv(hxin, 'c1', H, W).astype(bf16)                      # (mid, H*W)
    p1 = _maxpool(hx1, s1_ref, H2 * W2).astype(bf16)               # (mid, H2*W2)
    hx2 = conv(p1, 'c2', H2, W2).astype(bf16)                      # (mid, H2*W2)
    p2 = _maxpool(hx2, s2_ref, H4 * W4).astype(bf16)               # (mid, H4*W4)
    hx3 = conv(p2, 'c3', H4, W4).astype(bf16)                      # (mid, H4*W4)
    hx4 = conv(hx3, 'c4', H4, W4).astype(bf16)                     # dirate=2

    # ---------------- decoder ----------------
    # Channel concats along the sublane axis; bilinear upsample = one matmul
    # with exact f32 coefficients applied from the right.
    hx3d = conv(jnp.concatenate([hx4, hx3], axis=0), 'c3d', H4, W4)          # f32
    hx3dup = jnp.dot(hx3d, u3_ref[...],
                     preferred_element_type=jnp.float32).astype(bf16)        # (mid, H2*W2)
    hx2d = conv(jnp.concatenate([hx3dup, hx2], axis=0), 'c2d', H2, W2)       # f32
    hx2dup = jnp.dot(hx2d, u2_ref[...],
                     preferred_element_type=jnp.float32).astype(bf16)        # (mid, H*W)
    hx1d = conv(jnp.concatenate([hx2dup, hx1], axis=0), 'c1d', H, W)         # f32

    o_ref[0] = hx1d + hxin_f32                                     # residual, f32 (out_ch, H*W)


# ----------------------------------------------------------------------------
# Wrapper: NCHW in / NCHW out, like the PyTorch module
# ----------------------------------------------------------------------------
STAGES = ('in', 'c1', 'c2', 'c3', 'c4', 'c3d', 'c2d', 'c1d')


def _stage_dims(in_ch, mid_ch, out_ch, H, W, H2, W2, H4, W4):
    # name -> (Cin, Cout, dirate, H_stage, W_stage)
    return {
        'in':  (in_ch,      out_ch, 1, H,  W),
        'c1':  (out_ch,     mid_ch, 1, H,  W),
        'c2':  (mid_ch,     mid_ch, 1, H2, W2),
        'c3':  (mid_ch,     mid_ch, 1, H4, W4),
        'c4':  (mid_ch,     mid_ch, 2, H4, W4),
        'c3d': (2 * mid_ch, mid_ch, 1, H4, W4),
        'c2d': (2 * mid_ch, mid_ch, 1, H2, W2),
        'c1d': (2 * mid_ch, out_ch, 1, H,  W),
    }


def rsu4_forward(x_nchw, params):
    B, in_ch, H, W = x_nchw.shape
    out_ch = params['in']['w'].shape[0]
    mid = params['c1']['w'].shape[0]
    H2, W2 = -(-H // 2), -(-W // 2)
    H4, W4 = -(-H2 // 2), -(-W2 // 2)
    dims = _stage_dims(in_ch, mid, out_ch, H, W, H2, W2, H4, W4)

    # ---- pack all conv weights / folded-BN scale+bias into two slabs --------
    kmax = max(9 * dims[n][0] for n in STAGES)
    w_rows, sb_rows, meta, r0 = [], [], {}, 0
    for name in STAGES:
        cin, cout, d, _, _ = dims[name]
        p = params[name]
        # OIHW -> (O, ky, kx, I) -> (Cout, 9*Cin); column order (ky, kx, c).
        wk = jnp.transpose(p['w'], (0, 2, 3, 1)).reshape(cout, 9 * cin)
        w_rows.append(jnp.pad(wk, ((0, 0), (0, kmax - 9 * cin))))
        sb_rows.append(jnp.stack([p['scale'], p['bias']], axis=1))    # (Cout, 2)
        meta[name] = (r0, cin, cout, d)
        r0 += cout
    w_slab = jnp.concatenate(w_rows, axis=0).astype(jnp.bfloat16)     # (sum Cout, kmax)
    sb_slab = jnp.concatenate(sb_rows, axis=0).astype(jnp.float32)    # (sum Cout, 2)

    # ---- pool / upsample constants (applied from the right) -----------------
    S1t = _pool_gather_matrix_t(H, W)                # (H*W,   4*H2*W2) bf16 (exact 0/1)
    S2t = _pool_gather_matrix_t(H2, W2)              # (H2*W2, 4*H4*W4) bf16
    U3t = _upsample_matrix_t(H2, W2, H4, W4)         # (H4*W4, H2*W2)   f32
    U2t = _upsample_matrix_t(H, W, H2, W2)           # (H2*W2, H*W)     f32

    in_specs = [
        pl.BlockSpec((1, in_ch, H * W), lambda b: (b, 0, 0)),
        pl.BlockSpec(S1t.shape, lambda b: (0, 0)),
        pl.BlockSpec(S2t.shape, lambda b: (0, 0)),
        pl.BlockSpec(U3t.shape, lambda b: (0, 0)),
        pl.BlockSpec(U2t.shape, lambda b: (0, 0)),
        pl.BlockSpec(w_slab.shape, lambda b: (0, 0)),
        pl.BlockSpec(sb_slab.shape, lambda b: (0, 0)),
    ]

    # ONE shared conv-halo scratch sized for the largest stage (peak = max, not sum).
    c_max = max(dims[n][0] for n in STAGES)
    l_max = max((dims[n][3] + 2 * dims[n][2]) * dims[n][4] + 2 * dims[n][2]
                for n in STAGES)

    kernel = functools.partial(rsu4_kernel, meta=meta,
                               H=H, W=W, H2=H2, W2=W2, H4=H4, W4=W4)
    out = pl.pallas_call(
        kernel,
        out_shape=jax.ShapeDtypeStruct((B, out_ch, H * W), jnp.float32),
        grid=(B,),
        in_specs=in_specs,
        out_specs=pl.BlockSpec((1, out_ch, H * W), lambda b: (b, 0, 0)),
        scratch_shapes=[pltpu.VMEM((c_max, l_max), jnp.bfloat16)],
        compiler_params=pltpu.CompilerParams(dimension_semantics=("parallel",)),
    )(x_nchw.reshape(B, in_ch, H * W).astype(jnp.bfloat16),
      S1t, S2t, U3t, U2t, w_slab, sb_slab)

    return out.reshape(B, out_ch, H, W)                              # NCHW


# ----------------------------------------------------------------------------
# Parameter construction (deterministic, synthetic) — BN folded to scale/bias
# ----------------------------------------------------------------------------
def make_rebnconv_params(key, in_ch, out_ch):
    ks = jax.random.split(key, 6)
    w = 0.1 * jax.random.normal(ks[0], (out_ch, in_ch, 3, 3), jnp.float32)   # torch OIHW
    conv_b = 0.1 * jax.random.normal(ks[1], (out_ch,), jnp.float32)
    gamma = 1.0 + 0.1 * jax.random.normal(ks[2], (out_ch,), jnp.float32)
    beta = 0.1 * jax.random.normal(ks[3], (out_ch,), jnp.float32)
    r_mean = 0.1 * jax.random.normal(ks[4], (out_ch,), jnp.float32)
    r_var = jax.random.uniform(ks[5], (out_ch,), jnp.float32, 0.5, 1.5)
    eps = 1e-5
    scale = gamma / jnp.sqrt(r_var + eps)
    bias = beta + scale * (conv_b - r_mean)
    return {'w': w, 'scale': scale, 'bias': bias}


def make_rsu4_params(key, in_ch, mid_ch, out_ch):
    ks = jax.random.split(key, 8)
    return {
        'in':  make_rebnconv_params(ks[0], in_ch, out_ch),
        'c1':  make_rebnconv_params(ks[1], out_ch, mid_ch),
        'c2':  make_rebnconv_params(ks[2], mid_ch, mid_ch),
        'c3':  make_rebnconv_params(ks[3], mid_ch, mid_ch),
        'c4':  make_rebnconv_params(ks[4], mid_ch, mid_ch),
        'c3d': make_rebnconv_params(ks[5], 2 * mid_ch, mid_ch),
        'c2d': make_rebnconv_params(ks[6], 2 * mid_ch, mid_ch),
        'c1d': make_rebnconv_params(ks[7], 2 * mid_ch, out_ch),
    }


# ----------------------------------------------------------------------------
# Pure-JAX (XLA) f32 reference for validation of the fused kernel
# ----------------------------------------------------------------------------
def rsu4_reference(x_nchw, params):
    def conv(x, p, d):
        cout = p['w'].shape[0]
        w = jnp.transpose(p['w'], (2, 3, 1, 0))                      # OIHW -> HWIO
        y = jax.lax.conv_general_dilated(
            x, w, window_strides=(1, 1), padding=[(d, d), (d, d)],
            rhs_dilation=(d, d), dimension_numbers=('NHWC', 'HWIO', 'NHWC'))
        return jnp.maximum(y * p['scale'].reshape(1, 1, 1, cout)
                           + p['bias'].reshape(1, 1, 1, cout), 0.0)

    def pool(x):
        B, H, W, C = x.shape
        Ho, Wo = -(-H // 2), -(-W // 2)
        xp = jnp.pad(x, ((0, 0), (0, 2 * Ho - H), (0, 2 * Wo - W), (0, 0)),
                     constant_values=-jnp.inf)
        return xp.reshape(B, Ho, 2, Wo, 2, C).max(axis=(2, 4))

    def upsample(x, oh, ow):
        Mh = jnp.asarray(_bilinear_matrix_np(oh, x.shape[1]), jnp.float32)
        Mw = jnp.asarray(_bilinear_matrix_np(ow, x.shape[2]), jnp.float32)
        y = jnp.einsum('oh,bhwc->bowc', Mh, x)
        return jnp.einsum('pw,bowc->bopc', Mw, y)

    x = jnp.transpose(x_nchw, (0, 2, 3, 1)).astype(jnp.float32)
    hxin = conv(x, params['in'], 1)
    hx1 = conv(hxin, params['c1'], 1)
    hx2 = conv(pool(hx1), params['c2'], 1)
    hx3 = conv(pool(hx2), params['c3'], 1)
    hx4 = conv(hx3, params['c4'], 2)
    hx3d = conv(jnp.concatenate([hx4, hx3], -1), params['c3d'], 1)
    hx2d = conv(jnp.concatenate([upsample(hx3d, hx2.shape[1], hx2.shape[2]), hx2], -1),
                params['c2d'], 1)
    hx1d = conv(jnp.concatenate([upsample(hx2d, hx1.shape[1], hx1.shape[2]), hx1], -1),
                params['c1d'], 1)
    return jnp.transpose(hx1d + hxin, (0, 3, 1, 2))


if __name__ == "__main__":
    B, IN_CH, MID_CH, OUT_CH, H, W = 2, 4, 8, 4, 16, 16

    key = jax.random.PRNGKey(0)
    k_x, k_p = jax.random.split(key)
    x = jax.random.normal(k_x, (B, IN_CH, H, W), jnp.float32)        # NCHW like PyTorch
    params = make_rsu4_params(k_p, IN_CH, MID_CH, OUT_CH)

    out = jax.jit(rsu4_forward)(x, params)
    out = jax.block_until_ready(out)
    assert out.shape == (B, OUT_CH, H, W), out.shape
    assert bool(jnp.all(jnp.isfinite(out)))

    # Loose check vs. an f32 XLA reference (kernel uses bf16 activations/weights).
    ref = jax.jit(rsu4_reference)(x, params)
    ref = jax.block_until_ready(ref)
    err = float(jnp.max(jnp.abs(out - ref)))
    scale = float(jnp.max(jnp.abs(ref)))
    assert err <= 5e-2 * max(scale, 1.0), (err, scale)

    print("KERNEL_OK")
</pallas_src>

<mosaic_0001>
module attributes {stable_mosaic.version = 11 : i64} {
  func.func @rsu4_kernel(%arg0: i32, %arg1: memref<1x4x256xbf16, #tpu.memory_space<vmem>>, %arg2: memref<256x256xbf16, #tpu.memory_space<vmem>>, %arg3: memref<64x64xbf16, #tpu.memory_space<vmem>>, %arg4: memref<16x64xf32, #tpu.memory_space<vmem>>, %arg5: memref<64x256xf32, #tpu.memory_space<vmem>>, %arg6: memref<56x144xbf16, #tpu.memory_space<vmem>>, %arg7: memref<56x2xf32, #tpu.memory_space<vmem>>, %arg8: memref<1x4x256xf32, #tpu.memory_space<vmem>>, %arg9: memref<16x290xbf16, #tpu.memory_space<vmem>>) attributes {dimension_semantics = [#tpu.dimension_semantics<parallel>], iteration_bounds = array<i64: 2>, scalar_prefetch = 0 : i64, scratch_operands = 1 : i64, tpu.core_type = #tpu.core_type<tc>, window_params = [{transform_indices = @transform_0, window_bounds = array<i64: 1, 4, 256>}, {pipeline_mode = #tpu.pipeline_mode<synchronous>, transform_indices = @transform_1, window_bounds = array<i64: 256, 256>}, {pipeline_mode = #tpu.pipeline_mode<synchronous>, transform_indices = @transform_2, window_bounds = array<i64: 64, 64>}, {pipeline_mode = #tpu.pipeline_mode<synchronous>, transform_indices = @transform_3, window_bounds = array<i64: 16, 64>}, {pipeline_mode = #tpu.pipeline_mode<synchronous>, transform_indices = @transform_4, window_bounds = array<i64: 64, 256>}, {pipeline_mode = #tpu.pipeline_mode<synchronous>, transform_indices = @transform_5, window_bounds = array<i64: 56, 144>}, {pipeline_mode = #tpu.pipeline_mode<synchronous>, transform_indices = @transform_6, window_bounds = array<i64: 56, 2>}, {transform_indices = @transform_7, window_bounds = array<i64: 1, 4, 256>}]} {
    %c0 = arith.constant 0 : index
    %c0_0 = arith.constant 0 : index
    %c0_1 = arith.constant 0 : index
    %0 = vector.load %arg1[%c0, %c0_0, %c0_1] : memref<1x4x256xbf16, #tpu.memory_space<vmem>>, vector<1x4x256xbf16>
    %1 = vector.shape_cast %0 : vector<1x4x256xbf16> to vector<4x256xbf16>
    %c0_2 = arith.constant 0 : index
    %c0_3 = arith.constant 0 : index
    %2 = vector.load %arg6[%c0_2, %c0_3] : memref<56x144xbf16, #tpu.memory_space<vmem>>, vector<4x36xbf16>
    %c0_4 = arith.constant 0 : index
    %c0_5 = arith.constant 0 : index
    %3 = vector.load %arg7[%c0_4, %c0_5] : memref<56x2xf32, #tpu.memory_space<vmem>>, vector<4x1xf32>
    %c0_6 = arith.constant 0 : index
    %c1 = arith.constant 1 : index
    %4 = vector.load %arg7[%c0_6, %c1] : memref<56x2xf32, #tpu.memory_space<vmem>>, vector<4x1xf32>
    %cst = arith.constant 0.000000e+00 : bf16
    %5 = vector.broadcast %cst : bf16 to vector<4x17xbf16>
    %c0_7 = arith.constant 0 : index
    %c0_8 = arith.constant 0 : index
    %6 = vector.load %arg9[%c0_7, %c0_8] : memref<16x290xbf16, #tpu.memory_space<vmem>>, vector<4x17xbf16>
    tpu.vector_store %arg9[%c0_7, %c0_8], %5 {strides = array<i32>} : memref<16x290xbf16, #tpu.memory_space<vmem>>, vector<4x17xbf16>,
    %cst_9 = arith.constant 0.000000e+00 : bf16
    %7 = vector.broadcast %cst_9 : bf16 to vector<4x17xbf16>
    %c0_10 = arith.constant 0 : index
    %c273 = arith.constant 273 : index
    %8 = vector.load %arg9[%c0_10, %c273] : memref<16x290xbf16, #tpu.memory_space<vmem>>, vector<4x17xbf16>
    tpu.vector_store %arg9[%c0_10, %c273], %7 {strides = array<i32>} : memref<16x290xbf16, #tpu.memory_space<vmem>>, vector<4x17xbf16>,
    %c0_11 = arith.constant 0 : index
    %c17 = arith.constant 17 : index
    %9 = vector.load %arg9[%c0_11, %c17] : memref<16x290xbf16, #tpu.memory_space<vmem>>, vector<4x256xbf16>
    tpu.vector_store %arg9[%c0_11, %c17], %1 {strides = array<i32>} : memref<16x290xbf16, #tpu.memory_space<vmem>>, vector<4x256xbf16>,
    %10 = tpu.iota {dimensions = array<i32: 1>} : vector<1x256xi32>
    %c16_i32 = arith.constant 16 : i32
    %c0_i32 = arith.constant 0 : i32
    %11 = arith.cmpi eq, %c16_i32, %c0_i32 : i32
    %c1_i32 = arith.constant 1 : i32
    %12 = arith.select %11, %c1_i32, %c16_i32 : i32
    %13 = vector.broadcast %12 : i32 to vector<1x256xi32>
    %14 = arith.remsi %10, %13 : vector<1x256xi32>
    %c0_i32_12 = arith.constant 0 : i32
    %15 = vector.broadcast %c0_i32_12 : i32 to vector<1x256xi32>
    %16 = arith.cmpi ne, %14, %15 : vector<1x256xi32>
    %c0_i32_13 = arith.constant 0 : i32
    %17 = vector.broadcast %c0_i32_13 : i32 to vector<1x256xi32>
    %18 = arith.cmpi slt, %14, %17 : vector<1x256xi32>
    %c0_i32_14 = arith.constant 0 : i32
    %19 = arith.cmpi slt, %12, %c0_i32_14 : i32
    %20 = vector.broadcast %19 : i1 to vector<1x256xi1>
    %21 = vector.broadcast %20 : vector<1x256xi1> to vector<1x256xi1>
    %22 = arith.xori %18, %21 : vector<1x256xi1>
    %23 = arith.andi %22, %16 : vector<1x256xi1>
    %24 = vector.broadcast %12 : i32 to vector<1x256xi32>
    %25 = arith.addi %14, %24 : vector<1x256xi32>
    %26 = arith.select %23, %25, %14 : vector<1x256xi1>, vector<1x256xi32>
    %c1_i32_15 = arith.constant 1 : i32
    %27 = vector.broadcast %c1_i32_15 : i32 to vector<1x256xi32>
    %28 = arith.cmpi sge, %26, %27 : vector<1x256xi32>
    %29 = arith.extui %28 : vector<1x256xi1> to vector<1x256xi32>
    %30 = arith.sitofp %29 : vector<1x256xi32> to vector<1x256xf32>
    %31 = arith.truncf %30 : vector<1x256xf32> to vector<1x256xbf16>
    %c15_i32 = arith.constant 15 : i32
    %32 = vector.broadcast %c15_i32 : i32 to vector<1x256xi32>
    %33 = arith.cmpi slt, %26, %32 : vector<1x256xi32>
    %34 = arith.extui %33 : vector<1x256xi1> to vector<1x256xi32>
    %35 = arith.sitofp %34 : vector<1x256xi32> to vector<1x256xf32>
    %36 = arith.truncf %35 : vector<1x256xf32> to vector<1x256xbf16>
    %c0_16 = arith.constant 0 : index
    %c0_17 = arith.constant 0 : index
    %37 = vector.load %arg9[%c0_16, %c0_17] : memref<16x290xbf16, #tpu.memory_space<vmem>>, vector<4x256xbf16>
    %38 = vector.broadcast %31 : vector<1x256xbf16> to vector<4x256xbf16>
    %39 = arith.mulf %37, %38 : vector<4x256xbf16>
    %c0_18 = arith.constant 0 : index
    %c1_19 = arith.constant 1 : index
    %40 = vector.load %arg9[%c0_18, %c1_19] : memref<16x290xbf16, #tpu.memory_space<vmem>>, vector<4x256xbf16>
    %c0_20 = arith.constant 0 : index
    %c2 = arith.constant 2 : index
    %41 = vector.load %arg9[%c0_20, %c2] : memref<16x290xbf16, #tpu.memory_space<vmem>>, vector<4x256xbf16>
    %42 = vector.broadcast %36 : vector<1x256xbf16> to vector<4x256xbf16>
    %43 = arith.mulf %41, %42 : vector<4x256xbf16>
    %c0_21 = arith.constant 0 : index
    %c16 = arith.constant 16 : index
    %44 = vector.load %arg9[%c0_21, %c16] : memref<16x290xbf16, #tpu.memory_space<vmem>>, vector<4x256xbf16>
    %45 = vector.broadcast %31 : vector<1x256xbf16> to vector<4x256xbf16>
    %46 = arith.mulf %44, %45 : vector<4x256xbf16>
    %c0_22 = arith.constant 0 : index
    %c17_23 = arith.constant 17 : index
    %47 = vector.load %arg9[%c0_22, %c17_23] : memref<16x290xbf16, #tpu.memory_space<vmem>>, vector<4x256xbf16>
    %c0_24 = arith.constant 0 : index
    %c18 = arith.constant 18 : index
    %48 = vector.load %arg9[%c0_24, %c18] : memref<16x290xbf16, #tpu.memory_space<vmem>>, vector<4x256xbf16>
    %49 = vector.broadcast %36 : vector<1x256xbf16> to vector<4x256xbf16>
    %50 = arith.mulf %48, %49 : vector<4x256xbf16>
    %c0_25 = arith.constant 0 : index
    %c32 = arith.constant 32 : index
    %51 = vector.load %arg9[%c0_25, %c32] : memref<16x290xbf16, #tpu.memory_space<vmem>>, vector<4x256xbf16>
    %52 = vector.broadcast %31 : vector<1x256xbf16> to vector<4x256xbf16>
    %53 = arith.mulf %51, %52 : vector<4x256xbf16>
    %c0_26 = arith.constant 0 : index
    %c33 = arith.constant 33 : index
    %54 = vector.load %arg9[%c0_26, %c33] : memref<16x290xbf16, #tpu.memory_space<vmem>>, vector<4x256xbf16>
    %c0_27 = arith.constant 0 : index
    %c34 = arith.constant 34 : index
    %55 = vector.load %arg9[%c0_27, %c34] : memref<16x290xbf16, #tpu.memory_space<vmem>>, vector<4x256xbf16>
    %56 = vector.broadcast %36 : vector<1x256xbf16> to vector<4x256xbf16>
    %57 = arith.mulf %55, %56 : vector<4x256xbf16>
    %58 = tpu.concatenate %39, %40, %43, %46, %47, %50, %53, %54, %57 in 0 : vector<4x256xbf16>, vector<4x256xbf16>, vector<4x256xbf16>, vector<4x256xbf16>, vector<4x256xbf16>, vector<4x256xbf16>, vector<4x256xbf16>, vector<4x256xbf16>, vector<4x256xbf16> -> vector<36x256xbf16>
    %cst_28 = arith.constant dense<0.000000e+00> : vector<4x256xf32>
    %59 = tpu.matmul %2, %58, %cst_28 {dimension_numbers = #tpu.dot_dimension_numbers<[1], [0], [0], [1], [0, 0, 1, 1], [], []>} : vector<4x36xbf16>, vector<36x256xbf16>, vector<4x256xf32> -> vector<4x256xf32>
    %60 = vector.broadcast %3 : vector<4x1xf32> to vector<4x256xf32>
    %61 = arith.mulf %59, %60 : vector<4x256xf32>
    %62 = vector.broadcast %4 : vector<4x1xf32> to vector<4x256xf32>
    %63 = arith.addf %61, %62 : vector<4x256xf32>
    %cst_29 = arith.constant 0.000000e+00 : f32
    %64 = vector.broadcast %cst_29 : f32 to vector<4x256xf32>
    %65 = arith.maximumf %63, %64 : vector<4x256xf32>
    %66 = arith.truncf %65 : vector<4x256xf32> to vector<4x256xbf16>
    %c4 = arith.constant 4 : index
    %c0_30 = arith.constant 0 : index
    %67 = vector.load %arg6[%c4, %c0_30] : memref<56x144xbf16, #tpu.memory_space<vmem>>, vector<8x36xbf16>
    %c4_31 = arith.constant 4 : index
    %c0_32 = arith.constant 0 : index
    %68 = vector.load %arg7[%c4_31, %c0_32] : memref<56x2xf32, #tpu.memory_space<vmem>>, vector<8x1xf32>
    %c4_33 = arith.constant 4 : index
    %c1_34 = arith.constant 1 : index
    %69 = vector.load %arg7[%c4_33, %c1_34] : memref<56x2xf32, #tpu.memory_space<vmem>>, vector<8x1xf32>
    %cst_35 = arith.constant 0.000000e+00 : bf16
    %70 = vector.broadcast %cst_35 : bf16 to vector<4x17xbf16>
    %c0_36 = arith.constant 0 : index
    %c0_37 = arith.constant 0 : index
    %71 = vector.load %arg9[%c0_36, %c0_37] : memref<16x290xbf16, #tpu.memory_space<vmem>>, vector<4x17xbf16>
    tpu.vector_store %arg9[%c0_36, %c0_37], %70 {strides = array<i32>} : memref<16x290xbf16, #tpu.memory_space<vmem>>, vector<4x17xbf16>,
    %cst_38 = arith.constant 0.000000e+00 : bf16
    %72 = vector.broadcast %cst_38 : bf16 to vector<4x17xbf16>
    %c0_39 = arith.constant 0 : index
    %c273_40 = arith.constant 273 : index
    %73 = vector.load %arg9[%c0_39, %c273_40] : memref<16x290xbf16, #tpu.memory_space<vmem>>, vector<4x17xbf16>
    tpu.vector_store %arg9[%c0_39, %c273_40], %72 {strides = array<i32>} : memref<16x290xbf16, #tpu.memory_space<vmem>>, vector<4x17xbf16>,
    %c0_41 = arith.constant 0 : index
    %c17_42 = arith.constant 17 : index
    %74 = vector.load %arg9[%c0_41, %c17_42] : memref<16x290xbf16, #tpu.memory_space<vmem>>, vector<4x256xbf16>
    tpu.vector_store %arg9[%c0_41, %c17_42], %66 {strides = array<i32>} : memref<16x290xbf16, #tpu.memory_space<vmem>>, vector<4x256xbf16>,
    %75 = tpu.iota {dimensions = array<i32: 1>} : vector<1x256xi32>
    %c16_i32_43 = arith.constant 16 : i32
    %c0_i32_44 = arith.constant 0 : i32
    %76 = arith.cmpi eq, %c16_i32_43, %c0_i32_44 : i32
    %c1_i32_45 = arith.constant 1 : i32
    %77 = arith.select %76, %c1_i32_45, %c16_i32_43 : i32
    %78 = vector.broadcast %77 : i32 to vector<1x256xi32>
    %79 = arith.remsi %75, %78 : vector<1x256xi32>
    %c0_i32_46 = arith.constant 0 : i32
    %80 = vector.broadcast %c0_i32_46 : i32 to vector<1x256xi32>
    %81 = arith.cmpi ne, %79, %80 : vector<1x256xi32>
    %c0_i32_47 = arith.constant 0 : i32
    %82 = vector.broadcast %c0_i32_47 : i32 to vector<1x256xi32>
    %83 = arith.cmpi slt, %79, %82 : vector<1x256xi32>
    %c0_i32_48 = arith.constant 0 : i32
    %84 = arith.cmpi slt, %77, %c0_i32_48 : i32
    %85 = vector.broadcast %84 : i1 to vector<1x256xi1>
    %86 = vector.broadcast %85 : vector<1x256xi1> to vector<1x256xi1>
    %87 = arith.xori %83, %86 : vector<1x256xi1>
    %88 = arith.andi %87, %81 : vector<1x256xi1>
    %89 = vector.broadcast %77 : i32 to vector<1x256xi32>
    %90 = arith.addi %79, %89 : vector<1x256xi32>
    %91 = arith.select %88, %90, %79 : vector<1x256xi1>, vector<1x256xi32>
    %c1_i32_49 = arith.constant 1 : i32
    %92 = vector.broadcast %c1_i32_49 : i32 to vector<1x256xi32>
    %93 = arith.cmpi sge, %91, %92 : vector<1x256xi32>
    %94 = arith.extui %93 : vector<1x256xi1> to vector<1x256xi32>
    %95 = arith.sitofp %94 : vector<1x256xi32> to vector<1x256xf32>
    %96 = arith.truncf %95 : vector<1x256xf32> to vector<1x256xbf16>
    %c15_i32_50 = arith.constant 15 : i32
    %97 = vector.broadcast %c15_i32_50 : i32 to vector<1x256xi32>
    %98 = arith.cmpi slt, %91, %97 : vector<1x256xi32>
    %99 = arith.extui %98 : vector<1x256xi1> to vector<1x256xi32>
    %100 = arith.sitofp %99 : vector<1x256xi32> to vector<1x256xf32>
    %101 = arith.truncf %100 : vector<1x256xf32> to vector<1x256xbf16>
    %c0_51 = arith.constant 0 : index
    %c0_52 = arith.constant 0 : index
    %102 = vector.load %arg9[%c0_51, %c0_52] : memref<16x290xbf16, #tpu.memory_space<vmem>>, vector<4x256xbf16>
    %103 = vector.broadcast %96 : vector<1x256xbf16> to vector<4x256xbf16>
    %104 = arith.mulf %102, %103 : vector<4x256xbf16>
    %c0_53 = arith.constant 0 : index
    %c1_54 = arith.constant 1 : index
    %105 = vector.load %arg9[%c0_53, %c1_54] : memref<16x290xbf16, #tpu.memory_space<vmem>>, vector<4x256xbf16>
    %c0_55 = arith.constant 0 : index
    %c2_56 = arith.constant 2 : index
    %106 = vector.load %arg9[%c0_55, %c2_56] : memref<16x290xbf16, #tpu.memory_space<vmem>>, vector<4x256xbf16>
    %107 = vector.broadcast %101 : vector<1x256xbf16> to vector<4x256xbf16>
    %108 = arith.mulf %106, %107 : vector<4x256xbf16>
    %c0_57 = arith.constant 0 : index
    %c16_58 = arith.constant 16 : index
    %109 = vector.load %arg9[%c0_57, %c16_58] : memref<16x290xbf16, #tpu.memory_space<vmem>>, vector<4x256xbf16>
    %110 = vector.broadcast %96 : vector<1x256xbf16> to vector<4x256xbf16>
    %111 = arith.mulf %109, %110 : vector<4x256xbf16>
    %c0_59 = arith.constant 0 : index
    %c17_60 = arith.constant 17 : index
    %112 = vector.load %arg9[%c0_59, %c17_60] : memref<16x290xbf16, #tpu.memory_space<vmem>>, vector<4x256xbf16>
    %c0_61 = arith.constant 0 : index
    %c18_62 = arith.constant 18 : index
    %113 = vector.load %arg9[%c0_61, %c18_62] : memref<16x290xbf16, #tpu.memory_space<vmem>>, vector<4x256xbf16>
    %114 = vector.broadcast %101 : vector<1x256xbf16> to vector<4x256xbf16>
    %115 = arith.mulf %113, %114 : vector<4x256xbf16>
    %c0_63 = arith.constant 0 : index
    %c32_64 = arith.constant 32 : index
    %116 = vector.load %arg9[%c0_63, %c32_64] : memref<16x290xbf16, #tpu.memory_space<vmem>>, vector<4x256xbf16>
    %117 = vector.broadcast %96 : vector<1x256xbf16> to vector<4x256xbf16>
    %118 = arith.mulf %116, %117 : vector<4x256xbf16>
    %c0_65 = arith.constant 0 : index
    %c33_66 = arith.constant 33 : index
    %119 = vector.load %arg9[%c0_65, %c33_66] : memref<16x290xbf16, #tpu.memory_space<vmem>>, vector<4x256xbf16>
    %c0_67 = arith.constant 0 : index
    %c34_68 = arith.constant 34 : index
    %120 = vector.load %arg9[%c0_67, %c34_68] : memref<16x290xbf16, #tpu.memory_space<vmem>>, vector<4x256xbf16>
    %121 = vector.broadcast %101 : vector<1x256xbf16> to vector<4x256xbf16>
    %122 = arith.mulf %120, %121 : vector<4x256xbf16>
    %123 = tpu.concatenate %104, %105, %108, %111, %112, %115, %118, %119, %122 in 0 : vector<4x256xbf16>, vector<4x256xbf16>, vector<4x256xbf16>, vector<4x256xbf16>, vector<4x256xbf16>, vector<4x256xbf16>, vector<4x256xbf16>, vector<4x256xbf16>, vector<4x256xbf16> -> vector<36x256xbf16>
    %cst_69 = arith.constant dense<0.000000e+00> : vector<8x256xf32>
    %124 = tpu.matmul %67, %123, %cst_69 {dimension_numbers = #tpu.dot_dimension_numbers<[1], [0], [0], [1], [0, 0, 1, 1], [], []>} : vector<8x36xbf16>, vector<36x256xbf16>, vector<8x256xf32> -> vector<8x256xf32>
    %125 = vector.broadcast %68 : vector<8x1xf32> to vector<8x256xf32>
    %126 = arith.mulf %124, %125 : vector<8x256xf32>
    %127 = vector.broadcast %69 : vector<8x1xf32> to vector<8x256xf32>
    %128 = arith.addf %126, %127 : vector<8x256xf32>
    %cst_70 = arith.constant 0.000000e+00 : f32
    %129 = vector.broadcast %cst_70 : f32 to vector<8x256xf32>
    %130 = arith.maximumf %128, %129 : vector<8x256xf32>
    %131 = arith.truncf %130 : vector<8x256xf32> to vector<8x256xbf16>
    %c0_71 = arith.constant 0 : index
    %c0_72 = arith.constant 0 : index
    %132 = vector.load %arg2[%c0_71, %c0_72] : memref<256x256xbf16, #tpu.memory_space<vmem>>, vector<256x256xbf16>
    %cst_73 = arith.constant dense<0.000000e+00> : vector<8x256xf32>
    %133 = tpu.matmul %131, %132, %cst_73 {dimension_numbers = #tpu.dot_dimension_numbers<[1], [0], [0], [1], [0, 0, 1, 1], [], []>} : vector<8x256xbf16>, vector<256x256xbf16>, vector<8x256xf32> -> vector<8x256xf32>
    %134 = vector.extract_strided_slice %133 {offsets = [0, 0], sizes = [8, 64], strides = [1, 1]} : vector<8x256xf32> to vector<8x64xf32>
    %135 = vector.extract_strided_slice %133 {offsets = [0, 64], sizes = [8, 64], strides = [1, 1]} : vector<8x256xf32> to vector<8x64xf32>
    %136 = arith.maximumf %134, %135 : vector<8x64xf32>
    %137 = vector.extract_strided_slice %133 {offsets = [0, 128], sizes = [8, 64], strides = [1, 1]} : vector<8x256xf32> to vector<8x64xf32>
    %138 = vector.extract_strided_slice %133 {offsets = [0, 192], sizes = [8, 64], strides = [1, 1]} : vector<8x256xf32> to vector<8x64xf32>
    %139 = arith.maximumf %137, %138 : vector<8x64xf32>
    %140 = arith.maximumf %136, %139 : vector<8x64xf32>
    %141 = arith.truncf %140 : vector<8x64xf32> to vector<8x64xbf16>
    %c12 = arith.constant 12 : index
    %c0_74 = arith.constant 0 : index
    %142 = vector.load %arg6[%c12, %c0_74] : memref<56x144xbf16, #tpu.memory_space<vmem>>, vector<8x72xbf16>
    %c12_75 = arith.constant 12 : index
    %c0_76 = arith.constant 0 : index
    %143 = vector.load %arg7[%c12_75, %c0_76] : memref<56x2xf32, #tpu.memory_space<vmem>>, vector<8x1xf32>
    %c12_77 = arith.constant 12 : index
    %c1_78 = arith.constant 1 : index
    %144 = vector.load %arg7[%c12_77, %c1_78] : memref<56x2xf32, #tpu.memory_space<vmem>>, vector<8x1xf32>
    %cst_79 = arith.constant 0.000000e+00 : bf16
    %145 = vector.broadcast %cst_79 : bf16 to vector<8x9xbf16>
    %c0_80 = arith.constant 0 : index
    %c0_81 = arith.constant 0 : index
    %146 = vector.load %arg9[%c0_80, %c0_81] : memref<16x290xbf16, #tpu.memory_space<vmem>>, vector<8x9xbf16>
    tpu.vector_store %arg9[%c0_80, %c0_81], %145 {strides = array<i32>} : memref<16x290xbf16, #tpu.memory_space<vmem>>, vector<8x9xbf16>,
    %cst_82 = arith.constant 0.000000e+00 : bf16
    %147 = vector.broadcast %cst_82 : bf16 to vector<8x9xbf16>
    %c0_83 = arith.constant 0 : index
    %c73 = arith.constant 73 : index
    %148 = vector.load %arg9[%c0_83, %c73] : memref<16x290xbf16, #tpu.memory_space<vmem>>, vector<8x9xbf16>
    tpu.vector_store %arg9[%c0_83, %c73], %147 {strides = array<i32>} : memref<16x290xbf16, #tpu.memory_space<vmem>>, vector<8x9xbf16>,
    %c0_84 = arith.constant 0 : index
    %c9 = arith.constant 9 : index
    %149 = vector.load %arg9[%c0_84, %c9] : memref<16x290xbf16, #tpu.memory_space<vmem>>, vector<8x64xbf16>
    tpu.vector_store %arg9[%c0_84, %c9], %141 {strides = array<i32>} : memref<16x290xbf16, #tpu.memory_space<vmem>>, vector<8x64xbf16>,
    %150 = tpu.iota {dimensions = array<i32: 1>} : vector<1x64xi32>
    %c8_i32 = arith.constant 8 : i32
    %c0_i32_85 = arith.constant 0 : i32
    %151 = arith.cmpi eq, %c8_i32, %c0_i32_85 : i32
    %c1_i32_86 = arith.constant 1 : i32
    %152 = arith.select %151, %c1_i32_86, %c8_i32 : i32
    %153 = vector.broadcast %152 : i32 to vector<1x64xi32>
    %154 = arith.remsi %150, %153 : vector<1x64xi32>
    %c0_i32_87 = arith.constant 0 : i32
    %155 = vector.broadcast %c0_i32_87 : i32 to vector<1x64xi32>
    %156 = arith.cmpi ne, %154, %155 : vector<1x64xi32>
    %c0_i32_88 = arith.constant 0 : i32
    %157 = vector.broadcast %c0_i32_88 : i32 to vector<1x64xi32>
    %158 = arith.cmpi slt, %154, %157 : vector<1x64xi32>
    %c0_i32_89 = arith.constant 0 : i32
    %159 = arith.cmpi slt, %152, %c0_i32_89 : i32
    %160 = vector.broadcast %159 : i1 to vector<1x64xi1>
    %161 = vector.broadcast %160 : vector<1x64xi1> to vector<1x64xi1>
    %162 = arith.xori %158, %161 : vector<1x64xi1>
    %163 = arith.andi %162, %156 : vector<1x64xi1>
    %164 = vector.broadcast %152 : i32 to vector<1x64xi32>
    %165 = arith.addi %154, %164 : vector<1x64xi32>
    %166 = arith.select %163, %165, %154 : vector<1x64xi1>, vector<1x64xi32>
    %c1_i32_90 = arith.constant 1 : i32
    %167 = vector.broadcast %c1_i32_90 : i32 to vector<1x64xi32>
    %168 = arith.cmpi sge, %166, %167 : vector<1x64xi32>
    %169 = arith.extui %168 : vector<1x64xi1> to vector<1x64xi32>
    %170 = arith.sitofp %169 : vector<1x64xi32> to vector<1x64xf32>
    %171 = arith.truncf %170 : vector<1x64xf32> to vector<1x64xbf16>
    %c7_i32 = arith.constant 7 : i32
    %172 = vector.broadcast %c7_i32 : i32 to vector<1x64xi32>
    %173 = arith.cmpi slt, %166, %172 : vector<1x64xi32>
    %174 = arith.extui %173 : vector<1x64xi1> to vector<1x64xi32>
    %175 = arith.sitofp %174 : vector<1x64xi32> to vector<1x64xf32>
    %176 = arith.truncf %175 : vector<1x64xf32> to vector<1x64xbf16>
    %c0_91 = arith.constant 0 : index
    %c0_92 = arith.constant 0 : index
    %177 = vector.load %arg9[%c0_91, %c0_92] : memref<16x290xbf16, #tpu.memory_space<vmem>>, vector<8x64xbf16>
    %178 = vector.broadcast %171 : vector<1x64xbf16> to vector<8x64xbf16>
    %179 = arith.mulf %177, %178 : vector<8x64xbf16>
    %c0_93 = arith.constant 0 : index
    %c1_94 = arith.constant 1 : index
    %180 = vector.load %arg9[%c0_93, %c1_94] : memref<16x290xbf16, #tpu.memory_space<vmem>>, vector<8x64xbf16>
    %c0_95 = arith.constant 0 : index
    %c2_96 = arith.constant 2 : index
    %181 = vector.load %arg9[%c0_95, %c2_96] : memref<16x290xbf16, #tpu.memory_space<vmem>>, vector<8x64xbf16>
    %182 = vector.broadcast %176 : vector<1x64xbf16> to vector<8x64xbf16>
    %183 = arith.mulf %181, %182 : vector<8x64xbf16>
    %c0_97 = arith.constant 0 : index
    %c8 = arith.constant 8 : index
    %184 = vector.load %arg9[%c0_97, %c8] : memref<16x290xbf16, #tpu.memory_space<vmem>>, vector<8x64xbf16>
    %185 = vector.broadcast %171 : vector<1x64xbf16> to vector<8x64xbf16>
    %186 = arith.mulf %184, %185 : vector<8x64xbf16>
    %c0_98 = arith.constant 0 : index
    %c9_99 = arith.constant 9 : index
    %187 = vector.load %arg9[%c0_98, %c9_99] : memref<16x290xbf16, #tpu.memory_space<vmem>>, vector<8x64xbf16>
    %c0_100 = arith.constant 0 : index
    %c10 = arith.constant 10 : index
    %188 = vector.load %arg9[%c0_100, %c10] : memref<16x290xbf16, #tpu.memory_space<vmem>>, vector<8x64xbf16>
    %189 = vector.broadcast %176 : vector<1x64xbf16> to vector<8x64xbf16>
    %190 = arith.mulf %188, %189 : vector<8x64xbf16>
    %c0_101 = arith.constant 0 : index
    %c16_102 = arith.constant 16 : index
    %191 = vector.load %arg9[%c0_101, %c16_102] : memref<16x290xbf16, #tpu.memory_space<vmem>>, vector<8x64xbf16>
    %192 = vector.broadcast %171 : vector<1x64xbf16> to vector<8x64xbf16>
    %193 = arith.mulf %191, %192 : vector<8x64xbf16>
    %c0_103 = arith.constant 0 : index
    %c17_104 = arith.constant 17 : index
    %194 = vector.load %arg9[%c0_103, %c17_104] : memref<16x290xbf16, #tpu.memory_space<vmem>>, vector<8x64xbf16>
    %c0_105 = arith.constant 0 : index
    %c18_106 = arith.constant 18 : index
    %195 = vector.load %arg9[%c0_105, %c18_106] : memref<16x290xbf16, #tpu.memory_space<vmem>>, vector<8x64xbf16>
    %196 = vector.broadcast %176 : vector<1x64xbf16> to vector<8x64xbf16>
    %197 = arith.mulf %195, %196 : vector<8x64xbf16>
    %198 = tpu.concatenate %179, %180, %183, %186, %187, %190, %193, %194, %197 in 0 : vector<8x64xbf16>, vector<8x64xbf16>, vector<8x64xbf16>, vector<8x64xbf16>, vector<8x64xbf16>, vector<8x64xbf16>, vector<8x64xbf16>, vector<8x64xbf16>, vector<8x64xbf16> -> vector<72x64xbf16>
    %cst_107 = arith.constant dense<0.000000e+00> : vector<8x64xf32>
    %199 = tpu.matmul %142, %198, %cst_107 {dimension_numbers = #tpu.dot_dimension_numbers<[1], [0], [0], [1], [0, 0, 1, 1], [], []>} : vector<8x72xbf16>, vector<72x64xbf16>, vector<8x64xf32> -> vector<8x64xf32>
    %200 = vector.broadcast %143 : vector<8x1xf32> to vector<8x64xf32>
    %201 = arith.mulf %199, %200 : vector<8x64xf32>
    %202 = vector.broadcast %144 : vector<8x1xf32> to vector<8x64xf32>
    %203 = arith.addf %201, %202 : vector<8x64xf32>
    %cst_108 = arith.constant 0.000000e+00 : f32
    %204 = vector.broadcast %cst_108 : f32 to vector<8x64xf32>
    %205 = arith.maximumf %203, %204 : vector<8x64xf32>
    %206 = arith.truncf %205 : vector<8x64xf32> to vector<8x64xbf16>
    %c0_109 = arith.constant 0 : index
    %c0_110 = arith.constant 0 : index
    %207 = vector.load %arg3[%c0_109, %c0_110] : memref<64x64xbf16, #tpu.memory_space<vmem>>, vector<64x64xbf16>
    %cst_111 = arith.constant dense<0.000000e+00> : vector<8x64xf32>
    %208 = tpu.matmul %206, %207, %cst_111 {dimension_numbers = #tpu.dot_dimension_numbers<[1], [0], [0], [1], [0, 0, 1, 1], [], []>} : vector<8x64xbf16>, vector<64x64xbf16>, vector<8x64xf32> -> vector<8x64xf32>
    %209 = vector.extract_strided_slice %208 {offsets = [0, 0], sizes = [8, 16], strides = [1, 1]} : vector<8x64xf32> to vector<8x16xf32>
    %210 = vector.extract_strided_slice %208 {offsets = [0, 16], sizes = [8, 16], strides = [1, 1]} : vector<8x64xf32> to vector<8x16xf32>
    %211 = arith.maximumf %209, %210 : vector<8x16xf32>
    %212 = vector.extract_strided_slice %208 {offsets = [0, 32], sizes = [8, 16], strides = [1, 1]} : vector<8x64xf32> to vector<8x16xf32>
    %213 = vector.extract_strided_slice %208 {offsets = [0, 48], sizes = [8, 16], strides = [1, 1]} : vector<8x64xf32> to vector<8x16xf32>
    %214 = arith.maximumf %212, %213 : vector<8x16xf32>
    %215 = arith.maximumf %211, %214 : vector<8x16xf32>
    %216 = arith.truncf %215 : vector<8x16xf32> to vector<8x16xbf16>
    %c20 = arith.constant 20 : index
    %c0_112 = arith.constant 0 : index
    %217 = vector.load %arg6[%c20, %c0_112] : memref<56x144xbf16, #tpu.memory_space<vmem>>, vector<8x72xbf16>
    %c20_113 = arith.constant 20 : index
    %c0_114 = arith.constant 0 : index
    %218 = vector.load %arg7[%c20_113, %c0_114] : memref<56x2xf32, #tpu.memory_space<vmem>>, vector<8x1xf32>
    %c20_115 = arith.constant 20 : index
    %c1_116 = arith.constant 1 : index
    %219 = vector.load %arg7[%c20_115, %c1_116] : memref<56x2xf32, #tpu.memory_space<vmem>>, vector<8x1xf32>
    %cst_117 = arith.constant 0.000000e+00 : bf16
    %220 = vector.broadcast %cst_117 : bf16 to vector<8x5xbf16>
    %c0_118 = arith.constant 0 : index
    %c0_119 = arith.constant 0 : index
    %221 = vector.load %arg9[%c0_118, %c0_119] : memref<16x290xbf16, #tpu.memory_space<vmem>>, vector<8x5xbf16>
    tpu.vector_store %arg9[%c0_118, %c0_119], %220 {strides = array<i32>} : memref<16x290xbf16, #tpu.memory_space<vmem>>, vector<8x5xbf16>,
    %cst_120 = arith.constant 0.000000e+00 : bf16
    %222 = vector.broadcast %cst_120 : bf16 to vector<8x5xbf16>
    %c0_121 = arith.constant 0 : index
    %c21 = arith.constant 21 : index
    %223 = vector.load %arg9[%c0_121, %c21] : memref<16x290xbf16, #tpu.memory_space<vmem>>, vector<8x5xbf16>
    tpu.vector_store %arg9[%c0_121, %c21], %222 {strides = array<i32>} : memref<16x290xbf16, #tpu.memory_space<vmem>>, vector<8x5xbf16>,
    %c0_122 = arith.constant 0 : index
    %c5 = arith.constant 5 : index
    %224 = vector.load %arg9[%c0_122, %c5] : memref<16x290xbf16, #tpu.memory_space<vmem>>, vector<8x16xbf16>
    tpu.vector_store %arg9[%c0_122, %c5], %216 {strides = array<i32>} : memref<16x290xbf16, #tpu.memory_space<vmem>>, vector<8x16xbf16>,
    %225 = tpu.iota {dimensions = array<i32: 1>} : vector<1x16xi32>
    %c4_i32 = arith.constant 4 : i32
    %c0_i32_123 = arith.constant 0 : i32
    %226 = arith.cmpi eq, %c4_i32, %c0_i32_123 : i32
    %c1_i32_124 = arith.constant 1 : i32
    %227 = arith.select %226, %c1_i32_124, %c4_i32 : i32
    %228 = vector.broadcast %227 : i32 to vector<1x16xi32>
    %229 = arith.remsi %225, %228 : vector<1x16xi32>
    %c0_i32_125 = arith.constant 0 : i32
    %230 = vector.broadcast %c0_i32_125 : i32 to vector<1x16xi32>
    %231 = arith.cmpi ne, %229, %230 : vector<1x16xi32>
    %c0_i32_126 = arith.constant 0 : i32
    %232 = vector.broadcast %c0_i32_126 : i32 to vector<1x16xi32>
    %233 = arith.cmpi slt, %229, %232 : vector<1x16xi32>
    %c0_i32_127 = arith.constant 0 : i32
    %234 = arith.cmpi slt, %227, %c0_i32_127 : i32
    %235 = vector.broadcast %234 : i1 to vector<1x16xi1>
    %236 = vector.broadcast %235 : vector<1x16xi1> to vector<1x16xi1>
    %237 = arith.xori %233, %236 : vector<1x16xi1>
    %238 = arith.andi %237, %231 : vector<1x16xi1>
    %239 = vector.broadcast %227 : i32 to vector<1x16xi32>
    %240 = arith.addi %229, %239 : vector<1x16xi32>
    %241 = arith.select %238, %240, %229 : vector<1x16xi1>, vector<1x16xi32>
    %c1_i32_128 = arith.constant 1 : i32
    %242 = vector.broadcast %c1_i32_128 : i32 to vector<1x16xi32>
    %243 = arith.cmpi sge, %241, %242 : vector<1x16xi32>
    %244 = arith.extui %243 : vector<1x16xi1> to vector<1x16xi32>
    %245 = arith.sitofp %244 : vector<1x16xi32> to vector<1x16xf32>
    %246 = arith.truncf %245 : vector<1x16xf32> to vector<1x16xbf16>
    %c3_i32 = arith.constant 3 : i32
    %247 = vector.broadcast %c3_i32 : i32 to vector<1x16xi32>
    %248 = arith.cmpi slt, %241, %247 : vector<1x16xi32>
    %249 = arith.extui %248 : vector<1x16xi1> to vector<1x16xi32>
    %250 = arith.sitofp %249 : vector<1x16xi32> to vector<1x16xf32>
    %251 = arith.truncf %250 : vector<1x16xf32> to vector<1x16xbf16>
    %c0_129 = arith.constant 0 : index
    %c0_130 = arith.constant 0 : index
    %252 = vector.load %arg9[%c0_129, %c0_130] : memref<16x290xbf16, #tpu.memory_space<vmem>>, vector<8x16xbf16>
    %253 = vector.broadcast %246 : vector<1x16xbf16> to vector<8x16xbf16>
    %254 = arith.mulf %252, %253 : vector<8x16xbf16>
    %c0_131 = arith.constant 0 : index
    %c1_132 = arith.constant 1 : index
    %255 = vector.load %arg9[%c0_131, %c1_132] : memref<16x290xbf16, #tpu.memory_space<vmem>>, vector<8x16xbf16>
    %c0_133 = arith.constant 0 : index
    %c2_134 = arith.constant 2 : index
    %256 = vector.load %arg9[%c0_133, %c2_134] : memref<16x290xbf16, #tpu.memory_space<vmem>>, vector<8x16xbf16>
    %257 = vector.broadcast %251 : vector<1x16xbf16> to vector<8x16xbf16>
    %258 = arith.mulf %256, %257 : vector<8x16xbf16>
    %c0_135 = arith.constant 0 : index
    %c4_136 = arith.constant 4 : index
    %259 = vector.load %arg9[%c0_135, %c4_136] : memref<16x290xbf16, #tpu.memory_space<vmem>>, vector<8x16xbf16>
    %260 = vector.broadcast %246 : vector<1x16xbf16> to vector<8x16xbf16>
    %261 = arith.mulf %259, %260 : vector<8x16xbf16>
    %c0_137 = arith.constant 0 : index
    %c5_138 = arith.constant 5 : index
    %262 = vector.load %arg9[%c0_137, %c5_138] : memref<16x290xbf16, #tpu.memory_space<vmem>>, vector<8x16xbf16>
    %c0_139 = arith.constant 0 : index
    %c6 = arith.constant 6 : index
    %263 = vector.load %arg9[%c0_139, %c6] : memref<16x290xbf16, #tpu.memory_space<vmem>>, vector<8x16xbf16>
    %264 = vector.broadcast %251 : vector<1x16xbf16> to vector<8x16xbf16>
    %265 = arith.mulf %263, %264 : vector<8x16xbf16>
    %c0_140 = arith.constant 0 : index
    %c8_141 = arith.constant 8 : index
    %266 = vector.load %arg9[%c0_140, %c8_141] : memref<16x290xbf16, #tpu.memory_space<vmem>>, vector<8x16xbf16>
    %267 = vector.broadcast %246 : vector<1x16xbf16> to vector<8x16xbf16>
    %268 = arith.mulf %266, %267 : vector<8x16xbf16>
    %c0_142 = arith.constant 0 : index
    %c9_143 = arith.constant 9 : index
    %269 = vector.load %arg9[%c0_142, %c9_143] : memref<16x290xbf16, #tpu.memory_space<vmem>>, vector<8x16xbf16>
    %c0_144 = arith.constant 0 : index
    %c10_145 = arith.constant 10 : index
    %270 = vector.load %arg9[%c0_144, %c10_145] : memref<16x290xbf16, #tpu.memory_space<vmem>>, vector<8x16xbf16>
    %271 = vector.broadcast %251 : vector<1x16xbf16> to vector<8x16xbf16>
    %272 = arith.mulf %270, %271 : vector<8x16xbf16>
    %273 = tpu.concatenate %254, %255, %258, %261, %262, %265, %268, %269, %272 in 0 : vector<8x16xbf16>, vector<8x16xbf16>, vector<8x16xbf16>, vector<8x16xbf16>, vector<8x16xbf16>, vector<8x16xbf16>, vector<8x16xbf16>, vector<8x16xbf16>, vector<8x16xbf16> -> vector<72x16xbf16>
    %cst_146 = arith.constant dense<0.000000e+00> : vector<8x16xf32>
    %274 = tpu.matmul %217, %273, %cst_146 {dimension_numbers = #tpu.dot_dimension_numbers<[1], [0], [0], [1], [0, 0, 1, 1], [], []>} : vector<8x72xbf16>, vector<72x16xbf16>, vector<8x16xf32> -> vector<8x16xf32>
    %275 = vector.broadcast %218 : vector<8x1xf32> to vector<8x16xf32>
    %276 = arith.mulf %274, %275 : vector<8x16xf32>
    %277 = vector.broadcast %219 : vector<8x1xf32> to vector<8x16xf32>
    %278 = arith.addf %276, %277 : vector<8x16xf32>
    %cst_147 = arith.constant 0.000000e+00 : f32
    %279 = vector.broadcast %cst_147 : f32 to vector<8x16xf32>
    %280 = arith.maximumf %278, %279 : vector<8x16xf32>
    %281 = arith.truncf %280 : vector<8x16xf32> to vector<8x16xbf16>
    %c28 = arith.constant 28 : index
    %c0_148 = arith.constant 0 : index
    %282 = vector.load %arg6[%c28, %c0_148] : memref<56x144xbf16, #tpu.memory_space<vmem>>, vector<8x72xbf16>
    %c28_149 = arith.constant 28 : index
    %c0_150 = arith.constant 0 : index
    %283 = vector.load %arg7[%c28_149, %c0_150] : memref<56x2xf32, #tpu.memory_space<vmem>>, vector<8x1xf32>
    %c28_151 = arith.constant 28 : index
    %c1_152 = arith.constant 1 : index
    %284 = vector.load %arg7[%c28_151, %c1_152] : memref<56x2xf32, #tpu.memory_space<vmem>>, vector<8x1xf32>
    %cst_153 = arith.constant 0.000000e+00 : bf16
    %285 = vector.broadcast %cst_153 : bf16 to vector<8x10xbf16>
    %c0_154 = arith.constant 0 : index
    %c0_155 = arith.constant 0 : index
    %286 = vector.load %arg9[%c0_154, %c0_155] : memref<16x290xbf16, #tpu.memory_space<vmem>>, vector<8x10xbf16>
    tpu.vector_store %arg9[%c0_154, %c0_155], %285 {strides = array<i32>} : memref<16x290xbf16, #tpu.memory_space<vmem>>, vector<8x10xbf16>,
    %cst_156 = arith.constant 0.000000e+00 : bf16
    %287 = vector.broadcast %cst_156 : bf16 to vector<8x10xbf16>
    %c0_157 = arith.constant 0 : index
    %c26 = arith.constant 26 : index
    %288 = vector.load %arg9[%c0_157, %c26] : memref<16x290xbf16, #tpu.memory_space<vmem>>, vector<8x10xbf16>
    tpu.vector_store %arg9[%c0_157, %c26], %287 {strides = array<i32>} : memref<16x290xbf16, #tpu.memory_space<vmem>>, vector<8x10xbf16>,
    %c0_158 = arith.constant 0 : index
    %c10_159 = arith.constant 10 : index
    %289 = vector.load %arg9[%c0_158, %c10_159] : memref<16x290xbf16, #tpu.memory_space<vmem>>, vector<8x16xbf16>
    tpu.vector_store %arg9[%c0_158, %c10_159], %281 {strides = array<i32>} : memref<16x290xbf16, #tpu.memory_space<vmem>>, vector<8x16xbf16>,
    %290 = tpu.iota {dimensions = array<i32: 1>} : vector<1x16xi32>
    %c4_i32_160 = arith.constant 4 : i32
    %c0_i32_161 = arith.constant 0 : i32
    %291 = arith.cmpi eq, %c4_i32_160, %c0_i32_161 : i32
    %c1_i32_162 = arith.constant 1 : i32
    %292 = arith.select %291, %c1_i32_162, %c4_i32_160 : i32
    %293 = vector.broadcast %292 : i32 to vector<1x16xi32>
    %294 = arith.remsi %290, %293 : vector<1x16xi32>
    %c0_i32_163 = arith.constant 0 : i32
    %295 = vector.broadcast %c0_i32_163 : i32 to vector<1x16xi32>
    %296 = arith.cmpi ne, %294, %295 : vector<1x16xi32>
    %c0_i32_164 = arith.constant 0 : i32
    %297 = vector.broadcast %c0_i32_164 : i32 to vector<1x16xi32>
    %298 = arith.cmpi slt, %294, %297 : vector<1x16xi32>
    %c0_i32_165 = arith.constant 0 : i32
    %299 = arith.cmpi slt, %292, %c0_i32_165 : i32
    %300 = vector.broadcast %299 : i1 to vector<1x16xi1>
    %301 = vector.broadcast %300 : vector<1x16xi1> to vector<1x16xi1>
    %302 = arith.xori %298, %301 : vector<1x16xi1>
    %303 = arith.andi %302, %296 : vector<1x16xi1>
    %304 = vector.broadcast %292 : i32 to vector<1x16xi32>
    %305 = arith.addi %294, %304 : vector<1x16xi32>
    %306 = arith.select %303, %305, %294 : vector<1x16xi1>, vector<1x16xi32>
    %c2_i32 = arith.constant 2 : i32
    %307 = vector.broadcast %c2_i32 : i32 to vector<1x16xi32>
    %308 = arith.cmpi sge, %306, %307 : vector<1x16xi32>
    %309 = arith.extui %308 : vector<1x16xi1> to vector<1x16xi32>
    %310 = arith.sitofp %309 : vector<1x16xi32> to vector<1x16xf32>
    %311 = arith.truncf %310 : vector<1x16xf32> to vector<1x16xbf16>
    %c2_i32_166 = arith.constant 2 : i32
    %312 = vector.broadcast %c2_i32_166 : i32 to vector<1x16xi32>
    %313 = arith.cmpi slt, %306, %312 : vector<1x16xi32>
    %314 = arith.extui %313 : vector<1x16xi1> to vector<1x16xi32>
    %315 = arith.sitofp %314 : vector<1x16xi32> to vector<1x16xf32>
    %316 = arith.truncf %315 : vector<1x16xf32> to vector<1x16xbf16>
    %c0_167 = arith.constant 0 : index
    %c0_168 = arith.constant 0 : index
    %317 = vector.load %arg9[%c0_167, %c0_168] : memref<16x290xbf16, #tpu.memory_space<vmem>>, vector<8x16xbf16>
    %318 = vector.broadcast %311 : vector<1x16xbf16> to vector<8x16xbf16>
    %319 = arith.mulf %317, %318 : vector<8x16xbf16>
    %c0_169 = arith.constant 0 : index
    %c2_170 = arith.constant 2 : index
    %320 = vector.load %arg9[%c0_169, %c2_170] : memref<16x290xbf16, #tpu.memory_space<vmem>>, vector<8x16xbf16>
    %c0_171 = arith.constant 0 : index
    %c4_172 = arith.constant 4 : index
    %321 = vector.load %arg9[%c0_171, %c4_172] : memref<16x290xbf16, #tpu.memory_space<vmem>>, vector<8x16xbf16>
    %322 = vector.broadcast %316 : vector<1x16xbf16> to vector<8x16xbf16>
    %323 = arith.mulf %321, %322 : vector<8x16xbf16>
    %c0_173 = arith.constant 0 : index
    %c8_174 = arith.constant 8 : index
    %324 = vector.load %arg9[%c0_173, %c8_174] : memref<16x290xbf16, #tpu.memory_space<vmem>>, vector<8x16xbf16>
    %325 = vector.broadcast %311 : vector<1x16xbf16> to vector<8x16xbf16>
    %326 = arith.mulf %324, %325 : vector<8x16xbf16>
    %c0_175 = arith.constant 0 : index
    %c10_176 = arith.constant 10 : index
    %327 = vector.load %arg9[%c0_175, %c10_176] : memref<16x290xbf16, #tpu.memory_space<vmem>>, vector<8x16xbf16>
    %c0_177 = arith.constant 0 : index
    %c12_178 = arith.constant 12 : index
    %328 = vector.load %arg9[%c0_177, %c12_178] : memref<16x290xbf16, #tpu.memory_space<vmem>>, vector<8x16xbf16>
    %329 = vector.broadcast %316 : vector<1x16xbf16> to vector<8x16xbf16>
    %330 = arith.mulf %328, %329 : vector<8x16xbf16>
    %c0_179 = arith.constant 0 : index
    %c16_180 = arith.constant 16 : index
    %331 = vector.load %arg9[%c0_179, %c16_180] : memref<16x290xbf16, #tpu.memory_space<vmem>>, vector<8x16xbf16>
    %332 = vector.broadcast %311 : vector<1x16xbf16> to vector<8x16xbf16>
    %333 = arith.mulf %331, %332 : vector<8x16xbf16>
    %c0_181 = arith.constant 0 : index
    %c18_182 = arith.constant 18 : index
    %334 = vector.load %arg9[%c0_181, %c18_182] : memref<16x290xbf16, #tpu.memory_space<vmem>>, vector<8x16xbf16>
    %c0_183 = arith.constant 0 : index
    %c20_184 = arith.constant 20 : index
    %335 = vector.load %arg9[%c0_183, %c20_184] : memref<16x290xbf16, #tpu.memory_space<vmem>>, vector<8x16xbf16>
    %336 = vector.broadcast %316 : vector<1x16xbf16> to vector<8x16xbf16>
    %337 = arith.mulf %335, %336 : vector<8x16xbf16>
    %338 = tpu.concatenate %319, %320, %323, %326, %327, %330, %333, %334, %337 in 0 : vector<8x16xbf16>, vector<8x16xbf16>, vector<8x16xbf16>, vector<8x16xbf16>, vector<8x16xbf16>, vector<8x16xbf16>, vector<8x16xbf16>, vector<8x16xbf16>, vector<8x16xbf16> -> vector<72x16xbf16>
    %cst_185 = arith.constant dense<0.000000e+00> : vector<8x16xf32>
    %339 = tpu.matmul %282, %338, %cst_185 {dimension_numbers = #tpu.dot_dimension_numbers<[1], [0], [0], [1], [0, 0, 1, 1], [], []>} : vector<8x72xbf16>, vector<72x16xbf16>, vector<8x16xf32> -> vector<8x16xf32>
    %340 = vector.broadcast %283 : vector<8x1xf32> to vector<8x16xf32>
    %341 = arith.mulf %339, %340 : vector<8x16xf32>
    %342 = vector.broadcast %284 : vector<8x1xf32> to vector<8x16xf32>
    %343 = arith.addf %341, %342 : vector<8x16xf32>
    %cst_186 = arith.constant 0.000000e+00 : f32
    %344 = vector.broadcast %cst_186 : f32 to vector<8x16xf32>
    %345 = arith.maximumf %343, %344 : vector<8x16xf32>
    %346 = arith.truncf %345 : vector<8x16xf32> to vector<8x16xbf16>
    %347 = tpu.concatenate %346, %281 in 0 : vector<8x16xbf16>, vector<8x16xbf16> -> vector<16x16xbf16>
    %c36 = arith.constant 36 : index
    %c0_187 = arith.constant 0 : index
    %348 = vector.load %arg6[%c36, %c0_187] : memref<56x144xbf16, #tpu.memory_space<vmem>>, vector<8x144xbf16>
    %c36_188 = arith.constant 36 : index
    %c0_189 = arith.constant 0 : index
    %349 = vector.load %arg7[%c36_188, %c0_189] : memref<56x2xf32, #tpu.memory_space<vmem>>, vector<8x1xf32>
    %c36_190 = arith.constant 36 : index
    %c1_191 = arith.constant 1 : index
    %350 = vector.load %arg7[%c36_190, %c1_191] : memref<56x2xf32, #tpu.memory_space<vmem>>, vector<8x1xf32>
    %cst_192 = arith.constant 0.000000e+00 : bf16
    %351 = vector.broadcast %cst_192 : bf16 to vector<16x5xbf16>
    %c0_193 = arith.constant 0 : index
    %c0_194 = arith.constant 0 : index
    %352 = vector.load %arg9[%c0_193, %c0_194] : memref<16x290xbf16, #tpu.memory_space<vmem>>, vector<16x5xbf16>
    tpu.vector_store %arg9[%c0_193, %c0_194], %351 {strides = array<i32>} : memref<16x290xbf16, #tpu.memory_space<vmem>>, vector<16x5xbf16>,
    %cst_195 = arith.constant 0.000000e+00 : bf16
    %353 = vector.broadcast %cst_195 : bf16 to vector<16x5xbf16>
    %c0_196 = arith.constant 0 : index
    %c21_197 = arith.constant 21 : index
    %354 = vector.load %arg9[%c0_196, %c21_197] : memref<16x290xbf16, #tpu.memory_space<vmem>>, vector<16x5xbf16>
    tpu.vector_store %arg9[%c0_196, %c21_197], %353 {strides = array<i32>} : memref<16x290xbf16, #tpu.memory_space<vmem>>, vector<16x5xbf16>,
    %c0_198 = arith.constant 0 : index
    %c5_199 = arith.constant 5 : index
    %355 = vector.load %arg9[%c0_198, %c5_199] : memref<16x290xbf16, #tpu.memory_space<vmem>>, vector<16x16xbf16>
    tpu.vector_store %arg9[%c0_198, %c5_199], %347 {strides = array<i32>} : memref<16x290xbf16, #tpu.memory_space<vmem>>, vector<16x16xbf16>,
    %356 = tpu.iota {dimensions = array<i32: 1>} : vector<1x16xi32>
    %c4_i32_200 = arith.constant 4 : i32
    %c0_i32_201 = arith.constant 0 : i32
    %357 = arith.cmpi eq, %c4_i32_200, %c0_i32_201 : i32
    %c1_i32_202 = arith.constant 1 : i32
    %358 = arith.select %357, %c1_i32_202, %c4_i32_200 : i32
    %359 = vector.broadcast %358 : i32 to vector<1x16xi32>
    %360 = arith.remsi %356, %359 : vector<1x16xi32>
    %c0_i32_203 = arith.constant 0 : i32
    %361 = vector.broadcast %c0_i32_203 : i32 to vector<1x16xi32>
    %362 = arith.cmpi ne, %360, %361 : vector<1x16xi32>
    %c0_i32_204 = arith.constant 0 : i32
    %363 = vector.broadcast %c0_i32_204 : i32 to vector<1x16xi32>
    %364 = arith.cmpi slt, %360, %363 : vector<1x16xi32>
    %c0_i32_205 = arith.constant 0 : i32
    %365 = arith.cmpi slt, %358, %c0_i32_205 : i32
    %366 = vector.broadcast %365 : i1 to vector<1x16xi1>
    %367 = vector.broadcast %366 : vector<1x16xi1> to vector<1x16xi1>
    %368 = arith.xori %364, %367 : vector<1x16xi1>
    %369 = arith.andi %368, %362 : vector<1x16xi1>
    %370 = vector.broadcast %358 : i32 to vector<1x16xi32>
    %371 = arith.addi %360, %370 : vector<1x16xi32>
    %372 = arith.select %369, %371, %360 : vector<1x16xi1>, vector<1x16xi32>
    %c1_i32_206 = arith.constant 1 : i32
    %373 = vector.broadcast %c1_i32_206 : i32 to vector<1x16xi32>
    %374 = arith.cmpi sge, %372, %373 : vector<1x16xi32>
    %375 = arith.extui %374 : vector<1x16xi1> to vector<1x16xi32>
    %376 = arith.sitofp %375 : vector<1x16xi32> to vector<1x16xf32>
    %377 = arith.truncf %376 : vector<1x16xf32> to vector<1x16xbf16>
    %c3_i32_207 = arith.constant 3 : i32
    %378 = vector.broadcast %c3_i32_207 : i32 to vector<1x16xi32>
    %379 = arith.cmpi slt, %372, %378 : vector<1x16xi32>
    %380 = arith.extui %379 : vector<1x16xi1> to vector<1x16xi32>
    %381 = arith.sitofp %380 : vector<1x16xi32> to vector<1x16xf32>
    %382 = arith.truncf %381 : vector<1x16xf32> to vector<1x16xbf16>
    %c0_208 = arith.constant 0 : index
    %c0_209 = arith.constant 0 : index
    %383 = vector.load %arg9[%c0_208, %c0_209] : memref<16x290xbf16, #tpu.memory_space<vmem>>, vector<16x16xbf16>
    %384 = vector.broadcast %377 : vector<1x16xbf16> to vector<16x16xbf16>
    %385 = arith.mulf %383, %384 : vector<16x16xbf16>
    %c0_210 = arith.constant 0 : index
    %c1_211 = arith.constant 1 : index
    %386 = vector.load %arg9[%c0_210, %c1_211] : memref<16x290xbf16, #tpu.memory_space<vmem>>, vector<16x16xbf16>
    %c0_212 = arith.constant 0 : index
    %c2_213 = arith.constant 2 : index
    %387 = vector.load %arg9[%c0_212, %c2_213] : memref<16x290xbf16, #tpu.memory_space<vmem>>, vector<16x16xbf16>
    %388 = vector.broadcast %382 : vector<1x16xbf16> to vector<16x16xbf16>
    %389 = arith.mulf %387, %388 : vector<16x16xbf16>
    %c0_214 = arith.constant 0 : index
    %c4_215 = arith.constant 4 : index
    %390 = vector.load %arg9[%c0_214, %c4_215] : memref<16x290xbf16, #tpu.memory_space<vmem>>, vector<16x16xbf16>
    %391 = vector.broadcast %377 : vector<1x16xbf16> to vector<16x16xbf16>
    %392 = arith.mulf %390, %391 : vector<16x16xbf16>
    %c0_216 = arith.constant 0 : index
    %c5_217 = arith.constant 5 : index
    %393 = vector.load %arg9[%c0_216, %c5_217] : memref<16x290xbf16, #tpu.memory_space<vmem>>, vector<16x16xbf16>
    %c0_218 = arith.constant 0 : index
    %c6_219 = arith.constant 6 : index
    %394 = vector.load %arg9[%c0_218, %c6_219] : memref<16x290xbf16, #tpu.memory_space<vmem>>, vector<16x16xbf16>
    %395 = vector.broadcast %382 : vector<1x16xbf16> to vector<16x16xbf16>
    %396 = arith.mulf %394, %395 : vector<16x16xbf16>
    %c0_220 = arith.constant 0 : index
    %c8_221 = arith.constant 8 : index
    %397 = vector.load %arg9[%c0_220, %c8_221] : memref<16x290xbf16, #tpu.memory_space<vmem>>, vector<16x16xbf16>
    %398 = vector.broadcast %377 : vector<1x16xbf16> to vector<16x16xbf16>
    %399 = arith.mulf %397, %398 : vector<16x16xbf16>
    %c0_222 = arith.constant 0 : index
    %c9_223 = arith.constant 9 : index
    %400 = vector.load %arg9[%c0_222, %c9_223] : memref<16x290xbf16, #tpu.memory_space<vmem>>, vector<16x16xbf16>
    %c0_224 = arith.constant 0 : index
    %c10_225 = arith.constant 10 : index
    %401 = vector.load %arg9[%c0_224, %c10_225] : memref<16x290xbf16, #tpu.memory_space<vmem>>, vector<16x16xbf16>
    %402 = vector.broadcast %382 : vector<1x16xbf16> to vector<16x16xbf16>
    %403 = arith.mulf %401, %402 : vector<16x16xbf16>
    %404 = tpu.concatenate %385, %386, %389, %392, %393, %396, %399, %400, %403 in 0 : vector<16x16xbf16>, vector<16x16xbf16>, vector<16x16xbf16>, vector<16x16xbf16>, vector<16x16xbf16>, vector<16x16xbf16>, vector<16x16xbf16>, vector<16x16xbf16>, vector<16x16xbf16> -> vector<144x16xbf16>
    %cst_226 = arith.constant dense<0.000000e+00> : vector<8x16xf32>
    %405 = tpu.matmul %348, %404, %cst_226 {dimension_numbers = #tpu.dot_dimension_numbers<[1], [0], [0], [1], [0, 0, 1, 1], [], []>} : vector<8x144xbf16>, vector<144x16xbf16>, vector<8x16xf32> -> vector<8x16xf32>
    %406 = vector.broadcast %349 : vector<8x1xf32> to vector<8x16xf32>
    %407 = arith.mulf %405, %406 : vector<8x16xf32>
    %408 = vector.broadcast %350 : vector<8x1xf32> to vector<8x16xf32>
    %409 = arith.addf %407, %408 : vector<8x16xf32>
    %cst_227 = arith.constant 0.000000e+00 : f32
    %410 = vector.broadcast %cst_227 : f32 to vector<8x16xf32>
    %411 = arith.maximumf %409, %410 : vector<8x16xf32>
    %c0_228 = arith.constant 0 : index
    %c0_229 = arith.constant 0 : index
    %412 = vector.load %arg4[%c0_228, %c0_229] : memref<16x64xf32, #tpu.memory_space<vmem>>, vector<16x64xf32>
    %cst_230 = arith.constant dense<0.000000e+00> : vector<8x64xf32>
    %413 = tpu.matmul %411, %412, %cst_230 {dimension_numbers = #tpu.dot_dimension_numbers<[1], [0], [0], [1], [0, 0, 1, 1], [], []>} : vector<8x16xf32>, vector<16x64xf32>, vector<8x64xf32> -> vector<8x64xf32>
    %414 = arith.truncf %413 : vector<8x64xf32> to vector<8x64xbf16>
    %415 = tpu.concatenate %414, %206 in 0 : vector<8x64xbf16>, vector<8x64xbf16> -> vector<16x64xbf16>
    %c44 = arith.constant 44 : index
    %c0_231 = arith.constant 0 : index
    %416 = vector.load %arg6[%c44, %c0_231] : memref<56x144xbf16, #tpu.memory_space<vmem>>, vector<8x144xbf16>
    %c44_232 = arith.constant 44 : index
    %c0_233 = arith.constant 0 : index
    %417 = vector.load %arg7[%c44_232, %c0_233] : memref<56x2xf32, #tpu.memory_space<vmem>>, vector<8x1xf32>
    %c44_234 = arith.constant 44 : index
    %c1_235 = arith.constant 1 : index
    %418 = vector.load %arg7[%c44_234, %c1_235] : memref<56x2xf32, #tpu.memory_space<vmem>>, vector<8x1xf32>
    %cst_236 = arith.constant 0.000000e+00 : bf16
    %419 = vector.broadcast %cst_236 : bf16 to vector<16x9xbf16>
    %c0_237 = arith.constant 0 : index
    %c0_238 = arith.constant 0 : index
    %420 = vector.load %arg9[%c0_237, %c0_238] : memref<16x290xbf16, #tpu.memory_space<vmem>>, vector<16x9xbf16>
    tpu.vector_store %arg9[%c0_237, %c0_238], %419 {strides = array<i32>} : memref<16x290xbf16, #tpu.memory_space<vmem>>, vector<16x9xbf16>,
    %cst_239 = arith.constant 0.000000e+00 : bf16
    %421 = vector.broadcast %cst_239 : bf16 to vector<16x9xbf16>
    %c0_240 = arith.constant 0 : index
    %c73_241 = arith.constant 73 : index
    %422 = vector.load %arg9[%c0_240, %c73_241] : memref<16x290xbf16, #tpu.memory_space<vmem>>, vector<16x9xbf16>
    tpu.vector_store %arg9[%c0_240, %c73_241], %421 {strides = array<i32>} : memref<16x290xbf16, #tpu.memory_space<vmem>>, vector<16x9xbf16>,
    %c0_242 = arith.constant 0 : index
    %c9_243 = arith.constant 9 : index
    %423 = vector.load %arg9[%c0_242, %c9_243] : memref<16x290xbf16, #tpu.memory_space<vmem>>, vector<16x64xbf16>
    tpu.vector_store %arg9[%c0_242, %c9_243], %415 {strides = array<i32>} : memref<16x290xbf16, #tpu.memory_space<vmem>>, vector<16x64xbf16>,
    %424 = tpu.iota {dimensions = array<i32: 1>} : vector<1x64xi32>
    %c8_i32_244 = arith.constant 8 : i32
    %c0_i32_245 = arith.constant 0 : i32
    %425 = arith.cmpi eq, %c8_i32_244, %c0_i32_245 : i32
    %c1_i32_246 = arith.constant 1 : i32
    %426 = arith.select %425, %c1_i32_246, %c8_i32_244 : i32
    %427 = vector.broadcast %426 : i32 to vector<1x64xi32>
    %428 = arith.remsi %424, %427 : vector<1x64xi32>
    %c0_i32_247 = arith.constant 0 : i32
    %429 = vector.broadcast %c0_i32_247 : i32 to vector<1x64xi32>
    %430 = arith.cmpi ne, %428, %429 : vector<1x64xi32>
    %c0_i32_248 = arith.constant 0 : i32
    %431 = vector.broadcast %c0_i32_248 : i32 to vector<1x64xi32>
    %432 = arith.cmpi slt, %428, %431 : vector<1x64xi32>
    %c0_i32_249 = arith.constant 0 : i32
    %433 = arith.cmpi slt, %426, %c0_i32_249 : i32
    %434 = vector.broadcast %433 : i1 to vector<1x64xi1>
    %435 = vector.broadcast %434 : vector<1x64xi1> to vector<1x64xi1>
    %436 = arith.xori %432, %435 : vector<1x64xi1>
    %437 = arith.andi %436, %430 : vector<1x64xi1>
    %438 = vector.broadcast %426 : i32 to vector<1x64xi32>
    %439 = arith.addi %428, %438 : vector<1x64xi32>
    %440 = arith.select %437, %439, %428 : vector<1x64xi1>, vector<1x64xi32>
    %c1_i32_250 = arith.constant 1 : i32
    %441 = vector.broadcast %c1_i32_250 : i32 to vector<1x64xi32>
    %442 = arith.cmpi sge, %440, %441 : vector<1x64xi32>
    %443 = arith.extui %442 : vector<1x64xi1> to vector<1x64xi32>
    %444 = arith.sitofp %443 : vector<1x64xi32> to vector<1x64xf32>
    %445 = arith.truncf %444 : vector<1x64xf32> to vector<1x64xbf16>
    %c7_i32_251 = arith.constant 7 : i32
    %446 = vector.broadcast %c7_i32_251 : i32 to vector<1x64xi32>
    %447 = arith.cmpi slt, %440, %446 : vector<1x64xi32>
    %448 = arith.extui %447 : vector<1x64xi1> to vector<1x64xi32>
    %449 = arith.sitofp %448 : vector<1x64xi32> to vector<1x64xf32>
    %450 = arith.truncf %449 : vector<1x64xf32> to vector<1x64xbf16>
    %c0_252 = arith.constant 0 : index
    %c0_253 = arith.constant 0 : index
    %451 = vector.load %arg9[%c0_252, %c0_253] : memref<16x290xbf16, #tpu.memory_space<vmem>>, vector<16x64xbf16>
    %452 = vector.broadcast %445 : vector<1x64xbf16> to vector<16x64xbf16>
    %453 = arith.mulf %451, %452 : vector<16x64xbf16>
    %c0_254 = arith.constant 0 : index
    %c1_255 = arith.constant 1 : index
    %454 = vector.load %arg9[%c0_254, %c1_255] : memref<16x290xbf16, #tpu.memory_space<vmem>>, vector<16x64xbf16>
    %c0_256 = arith.constant 0 : index
    %c2_257 = arith.constant 2 : index
    %455 = vector.load %arg9[%c0_256, %c2_257] : memref<16x290xbf16, #tpu.memory_space<vmem>>, vector<16x64xbf16>
    %456 = vector.broadcast %450 : vector<1x64xbf16> to vector<16x64xbf16>
    %457 = arith.mulf %455, %456 : vector<16x64xbf16>
    %c0_258 = arith.constant 0 : index
    %c8_259 = arith.constant 8 : index
    %458 = vector.load %arg9[%c0_258, %c8_259] : memref<16x290xbf16, #tpu.memory_space<vmem>>, vector<16x64xbf16>
    %459 = vector.broadcast %445 : vector<1x64xbf16> to vector<16x64xbf16>
    %460 = arith.mulf %458, %459 : vector<16x64xbf16>
    %c0_260 = arith.constant 0 : index
    %c9_261 = arith.constant 9 : index
    %461 = vector.load %arg9[%c0_260, %c9_261] : memref<16x290xbf16, #tpu.memory_space<vmem>>, vector<16x64xbf16>
    %c0_262 = arith.constant 0 : index
    %c10_263 = arith.constant 10 : index
    %462 = vector.load %arg9[%c0_262, %c10_263] : memref<16x290xbf16, #tpu.memory_space<vmem>>, vector<16x64xbf16>
    %463 = vector.broadcast %450 : vector<1x64xbf16> to vector<16x64xbf16>
    %464 = arith.mulf %462, %463 : vector<16x64xbf16>
    %c0_264 = arith.constant 0 : index
    %c16_265 = arith.constant 16 : index
    %465 = vector.load %arg9[%c0_264, %c16_265] : memref<16x290xbf16, #tpu.memory_space<vmem>>, vector<16x64xbf16>
    %466 = vector.broadcast %445 : vector<1x64xbf16> to vector<16x64xbf16>
    %467 = arith.mulf %465, %466 : vector<16x64xbf16>
    %c0_266 = arith.constant 0 : index
    %c17_267 = arith.constant 17 : index
    %468 = vector.load %arg9[%c0_266, %c17_267] : memref<16x290xbf16, #tpu.memory_space<vmem>>, vector<16x64xbf16>
    %c0_268 = arith.constant 0 : index
    %c18_269 = arith.constant 18 : index
    %469 = vector.load %arg9[%c0_268, %c18_269] : memref<16x290xbf16, #tpu.memory_space<vmem>>, vector<16x64xbf16>
    %470 = vector.broadcast %450 : vector<1x64xbf16> to vector<16x64xbf16>
    %471 = arith.mulf %469, %470 : vector<16x64xbf16>
    %472 = tpu.concatenate %453, %454, %457, %460, %461, %464, %467, %468, %471 in 0 : vector<16x64xbf16>, vector<16x64xbf16>, vector<16x64xbf16>, vector<16x64xbf16>, vector<16x64xbf16>, vector<16x64xbf16>, vector<16x64xbf16>, vector<16x64xbf16>, vector<16x64xbf16> -> vector<144x64xbf16>
    %cst_270 = arith.constant dense<0.000000e+00> : vector<8x64xf32>
    %473 = tpu.matmul %416, %472, %cst_270 {dimension_numbers = #tpu.dot_dimension_numbers<[1], [0], [0], [1], [0, 0, 1, 1], [], []>} : vector<8x144xbf16>, vector<144x64xbf16>, vector<8x64xf32> -> vector<8x64xf32>
    %474 = vector.broadcast %417 : vector<8x1xf32> to vector<8x64xf32>
    %475 = arith.mulf %473, %474 : vector<8x64xf32>
    %476 = vector.broadcast %418 : vector<8x1xf32> to vector<8x64xf32>
    %477 = arith.addf %475, %476 : vector<8x64xf32>
    %cst_271 = arith.constant 0.000000e+00 : f32
    %478 = vector.broadcast %cst_271 : f32 to vector<8x64xf32>
    %479 = arith.maximumf %477, %478 : vector<8x64xf32>
    %c0_272 = arith.constant 0 : index
    %c0_273 = arith.constant 0 : index
    %480 = vector.load %arg5[%c0_272, %c0_273] : memref<64x256xf32, #tpu.memory_space<vmem>>, vector<64x256xf32>
    %cst_274 = arith.constant dense<0.000000e+00> : vector<8x256xf32>
    %481 = tpu.matmul %479, %480, %cst_274 {dimension_numbers = #tpu.dot_dimension_numbers<[1], [0], [0], [1], [0, 0, 1, 1], [], []>} : vector<8x64xf32>, vector<64x256xf32>, vector<8x256xf32> -> vector<8x256xf32>
    %482 = arith.truncf %481 : vector<8x256xf32> to vector<8x256xbf16>
    %483 = tpu.concatenate %482, %131 in 0 : vector<8x256xbf16>, vector<8x256xbf16> -> vector<16x256xbf16>
    %c52 = arith.constant 52 : index
    %c0_275 = arith.constant 0 : index
    %484 = vector.load %arg6[%c52, %c0_275] : memref<56x144xbf16, #tpu.memory_space<vmem>>, vector<4x144xbf16>
    %c52_276 = arith.constant 52 : index
    %c0_277 = arith.constant 0 : index
    %485 = vector.load %arg7[%c52_276, %c0_277] : memref<56x2xf32, #tpu.memory_space<vmem>>, vector<4x1xf32>
    %c52_278 = arith.constant 52 : index
    %c1_279 = arith.constant 1 : index
    %486 = vector.load %arg7[%c52_278, %c1_279] : memref<56x2xf32, #tpu.memory_space<vmem>>, vector<4x1xf32>
    %cst_280 = arith.constant 0.000000e+00 : bf16
    %487 = vector.broadcast %cst_280 : bf16 to vector<16x17xbf16>
    %c0_281 = arith.constant 0 : index
    %c0_282 = arith.constant 0 : index
    %488 = vector.load %arg9[%c0_281, %c0_282] : memref<16x290xbf16, #tpu.memory_space<vmem>>, vector<16x17xbf16>
    tpu.vector_store %arg9[%c0_281, %c0_282], %487 {strides = array<i32>} : memref<16x290xbf16, #tpu.memory_space<vmem>>, vector<16x17xbf16>,
    %cst_283 = arith.constant 0.000000e+00 : bf16
    %489 = vector.broadcast %cst_283 : bf16 to vector<16x17xbf16>
    %c0_284 = arith.constant 0 : index
    %c273_285 = arith.constant 273 : index
    %490 = vector.load %arg9[%c0_284, %c273_285] : memref<16x290xbf16, #tpu.memory_space<vmem>>, vector<16x17xbf16>
    tpu.vector_store %arg9[%c0_284, %c273_285], %489 {strides = array<i32>} : memref<16x290xbf16, #tpu.memory_space<vmem>>, vector<16x17xbf16>,
    %c0_286 = arith.constant 0 : index
    %c17_287 = arith.constant 17 : index
    %491 = vector.load %arg9[%c0_286, %c17_287] : memref<16x290xbf16, #tpu.memory_space<vmem>>, vector<16x256xbf16>
    tpu.vector_store %arg9[%c0_286, %c17_287], %483 {strides = array<i32>} : memref<16x290xbf16, #tpu.memory_space<vmem>>, vector<16x256xbf16>,
    %492 = tpu.iota {dimensions = array<i32: 1>} : vector<1x256xi32>
    %c16_i32_288 = arith.constant 16 : i32
    %c0_i32_289 = arith.constant 0 : i32
    %493 = arith.cmpi eq, %c16_i32_288, %c0_i32_289 : i32
    %c1_i32_290 = arith.constant 1 : i32
    %494 = arith.select %493, %c1_i32_290, %c16_i32_288 : i32
    %495 = vector.broadcast %494 : i32 to vector<1x256xi32>
    %496 = arith.remsi %492, %495 : vector<1x256xi32>
    %c0_i32_291 = arith.constant 0 : i32
    %497 = vector.broadcast %c0_i32_291 : i32 to vector<1x256xi32>
    %498 = arith.cmpi ne, %496, %497 : vector<1x256xi32>
    %c0_i32_292 = arith.constant 0 : i32
    %499 = vector.broadcast %c0_i32_292 : i32 to vector<1x256xi32>
    %500 = arith.cmpi slt, %496, %499 : vector<1x256xi32>
    %c0_i32_293 = arith.constant 0 : i32
    %501 = arith.cmpi slt, %494, %c0_i32_293 : i32
    %502 = vector.broadcast %501 : i1 to vector<1x256xi1>
    %503 = vector.broadcast %502 : vector<1x256xi1> to vector<1x256xi1>
    %504 = arith.xori %500, %503 : vector<1x256xi1>
    %505 = arith.andi %504, %498 : vector<1x256xi1>
    %506 = vector.broadcast %494 : i32 to vector<1x256xi32>
    %507 = arith.addi %496, %506 : vector<1x256xi32>
    %508 = arith.select %505, %507, %496 : vector<1x256xi1>, vector<1x256xi32>
    %c1_i32_294 = arith.constant 1 : i32
    %509 = vector.broadcast %c1_i32_294 : i32 to vector<1x256xi32>
    %510 = arith.cmpi sge, %508, %509 : vector<1x256xi32>
    %511 = arith.extui %510 : vector<1x256xi1> to vector<1x256xi32>
    %512 = arith.sitofp %511 : vector<1x256xi32> to vector<1x256xf32>
    %513 = arith.truncf %512 : vector<1x256xf32> to vector<1x256xbf16>
    %c15_i32_295 = arith.constant 15 : i32
    %514 = vector.broadcast %c15_i32_295 : i32 to vector<1x256xi32>
    %515 = arith.cmpi slt, %508, %514 : vector<1x256xi32>
    %516 = arith.extui %515 : vector<1x256xi1> to vector<1x256xi32>
    %517 = arith.sitofp %516 : vector<1x256xi32> to vector<1x256xf32>
    %518 = arith.truncf %517 : vector<1x256xf32> to vector<1x256xbf16>
    %c0_296 = arith.constant 0 : index
    %c0_297 = arith.constant 0 : index
    %519 = vector.load %arg9[%c0_296, %c0_297] : memref<16x290xbf16, #tpu.memory_space<vmem>>, vector<16x256xbf16>
    %520 = vector.broadcast %513 : vector<1x256xbf16> to vector<16x256xbf16>
    %521 = arith.mulf %519, %520 : vector<16x256xbf16>
    %c0_298 = arith.constant 0 : index
    %c1_299 = arith.constant 1 : index
    %522 = vector.load %arg9[%c0_298, %c1_299] : memref<16x290xbf16, #tpu.memory_space<vmem>>, vector<16x256xbf16>
    %c0_300 = arith.constant 0 : index
    %c2_301 = arith.constant 2 : index
    %523 = vector.load %arg9[%c0_300, %c2_301] : memref<16x290xbf16, #tpu.memory_space<vmem>>, vector<16x256xbf16>
    %524 = vector.broadcast %518 : vector<1x256xbf16> to vector<16x256xbf16>
    %525 = arith.mulf %523, %524 : vector<16x256xbf16>
    %c0_302 = arith.constant 0 : index
    %c16_303 = arith.constant 16 : index
    %526 = vector.load %arg9[%c0_302, %c16_303] : memref<16x290xbf16, #tpu.memory_space<vmem>>, vector<16x256xbf16>
    %527 = vector.broadcast %513 : vector<1x256xbf16> to vector<16x256xbf16>
    %528 = arith.mulf %526, %527 : vector<16x256xbf16>
    %c0_304 = arith.constant 0 : index
    %c17_305 = arith.constant 17 : index
    %529 = vector.load %arg9[%c0_304, %c17_305] : memref<16x290xbf16, #tpu.memory_space<vmem>>, vector<16x256xbf16>
    %c0_306 = arith.constant 0 : index
    %c18_307 = arith.constant 18 : index
    %530 = vector.load %arg9[%c0_306, %c18_307] : memref<16x290xbf16, #tpu.memory_space<vmem>>, vector<16x256xbf16>
    %531 = vector.broadcast %518 : vector<1x256xbf16> to vector<16x256xbf16>
    %532 = arith.mulf %530, %531 : vector<16x256xbf16>
    %c0_308 = arith.constant 0 : index
    %c32_309 = arith.constant 32 : index
    %533 = vector.load %arg9[%c0_308, %c32_309] : memref<16x290xbf16, #tpu.memory_space<vmem>>, vector<16x256xbf16>
    %534 = vector.broadcast %513 : vector<1x256xbf16> to vector<16x256xbf16>
    %535 = arith.mulf %533, %534 : vector<16x256xbf16>
    %c0_310 = arith.constant 0 : index
    %c33_311 = arith.constant 33 : index
    %536 = vector.load %arg9[%c0_310, %c33_311] : memref<16x290xbf16, #tpu.memory_space<vmem>>, vector<16x256xbf16>
    %c0_312 = arith.constant 0 : index
    %c34_313 = arith.constant 34 : index
    %537 = vector.load %arg9[%c0_312, %c34_313] : memref<16x290xbf16, #tpu.memory_space<vmem>>, vector<16x256xbf16>
    %538 = vector.broadcast %518 : vector<1x256xbf16> to vector<16x256xbf16>
    %539 = arith.mulf %537, %538 : vector<16x256xbf16>
    %540 = tpu.concatenate %521, %522, %525, %528, %529, %532, %535, %536, %539 in 0 : vector<16x256xbf16>, vector<16x256xbf16>, vector<16x256xbf16>, vector<16x256xbf16>, vector<16x256xbf16>, vector<16x256xbf16>, vector<16x256xbf16>, vector<16x256xbf16>, vector<16x256xbf16> -> vector<144x256xbf16>
    %cst_314 = arith.constant dense<0.000000e+00> : vector<4x256xf32>
    %541 = tpu.matmul %484, %540, %cst_314 {dimension_numbers = #tpu.dot_dimension_numbers<[1], [0], [0], [1], [0, 0, 1, 1], [], []>} : vector<4x144xbf16>, vector<144x256xbf16>, vector<4x256xf32> -> vector<4x256xf32>
    %542 = vector.broadcast %485 : vector<4x1xf32> to vector<4x256xf32>
    %543 = arith.mulf %541, %542 : vector<4x256xf32>
    %544 = vector.broadcast %486 : vector<4x1xf32> to vector<4x256xf32>
    %545 = arith.addf %543, %544 : vector<4x256xf32>
    %cst_315 = arith.constant 0.000000e+00 : f32
    %546 = vector.broadcast %cst_315 : f32 to vector<4x256xf32>
    %547 = arith.maximumf %545, %546 : vector<4x256xf32>
    %548 = arith.addf %547, %65 : vector<4x256xf32>
    %c0_316 = arith.constant 0 : index
    %c0_317 = arith.constant 0 : index
    %c0_318 = arith.constant 0 : index
    %549 = vector.load %arg8[%c0_316, %c0_317, %c0_318] : memref<1x4x256xf32, #tpu.memory_space<vmem>>, vector<1x4x256xf32>
    %550 = vector.shape_cast %549 : vector<1x4x256xf32> to vector<4x256xf32>
    %551 = vector.shape_cast %548 : vector<4x256xf32> to vector<1x4x256xf32>
    tpu.vector_store %arg8[%c0_316, %c0_317, %c0_318], %551 {strides = array<i32>} : memref<1x4x256xf32, #tpu.memory_space<vmem>>, vector<1x4x256xf32>,
    return
  }
  func.func @transform_0(%arg0: i32) -> (i32, i32, i32) {
    %c0_i32 = arith.constant 0 : i32
    %c0_i32_0 = arith.constant 0 : i32
    %c0_i32_1 = arith.constant 0 : i32
    return %arg0, %c0_i32, %c0_i32_0 : i32, i32, i32
  }
  func.func @transform_1(%arg0: i32) -> (i32, i32) {
    %c0_i32 = arith.constant 0 : i32
    %c0_i32_0 = arith.constant 0 : i32
    %c0_i32_1 = arith.constant 0 : i32
    return %c0_i32, %c0_i32_0 : i32, i32
  }
  func.func @transform_2(%arg0: i32) -> (i32, i32) {
    %c0_i32 = arith.constant 0 : i32
    %c0_i32_0 = arith.constant 0 : i32
    %c0_i32_1 = arith.constant 0 : i32
    return %c0_i32, %c0_i32_0 : i32, i32
  }
  func.func @transform_3(%arg0: i32) -> (i32, i32) {
    %c0_i32 = arith.constant 0 : i32
    %c0_i32_0 = arith.constant 0 : i32
    %c0_i32_1 = arith.constant 0 : i32
    return %c0_i32, %c0_i32_0 : i32, i32
  }
  func.func @transform_4(%arg0: i32) -> (i32, i32) {
    %c0_i32 = arith.constant 0 : i32
    %c0_i32_0 = arith.constant 0 : i32
    %c0_i32_1 = arith.constant 0 : i32
    return %c0_i32, %c0_i32_0 : i32, i32
  }
  func.func @transform_5(%arg0: i32) -> (i32, i32) {
    %c0_i32 = arith.constant 0 : i32
    %c0_i32_0 = arith.constant 0 : i32
    %c0_i32_1 = arith.constant 0 : i32
    return %c0_i32, %c0_i32_0 : i32, i32
  }
  func.func @transform_6(%arg0: i32) -> (i32, i32) {
    %c0_i32 = arith.constant 0 : i32
    %c0_i32_0 = arith.constant 0 : i32
    %c0_i32_1 = arith.constant 0 : i32
    return %c0_i32, %c0_i32_0 : i32, i32
  }
  func.func @transform_7(%arg0: i32) -> (i32, i32, i32) {
    %c0_i32 = arith.constant 0 : i32
    %c0_i32_0 = arith.constant 0 : i32
    %c0_i32_1 = arith.constant 0 : i32
    return %arg0, %c0_i32, %c0_i32_0 : i32, i32, i32
  }
}

</mosaic_0001>

<llo_original>
// kernel: rsu4_forward.1
$region0: #{rsu4_forward.1}
  #allocation0 [shape = 'u32[]', space=smem, size = 0x4, offset = 0x4, fixed_abs, tag = 'smem constant byte address 0x4 - core index']
  #allocation1 [shape = 'u32[72,128]{1,0:T(1,128)}', space=vmem, size = 0x9000, scoped, tag = 'internal scratch']
  #allocation2 [shape = 'bf16[16,290]{1,0:T(8,128)(2,1)}', space=vmem, size = 0x3000, scoped, tag = 'scratch operand']
  %s0 = inlined_call_operand.vmem [shape: bf16[2,4,256], index: 0, kind: input, shape index: {}]
  %s1 = inlined_call_operand.vmem [shape: bf16[256,256], index: 1, kind: input, shape index: {}]
  %s2 = inlined_call_operand.vmem [shape: bf16[64,64], index: 2, kind: input, shape index: {}]
  %s3 = inlined_call_operand.vmem [shape: f32[16,64], index: 3, kind: input, shape index: {}]
  %s4 = inlined_call_operand.vmem [shape: f32[64,256], index: 4, kind: input, shape index: {}]
  %s5 = inlined_call_operand.vmem [shape: bf16[56,144], index: 5, kind: input, shape index: {}]
  %s6 = inlined_call_operand.vmem [shape: f32[56,2], index: 6, kind: input, shape index: {}]
  %s7 = inlined_call_operand.vmem [shape: f32[2,4,256], index: 7, kind: output, shape index: {}]
  %s8 = sld [smem:[#allocation0]]
  $region61: #{rsu4_forward.1} parent=0
    _
  %s10 = ssub.s32 1, %s8
  %s11 = scalar_select 0, %s10, %s8
  loop: start=0, step=1, limit=4
  $region2: #{rsu4_forward.1} parent=0 // loop_pre_header
    _
  $region3: #{rsu4_forward.1} parent=0 // loop_header
    %s13 = sphi 0, %s17
    %p14 = scmp.ge.s32.totalorder %s13, 4
    %s23 = sphi 0, %s25
    %s26 = sphi 0, %s23
    %s27 = sphi 0, %s26
    %s43 = sphi 0, %s27
    %s47 = sphi 0, %s47
    %s49 = sphi 0, %s47
    %s50 = sphi 0, %s49
    %s64 = sphi 0, %s50
    %s68 = sphi 0, %s68
    %s70 = sphi 0, %s68
    %s71 = sphi 0, %s70
    %s85 = sphi 0, %s71
    %s89 = sphi 0, %s89
    %s91 = sphi 0, %s89
    %s92 = sphi 0, %s91
    %s106 = sphi 0, %s92
    %s110 = sphi 0, %s110
    %s112 = sphi 0, %s110
    %s113 = sphi 0, %s112
    %s127 = sphi 0, %s113
    %s131 = sphi 0, %s131
    %s133 = sphi 0, %s131
    %s134 = sphi 0, %s133
    %s148 = sphi 0, %s134
    %s152 = sphi 0, %s152
    %s154 = sphi 0, %s152
    %s155 = sphi 0, %s154
    %s169 = sphi 0, %s155
    %s175 = sphi 0, %s177
    %s178 = sphi 0, %s175
    %s179 = sphi 0, %s178
    %s195 = sphi 0, %s179
  $region4: #{rsu4_forward.1} parent=0 // loop_header_branch
    %16 = sbr.rel (%p14) target = $region8
  $region5: #{rsu4_forward.1} parent=0 // loop_body
    %s18 = ssub.s32 %s13, 1
    %s19 = ssub.s32 %s13, 2
    %s20 = sadd.s32 %s13, 1
    %s21 = ssub.s32 %s13, %s20
    %p22 = scmp.eq.s32.totalorder %s21, 0
    %s24 = sadd.s32 %s23, 1
    %s25 = scalar_select %p22, %s23, %s24
    %p28 = pneg %p22
    %p29 = scmp.eq.s32.totalorder %s13, 1
    %p30 = por %p28, %p29
    %p31 = scmp.ne.s32.totalorder %s23, %s26
    %p32 = scmp.eq.s32.totalorder %s13, 0
    %p33 = por %p31, %p32
    %p34 = scmp.ne.s32.totalorder %s23, %s26
    %p35 = scmp.eq.s32.totalorder %s18, 1
    %p36 = por %p34, %p35
    %p37 = scmp.ne.s32.totalorder %s26, %s27
    %p38 = scmp.eq.s32.totalorder %s18, 0
    %p39 = por %p37, %p38
    %p40 = scmp.ne.s32.totalorder %s26, %s27
    %p41 = scmp.eq.s32.totalorder %s19, 1
    %p42 = por %p40, %p41
    %p44 = scmp.ne.s32.totalorder %s27, %s43
    %p45 = scmp.eq.s32.totalorder %s19, 0
    %p46 = por %p44, %p45
    %s48 = sadd.s32 %s47, 1
    %p51 = scmp.eq.s32.totalorder %s13, 1
    %p52 = scmp.ne.s32.totalorder %s47, %s49
    %p53 = scmp.eq.s32.totalorder %s13, 0
    %p54 = por %p52, %p53
    %p55 = scmp.ne.s32.totalorder %s47, %s49
    %p56 = scmp.eq.s32.totalorder %s18, 1
    %p57 = por %p55, %p56
    %p58 = scmp.ne.s32.totalorder %s49, %s50
    %p59 = scmp.eq.s32.totalorder %s18, 0
    %p60 = por %p58, %p59
    %p61 = scmp.ne.s32.totalorder %s49, %s50
    %p62 = scmp.eq.s32.totalorder %s19, 1
    %p63 = por %p61, %p62
    %p65 = scmp.ne.s32.totalorder %s50, %s64
    %p66 = scmp.eq.s32.totalorder %s19, 0
    %p67 = por %p65, %p66
    %s69 = sadd.s32 %s68, 1
    %p72 = scmp.eq.s32.totalorder %s13, 1
    %p73 = scmp.ne.s32.totalorder %s68, %s70
    %p74 = scmp.eq.s32.totalorder %s13, 0
    %p75 = por %p73, %p74
    %p76 = scmp.ne.s32.totalorder %s68, %s70
    %p77 = scmp.eq.s32.totalorder %s18, 1
    %p78 = por %p76, %p77
    %p79 = scmp.ne.s32.totalorder %s70, %s71
    %p80 = scmp.eq.s32.totalorder %s18, 0
    %p81 = por %p79, %p80
    %p82 = scmp.ne.s32.totalorder %s70, %s71
    %p83 = scmp.eq.s32.totalorder %s19, 1
    %p84 = por %p82, %p83
    %p86 = scmp.ne.s32.totalorder %s71, %s85
    %p87 = scmp.eq.s32.totalorder %s19, 0
    %p88 = por %p86, %p87
    %s90 = sadd.s32 %s89, 1
    %p93 = scmp.eq.s32.totalorder %s13, 1
    %p94 = scmp.ne.s32.totalorder %s89, %s91
    %p95 = scmp.eq.s32.totalorder %s13, 0
    %p96 = por %p94, %p95
    %p97 = scmp.ne.s32.totalorder %s89, %s91
    %p98 = scmp.eq.s32.totalorder %s18, 1
    %p99 = por %p97, %p98
    %p100 = scmp.ne.s32.totalorder %s91, %s92
    %p101 = scmp.eq.s32.totalorder %s18, 0
    %p102 = por %p100, %p101
    %p103 = scmp.ne.s32.totalorder %s91, %s92
    %p104 = scmp.eq.s32.totalorder %s19, 1
    %p105 = por %p103, %p104
    %p107 = scmp.ne.s32.totalorder %s92, %s106
    %p108 = scmp.eq.s32.totalorder %s19, 0
    %p109 = por %p107, %p108
    %s111 = sadd.s32 %s110, 1
    %p114 = scmp.eq.s32.totalorder %s13, 1
    %p115 = scmp.ne.s32.totalorder %s110, %s112
    %p116 = scmp.eq.s32.totalorder %s13, 0
    %p117 = por %p115, %p116
    %p118 = scmp.ne.s32.totalorder %s110, %s112
    %p119 = scmp.eq.s32.totalorder %s18, 1
    %p120 = por %p118, %p119
    %p121 = scmp.ne.s32.totalorder %s112, %s113
    %p122 = scmp.eq.s32.totalorder %s18, 0
    %p123 = por %p121, %p122
    %p124 = scmp.ne.s32.totalorder %s112, %s113
    %p125 = scmp.eq.s32.totalorder %s19, 1
    %p126 = por %p124, %p125
    %p128 = scmp.ne.s32.totalorder %s113, %s127
    %p129 = scmp.eq.s32.totalorder %s19, 0
    %p130 = por %p128, %p129
    %s132 = sadd.s32 %s131, 1
    %p135 = scmp.eq.s32.totalorder %s13, 1
    %p136 = scmp.ne.s32.totalorder %s131, %s133
    %p137 = scmp.eq.s32.totalorder %s13, 0
    %p138 = por %p136, %p137
    %p139 = scmp.ne.s32.totalorder %s131, %s133
    %p140 = scmp.eq.s32.totalorder %s18, 1
    %p141 = por %p139, %p140
    %p142 = scmp.ne.s32.totalorder %s133, %s134
    %p143 = scmp.eq.s32.totalorder %s18, 0
    %p144 = por %p142, %p143
    %p145 = scmp.ne.s32.totalorder %s133, %s134
    %p146 = scmp.eq.s32.totalorder %s19, 1
    %p147 = por %p145, %p146
    %p149 = scmp.ne.s32.totalorder %s134, %s148
    %p150 = scmp.eq.s32.totalorder %s19, 0
    %p151 = por %p149, %p150
    %s153 = sadd.s32 %s152, 1
    %p156 = scmp.eq.s32.totalorder %s13, 1
    %p157 = scmp.ne.s32.totalorder %s152, %s154
    %p158 = scmp.eq.s32.totalorder %s13, 0
    %p159 = por %p157, %p158
    %p160 = scmp.ne.s32.totalorder %s152, %s154
    %p161 = scmp.eq.s32.totalorder %s18, 1
    %p162 = por %p160, %p161
    %p163 = scmp.ne.s32.totalorder %s154, %s155
    %p164 = scmp.eq.s32.totalorder %s18, 0
    %p165 = por %p163, %p164
    %p166 = scmp.ne.s32.totalorder %s154, %s155
    %p167 = scmp.eq.s32.totalorder %s19, 1
    %p168 = por %p166, %p167
    %p170 = scmp.ne.s32.totalorder %s155, %s169
    %p171 = scmp.eq.s32.totalorder %s19, 0
    %p172 = por %p170, %p171
    %s173 = ssub.s32 %s13, %s20
    %p174 = scmp.eq.s32.totalorder %s173, 0
    %s176 = sadd.s32 %s175, 1
    %s177 = scalar_select %p174, %s175, %s176
    %p180 = pneg %p174
    %p181 = scmp.eq.s32.totalorder %s13, 1
    %p182 = por %p180, %p181
    %p183 = scmp.ne.s32.totalorder %s175, %s178
    %p184 = scmp.eq.s32.totalorder %s13, 0
    %p185 = por %p183, %p184
    %p186 = scmp.ne.s32.totalorder %s175, %s178
    %p187 = scmp.eq.s32.totalorder %s18, 1
    %p188 = por %p186, %p187
    %p189 = scmp.ne.s32.totalorder %s178, %s179
    %p190 = scmp.eq.s32.totalorder %s18, 0
    %p191 = por %p189, %p190
    %p192 = scmp.ne.s32.totalorder %s178, %s179
    %p193 = scmp.eq.s32.totalorder %s19, 1
    %p194 = por %p192, %p193
    %p196 = scmp.ne.s32.totalorder %s179, %s195
    %p197 = scmp.eq.s32.totalorder %s19, 0
    %p198 = por %p196, %p197
    %p199 = scmp.le.s32.totalorder 1, %s13
    %p200 = scmp.lt.s32.totalorder %s13, 3
    %p201 = pnand %p199, %p200
    %p202 = pneg %p201
    // Predicated region
    $region9: #{rsu4_forward.1} parent=5 // pred_check
      _
    $region10: #{rsu4_forward.1} parent=5 // pred_check_branch
      %204 = sbr.rel (%p201) target = $region12
    $region11: #{rsu4_forward.1} parent=5 // pred_region
      %s205 = ssub.s32 %s13, 1
      // Predicated region
      $region13: #{rsu4_forward.1} parent=11 // pred_check
        %p206 = pneg %p60
      $region14: #{rsu4_forward.1} parent=11 // pred_check_branch
        %208 = sbr.rel (%p206) target = $region16
      $region15: #{rsu4_forward.1} parent=11 // pred_region
        _
      $region16: #{rsu4_forward.1} parent=11 // pred_fallthru
        _
      // Predicated region
      $region17: #{rsu4_forward.1} parent=11 // pred_check
        %p209 = pneg %p81
      $region18: #{rsu4_forward.1} parent=11 // pred_check_branch
        %211 = sbr.rel (%p209) target = $region20
      $region19: #{rsu4_forward.1} parent=11 // pred_region
        _
      $region20: #{rsu4_forward.1} parent=11 // pred_fallthru
        _
      // Predicated region
      $region21: #{rsu4_forward.1} parent=11 // pred_check
        %p212 = pneg %p102
      $region22: #{rsu4_forward.1} parent=11 // pred_check_branch
        %214 = sbr.rel (%p212) target = $region24
      $region23: #{rsu4_forward.1} parent=11 // pred_region
        _
      $region24: #{rsu4_forward.1} parent=11 // pred_fallthru
        _
      // Predicated region
      $region25: #{rsu4_forward.1} parent=11 // pred_check
        %p215 = pneg %p123
      $region26: #{rsu4_forward.1} parent=11 // pred_check_branch
        %217 = sbr.rel (%p215) target = $region28
      $region27: #{rsu4_forward.1} parent=11 // pred_region
        _
      $region28: #{rsu4_forward.1} parent=11 // pred_fallthru
        _
      // Predicated region
      $region29: #{rsu4_forward.1} parent=11 // pred_check
        %p218 = pneg %p144
      $region30: #{rsu4_forward.1} parent=11 // pred_check_branch
        %220 = sbr.rel (%p218) target = $region32
      $region31: #{rsu4_forward.1} parent=11 // pred_region
        _
      $region32: #{rsu4_forward.1} parent=11 // pred_fallthru
        _
      // Predicated region
      $region33: #{rsu4_forward.1} parent=11 // pred_check
        %p221 = pneg %p165
      $region34: #{rsu4_forward.1} parent=11 // pred_check_branch
        %223 = sbr.rel (%p221) target = $region36
      $region35: #{rsu4_forward.1} parent=11 // pred_region
        _
      $region36: #{rsu4_forward.1} parent=11 // pred_fallthru
        _
    $region12: #{rsu4_forward.1} parent=5 // pred_fallthru
      _
    %p224 = scmp.lt.s32.totalorder %s13, 2
    // Predicated region
    $region37: #{rsu4_forward.1} parent=5 // pred_check
      %p225 = pneg %p224
    $region38: #{rsu4_forward.1} parent=5 // pred_check_branch
      %227 = sbr.rel (%p225) target = $region40
    $region39: #{rsu4_forward.1} parent=5 // pred_region
      // Predicated region
      $region41: #{rsu4_forward.1} parent=39 // pred_check
        %p228 = pneg %p33
      $region42: #{rsu4_forward.1} parent=39 // pred_check_branch
        %230 = sbr.rel (%p228) target = $region44
      $region43: #{rsu4_forward.1} parent=39 // pred_region
        %p231 = scmp.lt.s32.totalorder %s13, 1
        %s232 = scalar_select %p231, %s13, 1
        %s233 = smul.addr %s232, 2
        %s234 = smul.addr %s233, 2
        %s235 = scalar_lea.vmem %s0, %s234
      $region44: #{rsu4_forward.1} parent=39 // pred_fallthru
        _
    $region40: #{rsu4_forward.1} parent=5 // pred_fallthru
      _
    %p236 = scmp.le.s32.totalorder 1, %s13
    %p237 = scmp.lt.s32.totalorder %s13, 3
    %p238 = pnand %p236, %p237
    %p239 = pneg %p238
    // Predicated region
    $region45: #{rsu4_forward.1} parent=5 // pred_check
      _
    $region46: #{rsu4_forward.1} parent=5 // pred_check_branch
      %241 = sbr.rel (%p238) target = $region48
    $region47: #{rsu4_forward.1} parent=5 // pred_region
      %s242 = ssub.s32 %s13, 1
      %p243 = scmp.lt.s32.totalorder %s18, 1
      %s244 = scalar_select %p243, %s18, 1
      %s245 = smul.addr %s244, 2
      %s246 = smul.addr %s245, 2
      %s247 = scalar_lea.vmem %s0, %s246
      %p248 = pneg %p39
      %p249 = pneg %p36
      %p250 = pneg %p60
      %p251 = pneg %p57
      %p252 = pneg %p81
      %p253 = pneg %p78
      %p254 = pneg %p102
      %p255 = pneg %p99
      %p256 = pneg %p123
      %p257 = pneg %p120
      %p258 = pneg %p144
      %p259 = pneg %p141
      %p260 = pneg %p165
      %p261 = pneg %p162
      %p262 = pneg %p191
      %p263 = pneg %p188
      %p264 = scmp.lt.s32.totalorder %s18, 1
      %s265 = scalar_select %p264, %s18, 1
      %s266 = smul.addr %s265, 2
      %s267 = smul.addr %s266, 4
      %s268 = scalar_lea.vmem %s7, %s267
      %p269 = scmp.lt.s32.totalorder %s18, 1
      %s270 = scalar_select %p269, %s18, 1
      %s271 = smul.addr %s270, 2
      %s272 = smul.addr %s271, 2
      %s273 = scalar_lea.vmem %s0, %s272
      %p274 = scmp.lt.s32.totalorder %s18, 1
      %s275 = scalar_select %p274, %s18, 1
      %s276 = smul.addr %s275, 2
      %s277 = smul.addr %s276, 4
      %s278 = scalar_lea.vmem %s7, %s277
      %v280 = vld [vmem:[%s273] sm:$0xf]
      %v281 = vld [vmem:[%s5] sm:$0x3]
      %v282 = vld [vmem:[%s6] sm:$0xf]
      %vm283 = vcmask 132096
      %284 = vst.msk [vmem:[#allocation2] sm:$0x3] %vm283, 0
      %vm285 = vcmask 271496
      %286 = vst.msk [vmem:[#allocation2 + $0x8] sm:$0x3] %vm285, 0
      %288 = vst [vmem:[#allocation1] ss:$2 sm:$0xff] %v280
      %v289 = vld.sshfl [vmem:[#allocation1] sm:$0xff pattern:$0x75643120]
      %291 = vrot.lane.b32.xlu0 %v289, 17
      %v292 = vpop.permute.xlu0 %291
      %v293 = vrot.slane %v292, 4
      %vm294 = vcmask 138240
      %v295 = vsel %vm294, %v293, %v292
      %vm298 = vcmask 1041544
      %vm299 = vcmask 1045508
      %vm300 = vmor %vm299, %vm298
      %301 = vst.msk [vmem:[#allocation2] sm:$0x33] %vm300, %v295
      %302 = vst.msk [vmem:[#allocation2 + $0x8] sm:$0x3] %vm283, %v293
      %v303 = vlaneseq
      %v304 = vand.u32 %v303, 127
      %v305 = vadd.s32 %v304, 128
      %vm306 = vcmp.lt.s32.totalorder %v304, 0
      %v307 = vsub.s32 0, %v304
      %v308 = vsel %vm306, %v307, %v304
      %v309 = vshrl.u32 %v308, 4
      %v310 = vand.u32 %v308, 15
      %v311 = vsub.s32 0, %v310
      %v312 = vsel %vm306, %v311, %v310
      %vm313 = vcmp.lt.s32.totalorder %v305, 0
      %v314 = vsub.s32 0, %v305
      %v315 = vsel %vm313, %v314, %v305
      %v316 = vshrl.u32 %v315, 4
      %v317 = vand.u32 %v315, 15
      %v318 = vsub.s32 0, %v317
      %v319 = vsel %vm313, %v318, %v317
      %vm320 = vcmp.ne.s32.totalorder %v312, 0
      %vm321 = vcmp.ne.s32.totalorder %v319, 0
      %vm322 = vcmp.lt.s32.totalorder %v312, 0
      %vm323 = vcmp.lt.s32.totalorder %v319, 0
      %vm324 = vmand %vm322, %vm320
      %vm325 = vmand %vm323, %vm321
      %v326 = vadd.s32 %v312, 16
      %v327 = vadd.s32 %v319, 16
      %v328 = vsel %vm324, %v326, %v312
      %v329 = vsel %vm325, %v327, %v319
      %vm330 = vcmp.ge.s32.totalorder %v328, 1
      %vm331 = vcmp.ge.s32.totalorder %v329, 1
      %v332 = vsel %vm330, 1, 0
      %v333 = vsel %vm331, 1, 0
      %v334 = vcvt.s32.f32 %v332
      %v335 = vcvt.s32.f32 %v333
      %v336 = vpack.c.bf16 %v335, %v334
      %vm337 = vcmp.lt.s32.totalorder %v328, 15
      %vm338 = vcmp.lt.s32.totalorder %v329, 15
      %v339 = vsel %vm337, 1, 0
      %v340 = vsel %vm338, 1, 0
      %v341 = vcvt.s32.f32 %v339
      %v342 = vcvt.s32.f32 %v340
      %v343 = vpack.c.bf16 %v342, %v341
      %v344 = vld [vmem:[#allocation2] sm:$0x33]
      %v345 = vunpack.c.l.bf16 %v344
      %v346 = vunpack.c.h.bf16 %v344
      %v347 = vunpack.c.l.bf16 %v336
      %v348 = vunpack.c.h.bf16 %v336
      %v349 = vmul.f32 %v345, %v347
      %v350 = vmul.f32 %v346, %v348
      %v351 = vpack.c.bf16 %v350, %v349
      %v352 = vld [vmem:[#allocation2 + $0x8] sm:$0x3]
      %v353 = vunpack.c.l.bf16 %v352
      %v354 = vunpack.c.l.bf16 %v343
      %v355 = vunpack.c.h.bf16 %v343
      %358 = vrot.lane.b32.xlu0 %v354, 2
      %v359 = vpop.permute.xlu0 %358
      %360 = vrot.lane.b32.xlu0 %v355, 2
      %v361 = vpop.permute.xlu0 %360
      %vm362 = vcmask 15360
      %v363 = vsel %vm362, %v359, %v361
      %v367 = vmul.f32 %v345, %v359
      %v368 = vmul.f32 %v346, %v363
      %v369 = vmul.f32 %v353, %v361
      %v370 = vpack.c.bf16 %v368, %v367
      %v371 = vpack.c.bf16 %v369, %v369
      %374 = vrot.lane.b32.xlu0 %v347, 16
      %v375 = vpop.permute.xlu0 %374
      %376 = vrot.lane.b32.xlu0 %v348, 16
      %v377 = vpop.permute.xlu0 %376
      %vm378 = vcmask 130048
      %v379 = vsel %vm378, %v375, %v377
      %v383 = vmul.f32 %v345, %v375
      %v384 = vmul.f32 %v346, %v379
      %v385 = vmul.f32 %v353, %v377
      %v386 = vpack.c.bf16 %v384, %v383
      %v387 = vpack.c.bf16 %v385, %v385
      %388 = vrot.lane.b32.xlu0 %v354, 18
      %v389 = vpop.permute.xlu0 %388
      %390 = vrot.lane.b32.xlu0 %v355, 18
      %v391 = vpop.permute.xlu0 %390
      %vm392 = vcmask 146432
      %v393 = vsel %vm392, %v389, %v391
      %v397 = vmul.f32 %v345, %v389
      %v398 = vmul.f32 %v346, %v393
      %v399 = vmul.f32 %v353, %v391
      %v400 = vpack.c.bf16 %v398, %v397
      %v401 = vpack.c.bf16 %v399, %v399
      %402 = vrot.lane.b32.xlu0 %v347, 32
      %v403 = vpop.permute.xlu0 %402
      %404 = vrot.lane.b32.xlu0 %v348, 32
      %v405 = vpop.permute.xlu0 %404
      %vm406 = vcmask 261120
      %v407 = vsel %vm406, %v403, %v405
      %v411 = vmul.f32 %v345, %v403
      %v412 = vmul.f32 %v346, %v407
      %v413 = vmul.f32 %v353, %v405
      %v414 = vpack.c.bf16 %v412, %v411
      %v415 = vpack.c.bf16 %v413, %v413
      %416 = vrot.lane.b32.xlu0 %v354, 34
      %v417 = vpop.permute.xlu0 %416
      %418 = vrot.lane.b32.xlu0 %v355, 34
      %v419 = vpop.permute.xlu0 %418
      %vm420 = vcmask 277504
      %v421 = vsel %vm420, %v417, %v419
      %v425 = vmul.f32 %v345, %v417
      %v426 = vmul.f32 %v346, %v421
      %v427 = vmul.f32 %v353, %v419
      %v428 = vpack.c.bf16 %v426, %v425
      %v429 = vpack.c.bf16 %v427, %v427
      %v431 = vunpack.c.l.b16 %v351
      %v432 = vunpack.c.h.b16 %v351
      %v433 = vpack.c.b16 %v431, %v431
      %v434 = vpack.c.b16 %v432, %v432
      %v437 = vunpack.c.l.b16 %v344
      %v438 = vunpack.c.h.b16 %v344
      %v439 = vunpack.c.l.b16 %v352
      %v440 = vpack.c.b16 %v437, %v437
      %v441 = vpack.c.b16 %v438, %v438
      %v442 = vpack.c.b16 %v439, %v439
      %v443 = vrot.slane %v440, 6
      %v444 = vrot.slane %v441, 6
      %v445 = vrot.slane %v442, 6
      %446 = vrot.lane.b32.xlu0 %v443, 127
      %v447 = vpop.permute.xlu0 %446
      %448 = vrot.lane.b32.xlu0 %v444, 127
      %v449 = vpop.permute.xlu0 %448
      %450 = vrot.lane.b32.xlu0 %v445, 127
      %v451 = vpop.permute.xlu0 %450
      %vm452 = vcmask 1039360
      %v453 = vsel %vm452, %v447, %v449
      %v454 = vsel %vm452, %v449, %v451
      %v457 = vunpack.c.l.b16 %v370
      %v458 = vunpack.c.h.b16 %v370
      %v459 = vunpack.c.l.b16 %v371
      %v460 = vpack.c.b16 %v457, %v457
      %v461 = vpack.c.b16 %v458, %v458
      %v462 = vpack.c.b16 %v459, %v459
      %463 = vrot.lane.b32.xlu0 %v460, 126
      %v464 = vpop.permute.xlu0 %463
      %465 = vrot.lane.b32.xlu0 %v461, 126
      %v466 = vpop.permute.xlu0 %465
      %467 = vrot.lane.b32.xlu0 %v462, 126
      %v468 = vpop.permute.xlu0 %467
      %vm469 = vcmask 1031168
      %v470 = vsel %vm469, %v464, %v466
      %v471 = vsel %vm469, %v466, %v468
      %v474 = vunpack.c.l.b16 %v386
      %v475 = vunpack.c.h.b16 %v386
      %v476 = vunpack.c.l.b16 %v387
      %v477 = vpack.c.b16 %v474, %v474
      %v478 = vpack.c.b16 %v475, %v475
      %v479 = vpack.c.b16 %v476, %v476
      %v480 = vrot.slane %v477, 2
      %v481 = vrot.slane %v478, 2
      %v482 = vrot.slane %v479, 2
      %483 = vrot.lane.b32.xlu0 %v480, 112
      %v484 = vpop.permute.xlu0 %483
      %485 = vrot.lane.b32.xlu0 %v481, 112
      %v486 = vpop.permute.xlu0 %485
      %487 = vrot.lane.b32.xlu0 %v482, 112
      %v488 = vpop.permute.xlu0 %487
      %vm489 = vcmask 916480
      %v490 = vsel %vm489, %v484, %v486
      %v491 = vsel %vm489, %v486, %v488
      %492 = vrot.lane.b32.xlu0 %v440, 111
      %v493 = vpop.permute.xlu0 %492
      %494 = vrot.lane.b32.xlu0 %v441, 111
      %v495 = vpop.permute.xlu0 %494
      %496 = vrot.lane.b32.xlu0 %v442, 111
      %v497 = vpop.permute.xlu0 %496
      %vm498 = vcmask 908288
      %v499 = vsel %vm498, %v493, %v495
      %v500 = vsel %vm498, %v495, %v497
      %v503 = vunpack.c.l.b16 %v400
      %v504 = vunpack.c.h.b16 %v400
      %v505 = vunpack.c.l.b16 %v401
      %v506 = vpack.c.b16 %v503, %v503
      %v507 = vpack.c.b16 %v504, %v504
      %v508 = vpack.c.b16 %v505, %v505
      %v509 = vrot.slane %v506, 6
      %v510 = vrot.slane %v507, 6
      %v511 = vrot.slane %v508, 6
      %512 = vrot.lane.b32.xlu0 %v509, 110
      %v513 = vpop.permute.xlu0 %512
      %514 = vrot.lane.b32.xlu0 %v510, 110
      %v515 = vpop.permute.xlu0 %514
      %516 = vrot.lane.b32.xlu0 %v511, 110
      %v517 = vpop.permute.xlu0 %516
      %vm518 = vcmask 900096
      %v519 = vsel %vm518, %v513, %v515
      %v520 = vsel %vm518, %v515, %v517
      %v523 = vunpack.c.l.b16 %v414
      %v524 = vunpack.c.h.b16 %v414
      %v525 = vunpack.c.l.b16 %v415
      %v526 = vpack.c.b16 %v523, %v523
      %v527 = vpack.c.b16 %v524, %v524
      %v528 = vpack.c.b16 %v525, %v525
      %529 = vrot.lane.b32.xlu0 %v526, 96
      %v530 = vpop.permute.xlu0 %529
      %531 = vrot.lane.b32.xlu0 %v527, 96
      %v532 = vpop.permute.xlu0 %531
      %533 = vrot.lane.b32.xlu0 %v528, 96
      %v534 = vpop.permute.xlu0 %533
      %vm535 = vcmask 785408
      %v536 = vsel %vm535, %v530, %v532
      %v537 = vsel %vm535, %v532, %v534
      %v538 = vrot.slane %v440, 2
      %v539 = vrot.slane %v441, 2
      %v540 = vrot.slane %v442, 2
      %541 = vrot.lane.b32.xlu0 %v538, 95
      %v542 = vpop.permute.xlu0 %541
      %543 = vrot.lane.b32.xlu0 %v539, 95
      %v544 = vpop.permute.xlu0 %543
      %545 = vrot.lane.b32.xlu0 %v540, 95
      %v546 = vpop.permute.xlu0 %545
      %vm547 = vcmask 777216
      %v548 = vsel %vm547, %v542, %v544
      %v549 = vsel %vm547, %v544, %v546
      %v552 = vunpack.c.l.b16 %v428
      %v553 = vunpack.c.h.b16 %v428
      %v554 = vunpack.c.l.b16 %v429
      %v555 = vpack.c.b16 %v552, %v552
      %v556 = vpack.c.b16 %v553, %v553
      %v557 = vpack.c.b16 %v554, %v554
      %558 = vrot.lane.b32.xlu0 %v555, 94
      %v559 = vpop.permute.xlu0 %558
      %560 = vrot.lane.b32.xlu0 %v556, 94
      %v561 = vpop.permute.xlu0 %560
      %562 = vrot.lane.b32.xlu0 %v557, 94
      %v563 = vpop.permute.xlu0 %562
      %vm564 = vcmask 769024
      %v565 = vsel %vm564, %v559, %v561
      %v566 = vsel %vm564, %v561, %v563
      %vm567 = vcmask 1041408
      %v570 = vsel %vm567, %v433, %v453
      %v573 = vsel %vm567, %v434, %v454
      %vm574 = vcmask 1043456
      %v576 = vsel %vm574, %v570, %v470
      %v578 = vsel %vm574, %v573, %v471
      %vm579 = vcmask 1045504
      %v581 = vsel %vm579, %v576, %v490
      %v584 = vsel %vm579, %v578, %v491
      %v588 = vsel %vm567, %v499, %v519
      %v591 = vsel %vm567, %v500, %v520
      %v593 = vsel %vm574, %v588, %v536
      %v595 = vsel %vm574, %v591, %v537
      %v597 = vsel %vm579, %v593, %v548
      %v600 = vsel %vm579, %v595, %v549
      %vm602 = vcmask 293888
      %v604 = vsel %vm602, %v281, 0
      %v607 = vsel %vm567, %v565, 0
      %v610 = vsel %vm567, %v566, 0
      %612 = vmatpush.bf16.msra.mxu0 0
      %613 = vmatpush.bf16.msra.mxu0 0
      %614 = vmatpush.bf16.msra.mxu0 0
      %615 = vmatpush.bf16.msra.mxu0 0
      %616 = vmatpush.bf16.msra.mxu0 0
      %617 = vmatpush.bf16.msra.mxu0 %v607
      %618 = vmatpush.bf16.msra.mxu0 %v597
      %619 = vmatpush.bf16.msra.mxu0 %v581
      %620 = vmatmul.bf16.gmra.mxu0 %v604
      %v621 = vpop.f32.mrf.mxu0
      %v622 = vadd.f32 0.0, %v621
      %v623 = vpop.f32.mrf.mxu0
      %624 = vdwg.mxu0
      %625 = vmatpush.bf16.msra.mxu0 0
      %626 = vmatpush.bf16.msra.mxu0 0
      %627 = vmatpush.bf16.msra.mxu0 0
      %628 = vmatpush.bf16.msra.mxu0 0
      %629 = vmatpush.bf16.msra.mxu0 0
      %630 = vmatpush.bf16.msra.mxu0 %v610
      %631 = vmatpush.bf16.msra.mxu0 %v600
      %632 = vmatpush.bf16.msra.mxu0 %v584
      %633 = vmatmul.bf16.gmra.mxu0 %v604
      %v634 = vpop.f32.mrf.mxu0
      %v635 = vadd.f32 0.0, %v634
      %v636 = vpop.f32.mrf.mxu0
      %637 = vdwg.mxu0
      %639 = vset.pattern.permute.xlu0 0
      %640 = vperm.xlu0 %639, %v282
      %v641 = vpop.permute.xlu0 %640
      %v643 = vmul.f32 %v622, %v641
      %v644 = vmul.f32 %v635, %v641
      %645 = vset.pattern.permute.xlu0 1
      %646 = vperm.xlu0 %645, %v282
      %v647 = vpop.permute.xlu0 %646
      %v649 = vadd.f32 %v643, %v647
      %v650 = vadd.f32 %v644, %v647
      %v651 = vmax.f32 %v649, 0.0
      %v652 = vmax.f32 %v650, 0.0
      %v653 = vpack.c.bf16 %v652, %v651
      %v654 = vld [vmem:[%s5] sm:$0xc]
      %v655 = vld [vmem:[%s5 + $0x8] sm:$0x3]
      %v656 = vld [vmem:[%s6 + $0x4] sm:$0xff]
      %657 = vst.msk [vmem:[#allocation2] sm:$0x3] %vm283, 0
      %658 = vst.msk [vmem:[#allocation2 + $0x8] sm:$0x3] %vm285, 0
      %660 = vrot.lane.b32.xlu0 %v653, 17
      %v661 = vpop.permute.xlu0 %660
      %v662 = vrot.slane %v661, 4
      %v663 = vsel %vm294, %v662, %v661
      %666 = vst.msk [vmem:[#allocation2] sm:$0x33] %vm300, %v663
      %667 = vst.msk [vmem:[#allocation2 + $0x8] sm:$0x3] %vm283, %v662
      %v668 = vld [vmem:[#allocation2] sm:$0x33]
      %v669 = vunpack.c.l.bf16 %v668
      %v670 = vunpack.c.h.bf16 %v668
      %v671 = vmul.f32 %v669, %v347
      %v672 = vmul.f32 %v670, %v348
      %v673 = vpack.c.bf16 %v672, %v671
      %v674 = vld [vmem:[#allocation2 + $0x8] sm:$0x3]
      %v675 = vunpack.c.l.bf16 %v674
      %v676 = vmul.f32 %v669, %v359
      %v677 = vmul.f32 %v670, %v363
      %v678 = vmul.f32 %v675, %v361
      %v679 = vpack.c.bf16 %v677, %v676
      %v680 = vpack.c.bf16 %v678, %v678
      %v681 = vmul.f32 %v669, %v375
      %v682 = vmul.f32 %v670, %v379
      %v683 = vmul.f32 %v675, %v377
      %v684 = vpack.c.bf16 %v682, %v681
      %v685 = vpack.c.bf16 %v683, %v683
      %v686 = vmul.f32 %v669, %v389
      %v687 = vmul.f32 %v670, %v393
      %v688 = vmul.f32 %v675, %v391
      %v689 = vpack.c.bf16 %v687, %v686
      %v690 = vpack.c.bf16 %v688, %v688
      %v691 = vmul.f32 %v669, %v403
      %v692 = vmul.f32 %v670, %v407
      %v693 = vmul.f32 %v675, %v405
      %v694 = vpack.c.bf16 %v692, %v691
      %v695 = vpack.c.bf16 %v693, %v693
      %v696 = vmul.f32 %v669, %v417
      %v697 = vmul.f32 %v670, %v421
      %v698 = vmul.f32 %v675, %v419
      %v699 = vpack.c.bf16 %v697, %v696
      %v700 = vpack.c.bf16 %v698, %v698
      %v702 = vunpack.c.l.b16 %v673
      %v703 = vunpack.c.h.b16 %v673
      %v704 = vpack.c.b16 %v702, %v702
      %v705 = vpack.c.b16 %v703, %v703
      %v708 = vunpack.c.l.b16 %v668
      %v709 = vunpack.c.h.b16 %v668
      %v710 = vunpack.c.l.b16 %v674
      %v711 = vpack.c.b16 %v708, %v708
      %v712 = vpack.c.b16 %v709, %v709
      %v713 = vpack.c.b16 %v710, %v710
      %v714 = vrot.slane %v711, 6
      %v715 = vrot.slane %v712, 6
      %v716 = vrot.slane %v713, 6
      %717 = vrot.lane.b32.xlu0 %v714, 127
      %v718 = vpop.permute.xlu0 %717
      %719 = vrot.lane.b32.xlu0 %v715, 127
      %v720 = vpop.permute.xlu0 %719
      %721 = vrot.lane.b32.xlu0 %v716, 127
      %v722 = vpop.permute.xlu0 %721
      %v723 = vsel %vm452, %v718, %v720
      %v724 = vsel %vm452, %v720, %v722
      %v727 = vunpack.c.l.b16 %v679
      %v728 = vunpack.c.h.b16 %v679
      %v729 = vunpack.c.l.b16 %v680
      %v730 = vpack.c.b16 %v727, %v727
      %v731 = vpack.c.b16 %v728, %v728
      %v732 = vpack.c.b16 %v729, %v729
      %733 = vrot.lane.b32.xlu0 %v730, 126
      %v734 = vpop.permute.xlu0 %733
      %735 = vrot.lane.b32.xlu0 %v731, 126
      %v736 = vpop.permute.xlu0 %735
      %737 = vrot.lane.b32.xlu0 %v732, 126
      %v738 = vpop.permute.xlu0 %737
      %v739 = vsel %vm469, %v734, %v736
      %v740 = vsel %vm469, %v736, %v738
      %v743 = vunpack.c.l.b16 %v684
      %v744 = vunpack.c.h.b16 %v684
      %v745 = vunpack.c.l.b16 %v685
      %v746 = vpack.c.b16 %v743, %v743
      %v747 = vpack.c.b16 %v744, %v744
      %v748 = vpack.c.b16 %v745, %v745
      %v749 = vrot.slane %v746, 2
      %v750 = vrot.slane %v747, 2
      %v751 = vrot.slane %v748, 2
      %752 = vrot.lane.b32.xlu0 %v749, 112
      %v753 = vpop.permute.xlu0 %752
      %754 = vrot.lane.b32.xlu0 %v750, 112
      %v755 = vpop.permute.xlu0 %754
      %756 = vrot.lane.b32.xlu0 %v751, 112
      %v757 = vpop.permute.xlu0 %756
      %v758 = vsel %vm489, %v753, %v755
      %v759 = vsel %vm489, %v755, %v757
      %760 = vrot.lane.b32.xlu0 %v711, 111
      %v761 = vpop.permute.xlu0 %760
      %762 = vrot.lane.b32.xlu0 %v712, 111
      %v763 = vpop.permute.xlu0 %762
      %764 = vrot.lane.b32.xlu0 %v713, 111
      %v765 = vpop.permute.xlu0 %764
      %v766 = vsel %vm498, %v761, %v763
      %v767 = vsel %vm498, %v763, %v765
      %v770 = vunpack.c.l.b16 %v689
      %v771 = vunpack.c.h.b16 %v689
      %v772 = vunpack.c.l.b16 %v690
      %v773 = vpack.c.b16 %v770, %v770
      %v774 = vpack.c.b16 %v771, %v771
      %v775 = vpack.c.b16 %v772, %v772
      %v776 = vrot.slane %v773, 6
      %v777 = vrot.slane %v774, 6
      %v778 = vrot.slane %v775, 6
      %779 = vrot.lane.b32.xlu0 %v776, 110
      %v780 = vpop.permute.xlu0 %779
      %781 = vrot.lane.b32.xlu0 %v777, 110
      %v782 = vpop.permute.xlu0 %781
      %783 = vrot.lane.b32.xlu0 %v778, 110
      %v784 = vpop.permute.xlu0 %783
      %v785 = vsel %vm518, %v780, %v782
      %v786 = vsel %vm518, %v782, %v784
      %v789 = vunpack.c.l.b16 %v694
      %v790 = vunpack.c.h.b16 %v694
      %v791 = vunpack.c.l.b16 %v695
      %v792 = vpack.c.b16 %v789, %v789
      %v793 = vpack.c.b16 %v790, %v790
      %v794 = vpack.c.b16 %v791, %v791
      %795 = vrot.lane.b32.xlu0 %v792, 96
      %v796 = vpop.permute.xlu0 %795
      %797 = vrot.lane.b32.xlu0 %v793, 96
      %v798 = vpop.permute.xlu0 %797
      %799 = vrot.lane.b32.xlu0 %v794, 96
      %v800 = vpop.permute.xlu0 %799
      %v801 = vsel %vm535, %v796, %v798
      %v802 = vsel %vm535, %v798, %v800
      %v803 = vrot.slane %v711, 2
      %v804 = vrot.slane %v712, 2
      %v805 = vrot.slane %v713, 2
      %806 = vrot.lane.b32.xlu0 %v803, 95
      %v807 = vpop.permute.xlu0 %806
      %808 = vrot.lane.b32.xlu0 %v804, 95
      %v809 = vpop.permute.xlu0 %808
      %810 = vrot.lane.b32.xlu0 %v805, 95
      %v811 = vpop.permute.xlu0 %810
      %v812 = vsel %vm547, %v807, %v809
      %v813 = vsel %vm547, %v809, %v811
      %v816 = vunpack.c.l.b16 %v699
      %v817 = vunpack.c.h.b16 %v699
      %v818 = vunpack.c.l.b16 %v700
      %v819 = vpack.c.b16 %v816, %v816
      %v820 = vpack.c.b16 %v817, %v817
      %v821 = vpack.c.b16 %v818, %v818
      %822 = vrot.lane.b32.xlu0 %v819, 94
      %v823 = vpop.permute.xlu0 %822
      %824 = vrot.lane.b32.xlu0 %v820, 94
      %v825 = vpop.permute.xlu0 %824
      %826 = vrot.lane.b32.xlu0 %v821, 94
      %v827 = vpop.permute.xlu0 %826
      %v828 = vsel %vm564, %v823, %v825
      %v829 = vsel %vm564, %v825, %v827
      %v832 = vsel %vm567, %v704, %v723
      %v835 = vsel %vm567, %v705, %v724
      %v837 = vsel %vm574, %v832, %v739
      %v839 = vsel %vm574, %v835, %v740
      %v841 = vsel %vm579, %v837, %v758
      %v844 = vsel %vm579, %v839, %v759
      %v848 = vsel %vm567, %v766, %v785
      %v851 = vsel %vm567, %v767, %v786
      %v853 = vsel %vm574, %v848, %v801
      %v855 = vsel %vm574, %v851, %v802
      %v857 = vsel %vm579, %v853, %v812
      %v860 = vsel %vm579, %v855, %v813
      %v864 = vunpack.c.l.b16 %v654
      %v865 = vunpack.c.l.b16 %v655
      %v866 = vpack.c.b16 %v865, %v864
      %v867 = vrot.slane %v866, 2
      %v869 = vsel %vm602, %v867, 0
      %v872 = vsel %vm567, %v828, 0
      %v875 = vsel %vm567, %v829, 0
      %877 = vmatpush.bf16.msra.mxu0 0
      %878 = vmatpush.bf16.msra.mxu0 0
      %879 = vmatpush.bf16.msra.mxu0 0
      %880 = vmatpush.bf16.msra.mxu0 0
      %881 = vmatpush.bf16.msra.mxu0 0
      %882 = vmatpush.bf16.msra.mxu0 %v872
      %883 = vmatpush.bf16.msra.mxu0 %v857
      %884 = vmatpush.bf16.msra.mxu0 %v841
      %885 = vmatmul.bf16.gmra.mxu0 %v869
      %v886 = vpop.f32.mrf.mxu0
      %v887 = vadd.f32 0.0, %v886
      %v888 = vpop.f32.mrf.mxu0
      %889 = vdwg.mxu0
      %890 = vmatpush.bf16.msra.mxu0 0
      %891 = vmatpush.bf16.msra.mxu0 0
      %892 = vmatpush.bf16.msra.mxu0 0
      %893 = vmatpush.bf16.msra.mxu0 0
      %894 = vmatpush.bf16.msra.mxu0 0
      %895 = vmatpush.bf16.msra.mxu0 %v875
      %896 = vmatpush.bf16.msra.mxu0 %v860
      %897 = vmatpush.bf16.msra.mxu0 %v844
      %898 = vmatmul.bf16.gmra.mxu0 %v869
      %v899 = vpop.f32.mrf.mxu0
      %v900 = vadd.f32 0.0, %v899
      %v901 = vpop.f32.mrf.mxu0
      %902 = vdwg.mxu0
      %904 = vset.pattern.permute.xlu0 0
      %905 = vperm.xlu0 %904, %v656
      %v906 = vpop.permute.xlu0 %905
      %v908 = vmul.f32 %v887, %v906
      %v909 = vmul.f32 %v900, %v906
      %910 = vset.pattern.permute.xlu0 1
      %911 = vperm.xlu0 %910, %v656
      %v912 = vpop.permute.xlu0 %911
      %v914 = vadd.f32 %v908, %v912
      %v915 = vadd.f32 %v909, %v912
      %v916 = vmax.f32 %v914, 0.0
      %v917 = vmax.f32 %v915, 0.0
      %v918 = vpack.c.bf16 %v917, %v916
      %v919 = vld [vmem:[%s1] sm:$0xff]
      %v920 = vld [vmem:[%s1 + $0x8] sm:$0xff]
      %v921 = vld [vmem:[%s1 + $0x10] sm:$0xff]
      %v922 = vld [vmem:[%s1 + $0x18] sm:$0xff]
      %v923 = vld [vmem:[%s1 + $0x20] sm:$0xff]
      %v924 = vld [vmem:[%s1 + $0x28] sm:$0xff]
      %v925 = vld [vmem:[%s1 + $0x30] sm:$0xff]
      %v926 = vld [vmem:[%s1 + $0x38] sm:$0xff]
      %v927 = vld [vmem:[%s1 + $0x40] sm:$0xff]
      %v928 = vld [vmem:[%s1 + $0x48] sm:$0xff]
      %v929 = vld [vmem:[%s1 + $0x50] sm:$0xff]
      %v930 = vld [vmem:[%s1 + $0x58] sm:$0xff]
      %v931 = vld [vmem:[%s1 + $0x60] sm:$0xff]
      %v932 = vld [vmem:[%s1 + $0x68] sm:$0xff]
      %v933 = vld [vmem:[%s1 + $0x70] sm:$0xff]
      %v934 = vld [vmem:[%s1 + $0x78] sm:$0xff]
      %v935 = vld [vmem:[%s1 + $0x80] sm:$0xff]
      %v936 = vld [vmem:[%s1 + $0x88] sm:$0xff]
      %v937 = vld [vmem:[%s1 + $0x90] sm:$0xff]
      %v938 = vld [vmem:[%s1 + $0x98] sm:$0xff]
      %v939 = vld [vmem:[%s1 + $0xa0] sm:$0xff]
      %v940 = vld [vmem:[%s1 + $0xa8] sm:$0xff]
      %v941 = vld [vmem:[%s1 + $0xb0] sm:$0xff]
      %v942 = vld [vmem:[%s1 + $0xb8] sm:$0xff]
      %v943 = vld [vmem:[%s1 + $0xc0] sm:$0xff]
      %v944 = vld [vmem:[%s1 + $0xc8] sm:$0xff]
      %v945 = vld [vmem:[%s1 + $0xd0] sm:$0xff]
      %v946 = vld [vmem:[%s1 + $0xd8] sm:$0xff]
      %v947 = vld [vmem:[%s1 + $0xe0] sm:$0xff]
      %v948 = vld [vmem:[%s1 + $0xe8] sm:$0xff]
      %v949 = vld [vmem:[%s1 + $0xf0] sm:$0xff]
      %v950 = vld [vmem:[%s1 + $0xf8] sm:$0xff]
      %v952 = vunpack.c.l.b16 %v918
      %v953 = vunpack.c.h.b16 %v918
      %v954 = vpack.c.b16 %v952, %v952
      %v955 = vpack.c.b16 %v953, %v953
      %v990 = vunpack.c.l.b16 %v919
      %v991 = vunpack.c.h.b16 %v919
      %v992 = vunpack.c.l.b16 %v920
      %v993 = vunpack.c.h.b16 %v920
      %v994 = vunpack.c.l.b16 %v921
      %v995 = vunpack.c.h.b16 %v921
      %v996 = vunpack.c.l.b16 %v922
      %v997 = vunpack.c.h.b16 %v922
      %v998 = vunpack.c.l.b16 %v923
      %v999 = vunpack.c.h.b16 %v923
      %v1000 = vunpack.c.l.b16 %v924
      %v1001 = vunpack.c.h.b16 %v924
      %v1002 = vunpack.c.l.b16 %v925
      %v1003 = vunpack.c.h.b16 %v925
      %v1004 = vunpack.c.l.b16 %v926
      %v1005 = vunpack.c.h.b16 %v926
      %v1006 = vunpack.c.l.b16 %v927
      %v1007 = vunpack.c.h.b16 %v927
      %v1008 = vunpack.c.l.b16 %v928
      %v1009 = vunpack.c.h.b16 %v928
      %v1010 = vunpack.c.l.b16 %v929
      %v1011 = vunpack.c.h.b16 %v929
      %v1012 = vunpack.c.l.b16 %v930
      %v1013 = vunpack.c.h.b16 %v930
      %v1014 = vunpack.c.l.b16 %v931
      %v1015 = vunpack.c.h.b16 %v931
      %v1016 = vunpack.c.l.b16 %v932
      %v1017 = vunpack.c.h.b16 %v932
      %v1018 = vunpack.c.l.b16 %v933
      %v1019 = vunpack.c.h.b16 %v933
      %v1020 = vunpack.c.l.b16 %v934
      %v1021 = vunpack.c.h.b16 %v934
      %v1022 = vunpack.c.l.b16 %v935
      %v1023 = vunpack.c.h.b16 %v935
      %v1024 = vunpack.c.l.b16 %v936
      %v1025 = vunpack.c.h.b16 %v936
      %v1026 = vunpack.c.l.b16 %v937
      %v1027 = vunpack.c.h.b16 %v937
      %v1028 = vunpack.c.l.b16 %v938
      %v1029 = vunpack.c.h.b16 %v938
      %v1030 = vunpack.c.l.b16 %v939
      %v1031 = vunpack.c.h.b16 %v939
      %v1032 = vunpack.c.l.b16 %v940
      %v1033 = vunpack.c.h.b16 %v940
      %v1034 = vunpack.c.l.b16 %v941
      %v1035 = vunpack.c.h.b16 %v941
      %v1036 = vunpack.c.l.b16 %v942
      %v1037 = vunpack.c.h.b16 %v942
      %v1038 = vunpack.c.l.b16 %v943
      %v1039 = vunpack.c.h.b16 %v943
      %v1040 = vunpack.c.l.b16 %v944
      %v1041 = vunpack.c.h.b16 %v944
      %v1042 = vunpack.c.l.b16 %v945
      %v1043 = vunpack.c.h.b16 %v945
      %v1044 = vunpack.c.l.b16 %v946
      %v1045 = vunpack.c.h.b16 %v946
      %v1046 = vunpack.c.l.b16 %v947
      %v1047 = vunpack.c.h.b16 %v947
      %v1048 = vunpack.c.l.b16 %v948
      %v1049 = vunpack.c.h.b16 %v948
      %v1050 = vunpack.c.l.b16 %v949
      %v1051 = vunpack.c.h.b16 %v949
      %v1052 = vunpack.c.l.b16 %v950
      %v1053 = vunpack.c.h.b16 %v950
      %v1054 = vpack.c.b16 %v992, %v990
      %v1055 = vpack.c.b16 %v993, %v991
      %v1056 = vpack.c.b16 %v996, %v994
      %v1057 = vpack.c.b16 %v997, %v995
      %v1058 = vpack.c.b16 %v1000, %v998
      %v1059 = vpack.c.b16 %v1001, %v999
      %v1060 = vpack.c.b16 %v1004, %v1002
      %v1061 = vpack.c.b16 %v1005, %v1003
      %v1062 = vpack.c.b16 %v1008, %v1006
      %v1063 = vpack.c.b16 %v1009, %v1007
      %v1064 = vpack.c.b16 %v1012, %v1010
      %v1065 = vpack.c.b16 %v1013, %v1011
      %v1066 = vpack.c.b16 %v1016, %v1014
      %v1067 = vpack.c.b16 %v1017, %v1015
      %v1068 = vpack.c.b16 %v1020, %v1018
      %v1069 = vpack.c.b16 %v1021, %v1019
      %v1070 = vpack.c.b16 %v1024, %v1022
      %v1071 = vpack.c.b16 %v1025, %v1023
      %v1072 = vpack.c.b16 %v1028, %v1026
      %v1073 = vpack.c.b16 %v1029, %v1027
      %v1074 = vpack.c.b16 %v1032, %v1030
      %v1075 = vpack.c.b16 %v1033, %v1031
      %v1076 = vpack.c.b16 %v1036, %v1034
      %v1077 = vpack.c.b16 %v1037, %v1035
      %v1078 = vpack.c.b16 %v1040, %v1038
      %v1079 = vpack.c.b16 %v1041, %v1039
      %v1080 = vpack.c.b16 %v1044, %v1042
      %v1081 = vpack.c.b16 %v1045, %v1043
      %v1082 = vpack.c.b16 %v1048, %v1046
      %v1083 = vpack.c.b16 %v1049, %v1047
      %v1084 = vpack.c.b16 %v1052, %v1050
      %v1085 = vpack.c.b16 %v1053, %v1051
      %1118 = vmatpush.bf16.msra.mxu0 %v1068
      %1119 = vmatpush.bf16.msra.mxu0 %v1066
      %1120 = vmatpush.bf16.msra.mxu0 %v1064
      %1121 = vmatpush.bf16.msra.mxu0 %v1062
      %1122 = vmatpush.bf16.msra.mxu0 %v1060
      %1123 = vmatpush.bf16.msra.mxu0 %v1058
      %1124 = vmatpush.bf16.msra.mxu0 %v1056
      %1125 = vmatpush.bf16.msra.mxu0 %v1054
      %1126 = vmatmul.bf16.gmra.mxu0 %v954
      %v1127 = vpop.f32.mrf.mxu0
      %v1128 = vadd.f32 0.0, %v1127
      %v1129 = vpop.f32.mrf.mxu0
      %1130 = vdwg.mxu0
      %1131 = vmatpush.bf16.msra.mxu0 %v1084
      %1132 = vmatpush.bf16.msra.mxu0 %v1082
      %1133 = vmatpush.bf16.msra.mxu0 %v1080
      %1134 = vmatpush.bf16.msra.mxu0 %v1078
      %1135 = vmatpush.bf16.msra.mxu0 %v1076
      %1136 = vmatpush.bf16.msra.mxu0 %v1074
      %1137 = vmatpush.bf16.msra.mxu0 %v1072
      %1138 = vmatpush.bf16.msra.mxu0 %v1070
      %1139 = vmatmul.bf16.gmra.mxu0 %v955
      %v1140 = vpop.f32.mrf.mxu0
      %v1141 = vadd.f32 %v1128, %v1140
      %v1142 = vpop.f32.mrf.mxu0
      %1143 = vdwg.mxu0
      %1144 = vmatpush.bf16.msra.mxu0 %v1069
      %1145 = vmatpush.bf16.msra.mxu0 %v1067
      %1146 = vmatpush.bf16.msra.mxu0 %v1065
      %1147 = vmatpush.bf16.msra.mxu0 %v1063
      %1148 = vmatpush.bf16.msra.mxu0 %v1061
      %1149 = vmatpush.bf16.msra.mxu0 %v1059
      %1150 = vmatpush.bf16.msra.mxu0 %v1057
      %1151 = vmatpush.bf16.msra.mxu0 %v1055
      %1152 = vmatmul.bf16.gmra.mxu0 %v954
      %v1153 = vpop.f32.mrf.mxu0
      %v1154 = vadd.f32 0.0, %v1153
      %v1155 = vpop.f32.mrf.mxu0
      %1156 = vdwg.mxu0
      %1157 = vmatpush.bf16.msra.mxu0 %v1085
      %1158 = vmatpush.bf16.msra.mxu0 %v1083
      %1159 = vmatpush.bf16.msra.mxu0 %v1081
      %1160 = vmatpush.bf16.msra.mxu0 %v1079
      %1161 = vmatpush.bf16.msra.mxu0 %v1077
      %1162 = vmatpush.bf16.msra.mxu0 %v1075
      %1163 = vmatpush.bf16.msra.mxu0 %v1073
      %1164 = vmatpush.bf16.msra.mxu0 %v1071
      %1165 = vmatmul.bf16.gmra.mxu0 %v955
      %v1166 = vpop.f32.mrf.mxu0
      %v1167 = vadd.f32 %v1154, %v1166
      %v1168 = vpop.f32.mrf.mxu0
      %1169 = vdwg.mxu0
      %1171 = vrot.lane.b32.xlu0 %v1141, 64
      %v1172 = vpop.permute.xlu0 %1171
      %v1174 = vmax.f32 %v1141, %v1172
      %1176 = vrot.lane.b32.xlu0 %v1167, 64
      %v1177 = vpop.permute.xlu0 %1176
      %v1179 = vmax.f32 %v1167, %v1177
      %v1180 = vmax.f32 %v1174, %v1179
      %v1181 = vpack.c.bf16 %v1180, %v1180
      %v1182 = vld [vmem:[%s5 + $0x8] sm:$0xc]
      %v1183 = vld [vmem:[%s5 + $0x10] sm:$0x3]
      %v1184 = vld [vmem:[%s6 + $0xc] sm:$0xff]
      %vm1185 = vcmask 68608
      %1186 = vst.msk [vmem:[#allocation2] sm:$0xf] %vm1185, 0
      %vm1187 = vcmask 667208
      %1188 = vst.msk [vmem:[#allocation2] sm:$0xf] %vm1187, 0
      %1190 = vrot.lane.b32.xlu0 %v1181, 9
      %v1191 = vpop.permute.xlu0 %1190
      %vm1193 = vcmask 592968
      %1194 = vst.msk [vmem:[#allocation2] sm:$0xf] %vm1193, %v1191
      %vm1195 = vcmp.lt.s32.totalorder %v304, 0
      %v1196 = vsub.s32 0, %v304
      %v1197 = vsel %vm1195, %v1196, %v304
      %v1198 = vshrl.u32 %v1197, 3
      %v1199 = vand.u32 %v1197, 7
      %v1200 = vsub.s32 0, %v1199
      %v1201 = vsel %vm1195, %v1200, %v1199
      %vm1202 = vcmp.ne.s32.totalorder %v1201, 0
      %vm1203 = vcmp.lt.s32.totalorder %v1201, 0
      %vm1204 = vmand %vm1203, %vm1202
      %v1205 = vadd.s32 %v1201, 8
      %v1206 = vsel %vm1204, %v1205, %v1201
      %vm1207 = vcmp.ge.s32.totalorder %v1206, 1
      %v1208 = vsel %vm1207, 1, 0
      %v1209 = vcvt.s32.f32 %v1208
      %v1210 = vpack.c.bf16 %v1209, %v1209
      %vm1211 = vcmp.lt.s32.totalorder %v1206, 7
      %v1212 = vsel %vm1211, 1, 0
      %v1213 = vcvt.s32.f32 %v1212
      %v1214 = vpack.c.bf16 %v1213, %v1213
      %v1215 = vld [vmem:[#allocation2] sm:$0xf]
      %v1216 = vunpack.c.l.bf16 %v1215
      %v1217 = vunpack.c.l.bf16 %v1210
      %v1218 = vmul.f32 %v1216, %v1217
      %v1219 = vpack.c.bf16 %v1218, %v1218
      %v1220 = vunpack.c.l.bf16 %v1214
      %1222 = vrot.lane.b32.xlu0 %v1220, 2
      %v1223 = vpop.permute.xlu0 %1222
      %v1225 = vmul.f32 %v1216, %v1223
      %v1226 = vpack.c.bf16 %v1225, %v1225
      %1228 = vrot.lane.b32.xlu0 %v1217, 8
      %v1229 = vpop.permute.xlu0 %1228
      %v1231 = vmul.f32 %v1216, %v1229
      %v1232 = vpack.c.bf16 %v1231, %v1231
      %1233 = vrot.lane.b32.xlu0 %v1220, 10
      %v1234 = vpop.permute.xlu0 %1233
      %v1236 = vmul.f32 %v1216, %v1234
      %v1237 = vpack.c.bf16 %v1236, %v1236
      %1238 = vrot.lane.b32.xlu0 %v1217, 16
      %v1239 = vpop.permute.xlu0 %1238
      %v1241 = vmul.f32 %v1216, %v1239
      %v1242 = vpack.c.bf16 %v1241, %v1241
      %1243 = vrot.lane.b32.xlu0 %v1220, 18
      %v1244 = vpop.permute.xlu0 %1243
      %v1246 = vmul.f32 %v1216, %v1244
      %v1247 = vpack.c.bf16 %v1246, %v1246
      %v1249 = vunpack.c.l.b16 %v1215
      %v1250 = vpack.c.b16 %v1249, %v1249
      %1251 = vrot.lane.b32.xlu0 %v1250, 127
      %v1252 = vpop.permute.xlu0 %1251
      %v1254 = vunpack.c.l.b16 %v1226
      %v1255 = vpack.c.b16 %v1254, %v1254
      %1256 = vrot.lane.b32.xlu0 %v1255, 126
      %v1257 = vpop.permute.xlu0 %1256
      %v1259 = vunpack.c.l.b16 %v1232
      %v1260 = vpack.c.b16 %v1259, %v1259
      %1261 = vrot.lane.b32.xlu0 %v1260, 120
      %v1262 = vpop.permute.xlu0 %1261
      %1263 = vrot.lane.b32.xlu0 %v1250, 119
      %v1264 = vpop.permute.xlu0 %1263
      %v1266 = vunpack.c.l.b16 %v1237
      %v1267 = vpack.c.b16 %v1266, %v1266
      %1268 = vrot.lane.b32.xlu0 %v1267, 118
      %v1269 = vpop.permute.xlu0 %1268
      %v1271 = vunpack.c.l.b16 %v1242
      %v1272 = vpack.c.b16 %v1271, %v1271
      %1273 = vrot.lane.b32.xlu0 %v1272, 112
      %v1274 = vpop.permute.xlu0 %1273
      %1275 = vrot.lane.b32.xlu0 %v1250, 111
      %v1276 = vpop.permute.xlu0 %1275
      %v1278 = vunpack.c.l.b16 %v1247
      %v1279 = vpack.c.b16 %v1278, %v1278
      %1280 = vrot.lane.b32.xlu0 %v1279, 110
      %v1281 = vpop.permute.xlu0 %1280
      %v1284 = vsel %vm574, %v1219, %v1252
      %v1288 = vsel %vm574, %v1257, %v1262
      %v1292 = vsel %vm574, %v1264, %v1269
      %v1296 = vsel %vm574, %v1274, %v1276
      %v1300 = vunpack.c.l.b16 %v1182
      %v1301 = vunpack.c.l.b16 %v1183
      %v1302 = vpack.c.b16 %v1301, %v1300
      %v1303 = vrot.slane %v1302, 2
      %vm1304 = vcmask 588800
      %v1306 = vsel %vm1304, %v1303, 0
      %v1309 = vsel %vm574, %v1281, 0
      %1311 = vmatpush.bf16.msra.mxu0 0
      %1312 = vmatpush.bf16.msra.mxu0 0
      %1313 = vmatpush.bf16.msra.mxu0 0
      %1314 = vmatpush.bf16.msra.mxu0 %v1309
      %1315 = vmatpush.bf16.msra.mxu0 %v1296
      %1316 = vmatpush.bf16.msra.mxu0 %v1292
      %1317 = vmatpush.bf16.msra.mxu0 %v1288
      %1318 = vmatpush.bf16.msra.mxu0 %v1284
      %1319 = vmatmul.bf16.gmra.mxu0 %v1306
      %v1320 = vpop.f32.mrf.mxu0
      %v1321 = vadd.f32 0.0, %v1320
      %v1322 = vpop.f32.mrf.mxu0
      %1323 = vdwg.mxu0
      %1325 = vset.pattern.permute.xlu0 0
      %1326 = vperm.xlu0 %1325, %v1184
      %v1327 = vpop.permute.xlu0 %1326
      %v1329 = vmul.f32 %v1321, %v1327
      %1330 = vset.pattern.permute.xlu0 1
      %1331 = vperm.xlu0 %1330, %v1184
      %v1332 = vpop.permute.xlu0 %1331
      %v1334 = vadd.f32 %v1329, %v1332
      %v1335 = vmax.f32 %v1334, 0.0
      %v1336 = vpack.c.bf16 %v1335, %v1335
      %v1337 = vld [vmem:[%s2] sm:$0xf]
      %v1338 = vld [vmem:[%s2 + $0x4] sm:$0xf]
      %v1339 = vld [vmem:[%s2 + $0x8] sm:$0xf]
      %v1340 = vld [vmem:[%s2 + $0xc] sm:$0xf]
      %v1341 = vld [vmem:[%s2 + $0x10] sm:$0xf]
      %v1342 = vld [vmem:[%s2 + $0x14] sm:$0xf]
      %v1343 = vld [vmem:[%s2 + $0x18] sm:$0xf]
      %v1344 = vld [vmem:[%s2 + $0x1c] sm:$0xf]
      %v1353 = vunpack.c.l.b16 %v1337
      %v1354 = vunpack.c.l.b16 %v1338
      %v1355 = vunpack.c.l.b16 %v1339
      %v1356 = vunpack.c.l.b16 %v1340
      %v1357 = vunpack.c.l.b16 %v1341
      %v1358 = vunpack.c.l.b16 %v1342
      %v1359 = vunpack.c.l.b16 %v1343
      %v1360 = vunpack.c.l.b16 %v1344
      %v1361 = vpack.c.b16 %v1354, %v1353
      %v1362 = vpack.c.b16 %v1356, %v1355
      %v1363 = vpack.c.b16 %v1358, %v1357
      %v1364 = vpack.c.b16 %v1360, %v1359
      %vm1369 = vcmask 523264
      %v1371 = vsel %vm1369, %v1336, 0
      %1373 = vmatpush.bf16.msra.mxu0 0
      %1374 = vmatpush.bf16.msra.mxu0 0
      %1375 = vmatpush.bf16.msra.mxu0 0
      %1376 = vmatpush.bf16.msra.mxu0 0
      %1377 = vmatpush.bf16.msra.mxu0 %v1364
      %1378 = vmatpush.bf16.msra.mxu0 %v1363
      %1379 = vmatpush.bf16.msra.mxu0 %v1362
      %1380 = vmatpush.bf16.msra.mxu0 %v1361
      %1381 = vmatmul.bf16.gmra.mxu0 %v1371
      %v1382 = vpop.f32.mrf.mxu0
      %v1383 = vadd.f32 0.0, %v1382
      %v1384 = vpop.f32.mrf.mxu0
      %1385 = vdwg.mxu0
      %1387 = vrot.lane.b32.xlu0 %v1383, 112
      %v1388 = vpop.permute.xlu0 %1387
      %v1390 = vmax.f32 %v1383, %v1388
      %1392 = vrot.lane.b32.xlu0 %v1390, 96
      %v1393 = vpop.permute.xlu0 %1392
      %v1395 = vmax.f32 %v1390, %v1393
      %v1396 = vpack.c.bf16 %v1395, %v1395
      %v1397 = vld [vmem:[%s5 + $0x10] sm:$0xc]
      %v1398 = vld [vmem:[%s5 + $0x18] sm:$0x3]
      %v1399 = vld [vmem:[%s6 + $0x14] sm:$0xff]
      %vm1400 = vcmask 35840
      %1401 = vst.msk [vmem:[#allocation2] sm:$0xf] %vm1400, 0
      %vm1402 = vcmask 208040
      %1403 = vst.msk [vmem:[#allocation2] sm:$0xf] %vm1402, 0
      %1405 = vrot.lane.b32.xlu0 %v1396, 5
      %v1406 = vpop.permute.xlu0 %1405
      %vm1408 = vcmask 166952
      %1409 = vst.msk [vmem:[#allocation2] sm:$0xf] %vm1408, %v1406
      %vm1410 = vcmp.lt.s32.totalorder %v304, 0
      %v1411 = vsub.s32 0, %v304
      %v1412 = vsel %vm1410, %v1411, %v304
      %v1413 = vshrl.u32 %v1412, 2
      %v1414 = vand.u32 %v1412, 3
      %v1415 = vsub.s32 0, %v1414
      %v1416 = vsel %vm1410, %v1415, %v1414
      %vm1417 = vcmp.ne.s32.totalorder %v1416, 0
      %vm1418 = vcmp.lt.s32.totalorder %v1416, 0
      %vm1419 = vmand %vm1418, %vm1417
      %v1420 = vadd.s32 %v1416, 4
      %v1421 = vsel %vm1419, %v1420, %v1416
      %vm1422 = vcmp.ge.s32.totalorder %v1421, 1
      %v1423 = vsel %vm1422, 1, 0
      %v1424 = vcvt.s32.f32 %v1423
      %v1425 = vpack.c.bf16 %v1424, %v1424
      %vm1426 = vcmp.lt.s32.totalorder %v1421, 3
      %v1427 = vsel %vm1426, 1, 0
      %v1428 = vcvt.s32.f32 %v1427
      %v1429 = vpack.c.bf16 %v1428, %v1428
      %v1430 = vld [vmem:[#allocation2] sm:$0xf]
      %v1431 = vunpack.c.l.bf16 %v1430
      %v1432 = vunpack.c.l.bf16 %v1425
      %v1433 = vmul.f32 %v1431, %v1432
      %v1434 = vpack.c.bf16 %v1433, %v1433
      %v1435 = vunpack.c.l.bf16 %v1429
      %1437 = vrot.lane.b32.xlu0 %v1435, 2
      %v1438 = vpop.permute.xlu0 %1437
      %v1440 = vmul.f32 %v1431, %v1438
      %v1441 = vpack.c.bf16 %v1440, %v1440
      %1443 = vrot.lane.b32.xlu0 %v1432, 4
      %v1444 = vpop.permute.xlu0 %1443
      %v1446 = vmul.f32 %v1431, %v1444
      %v1447 = vpack.c.bf16 %v1446, %v1446
      %1448 = vrot.lane.b32.xlu0 %v1435, 6
      %v1449 = vpop.permute.xlu0 %1448
      %v1451 = vmul.f32 %v1431, %v1449
      %v1452 = vpack.c.bf16 %v1451, %v1451
      %1453 = vrot.lane.b32.xlu0 %v1432, 8
      %v1454 = vpop.permute.xlu0 %1453
      %v1456 = vmul.f32 %v1431, %v1454
      %v1457 = vpack.c.bf16 %v1456, %v1456
      %1458 = vrot.lane.b32.xlu0 %v1435, 10
      %v1459 = vpop.permute.xlu0 %1458
      %v1461 = vmul.f32 %v1431, %v1459
      %v1462 = vpack.c.bf16 %v1461, %v1461
      %v1464 = vunpack.c.l.b16 %v1430
      %v1465 = vpack.c.b16 %v1464, %v1464
      %1466 = vrot.lane.b32.xlu0 %v1465, 127
      %v1467 = vpop.permute.xlu0 %1466
      %v1469 = vunpack.c.l.b16 %v1441
      %v1470 = vpack.c.b16 %v1469, %v1469
      %1471 = vrot.lane.b32.xlu0 %v1470, 126
      %v1472 = vpop.permute.xlu0 %1471
      %v1474 = vunpack.c.l.b16 %v1447
      %v1475 = vpack.c.b16 %v1474, %v1474
      %1476 = vrot.lane.b32.xlu0 %v1475, 124
      %v1477 = vpop.permute.xlu0 %1476
      %1478 = vrot.lane.b32.xlu0 %v1465, 123
      %v1479 = vpop.permute.xlu0 %1478
      %v1481 = vunpack.c.l.b16 %v1452
      %v1482 = vpack.c.b16 %v1481, %v1481
      %1483 = vrot.lane.b32.xlu0 %v1482, 122
      %v1484 = vpop.permute.xlu0 %1483
      %v1486 = vunpack.c.l.b16 %v1457
      %v1487 = vpack.c.b16 %v1486, %v1486
      %1488 = vrot.lane.b32.xlu0 %v1487, 120
      %v1489 = vpop.permute.xlu0 %1488
      %1490 = vrot.lane.b32.xlu0 %v1465, 119
      %v1491 = vpop.permute.xlu0 %1490
      %v1493 = vunpack.c.l.b16 %v1462
      %v1494 = vpack.c.b16 %v1493, %v1493
      %1495 = vrot.lane.b32.xlu0 %v1494, 118
      %v1496 = vpop.permute.xlu0 %1495
      %v1499 = vsel %vm574, %v1434, %v1467
      %v1503 = vsel %vm574, %v1472, %v1477
      %v1507 = vsel %vm574, %v1479, %v1484
      %v1511 = vsel %vm574, %v1489, %v1491
      %v1515 = vunpack.c.l.b16 %v1397
      %v1516 = vunpack.c.l.b16 %v1398
      %v1517 = vpack.c.b16 %v1516, %v1515
      %v1518 = vrot.slane %v1517, 2
      %v1520 = vsel %vm1304, %v1518, 0
      %v1523 = vsel %vm574, %v1496, 0
      %1525 = vmatpush.bf16.msra.mxu0 0
      %1526 = vmatpush.bf16.msra.mxu0 0
      %1527 = vmatpush.bf16.msra.mxu0 0
      %1528 = vmatpush.bf16.msra.mxu0 %v1523
      %1529 = vmatpush.bf16.msra.mxu0 %v1511
      %1530 = vmatpush.bf16.msra.mxu0 %v1507
      %1531 = vmatpush.bf16.msra.mxu0 %v1503
      %1532 = vmatpush.bf16.msra.mxu0 %v1499
      %1533 = vmatmul.bf16.gmra.mxu0 %v1520
      %v1534 = vpop.f32.mrf.mxu0
      %v1535 = vadd.f32 0.0, %v1534
      %v1536 = vpop.f32.mrf.mxu0
      %1537 = vdwg.mxu0
      %1539 = vset.pattern.permute.xlu0 0
      %1540 = vperm.xlu0 %1539, %v1399
      %v1541 = vpop.permute.xlu0 %1540
      %v1543 = vmul.f32 %v1535, %v1541
      %1544 = vset.pattern.permute.xlu0 1
      %1545 = vperm.xlu0 %1544, %v1399
      %v1546 = vpop.permute.xlu0 %1545
      %v1548 = vadd.f32 %v1543, %v1546
      %v1549 = vmax.f32 %v1548, 0.0
      %v1550 = vpack.c.bf16 %v1549, %v1549
      %v1551 = vld [vmem:[%s5 + $0x18] sm:$0xc]
      %v1552 = vld [vmem:[%s5 + $0x20] sm:$0x3]
      %v1553 = vld [vmem:[%s6 + $0x1c] sm:$0xff]
      %vm1554 = vcmask 76800
      %1555 = vst.msk [vmem:[#allocation2] sm:$0xf] %vm1554, 0
      %vm1556 = vcmask 290000
      %1557 = vst.msk [vmem:[#allocation2] sm:$0xf] %vm1556, 0
      %1559 = vrot.lane.b32.xlu0 %v1550, 10
      %v1560 = vpop.permute.xlu0 %1559
      %vm1562 = vcmask 207952
      %1563 = vst.msk [vmem:[#allocation2] sm:$0xf] %vm1562, %v1560
      %vm1564 = vcmp.ge.s32.totalorder %v1421, 2
      %v1565 = vsel %vm1564, 1, 0
      %v1566 = vcvt.s32.f32 %v1565
      %v1567 = vpack.c.bf16 %v1566, %v1566
      %vm1568 = vcmp.lt.s32.totalorder %v1421, 2
      %v1569 = vsel %vm1568, 1, 0
      %v1570 = vcvt.s32.f32 %v1569
      %v1571 = vpack.c.bf16 %v1570, %v1570
      %v1572 = vld [vmem:[#allocation2] sm:$0xf]
      %v1573 = vunpack.c.l.bf16 %v1572
      %v1574 = vunpack.c.l.bf16 %v1567
      %v1575 = vmul.f32 %v1573, %v1574
      %v1576 = vpack.c.bf16 %v1575, %v1575
      %v1577 = vunpack.c.l.bf16 %v1571
      %1579 = vrot.lane.b32.xlu0 %v1577, 4
      %v1580 = vpop.permute.xlu0 %1579
      %v1582 = vmul.f32 %v1573, %v1580
      %v1583 = vpack.c.bf16 %v1582, %v1582
      %1585 = vrot.lane.b32.xlu0 %v1574, 8
      %v1586 = vpop.permute.xlu0 %1585
      %v1588 = vmul.f32 %v1573, %v1586
      %v1589 = vpack.c.bf16 %v1588, %v1588
      %1590 = vrot.lane.b32.xlu0 %v1577, 12
      %v1591 = vpop.permute.xlu0 %1590
      %v1593 = vmul.f32 %v1573, %v1591
      %v1594 = vpack.c.bf16 %v1593, %v1593
      %1595 = vrot.lane.b32.xlu0 %v1574, 16
      %v1596 = vpop.permute.xlu0 %1595
      %v1598 = vmul.f32 %v1573, %v1596
      %v1599 = vpack.c.bf16 %v1598, %v1598
      %1600 = vrot.lane.b32.xlu0 %v1577, 20
      %v1601 = vpop.permute.xlu0 %1600
      %v1603 = vmul.f32 %v1573, %v1601
      %v1604 = vpack.c.bf16 %v1603, %v1603
      %v1606 = vunpack.c.l.b16 %v1572
      %v1607 = vpack.c.b16 %v1606, %v1606
      %1608 = vrot.lane.b32.xlu0 %v1607, 126
      %v1609 = vpop.permute.xlu0 %1608
      %v1611 = vunpack.c.l.b16 %v1583
      %v1612 = vpack.c.b16 %v1611, %v1611
      %1613 = vrot.lane.b32.xlu0 %v1612, 124
      %v1614 = vpop.permute.xlu0 %1613
      %v1616 = vunpack.c.l.b16 %v1589
      %v1617 = vpack.c.b16 %v1616, %v1616
      %1618 = vrot.lane.b32.xlu0 %v1617, 120
      %v1619 = vpop.permute.xlu0 %1618
      %1620 = vrot.lane.b32.xlu0 %v1607, 118
      %v1621 = vpop.permute.xlu0 %1620
      %v1623 = vunpack.c.l.b16 %v1594
      %v1624 = vpack.c.b16 %v1623, %v1623
      %1625 = vrot.lane.b32.xlu0 %v1624, 116
      %v1626 = vpop.permute.xlu0 %1625
      %v1628 = vunpack.c.l.b16 %v1599
      %v1629 = vpack.c.b16 %v1628, %v1628
      %1630 = vrot.lane.b32.xlu0 %v1629, 112
      %v1631 = vpop.permute.xlu0 %1630
      %1632 = vrot.lane.b32.xlu0 %v1607, 110
      %v1633 = vpop.permute.xlu0 %1632
      %v1635 = vunpack.c.l.b16 %v1604
      %v1636 = vpack.c.b16 %v1635, %v1635
      %1637 = vrot.lane.b32.xlu0 %v1636, 108
      %v1638 = vpop.permute.xlu0 %1637
      %v1641 = vsel %vm574, %v1576, %v1609
      %v1645 = vsel %vm574, %v1614, %v1619
      %v1649 = vsel %vm574, %v1621, %v1626
      %v1653 = vsel %vm574, %v1631, %v1633
      %v1657 = vunpack.c.l.b16 %v1551
      %v1658 = vunpack.c.l.b16 %v1552
      %v1659 = vpack.c.b16 %v1658, %v1657
      %v1660 = vrot.slane %v1659, 2
      %v1662 = vsel %vm1304, %v1660, 0
      %v1665 = vsel %vm574, %v1638, 0
      %1667 = vmatpush.bf16.msra.mxu0 0
      %1668 = vmatpush.bf16.msra.mxu0 0
      %1669 = vmatpush.bf16.msra.mxu0 0
      %1670 = vmatpush.bf16.msra.mxu0 %v1665
      %1671 = vmatpush.bf16.msra.mxu0 %v1653
      %1672 = vmatpush.bf16.msra.mxu0 %v1649
      %1673 = vmatpush.bf16.msra.mxu0 %v1645
      %1674 = vmatpush.bf16.msra.mxu0 %v1641
      %1675 = vmatmul.bf16.gmra.mxu0 %v1662
      %v1676 = vpop.f32.mrf.mxu0
      %v1677 = vadd.f32 0.0, %v1676
      %v1678 = vpop.f32.mrf.mxu0
      %1679 = vdwg.mxu0
      %1681 = vset.pattern.permute.xlu0 0
      %1682 = vperm.xlu0 %1681, %v1553
      %v1683 = vpop.permute.xlu0 %1682
      %v1685 = vmul.f32 %v1677, %v1683
      %1686 = vset.pattern.permute.xlu0 1
      %1687 = vperm.xlu0 %1686, %v1553
      %v1688 = vpop.permute.xlu0 %1687
      %v1690 = vadd.f32 %v1685, %v1688
      %v1691 = vmax.f32 %v1690, 0.0
      %v1692 = vpack.c.bf16 %v1691, %v1691
      %v1693 = vunpack.c.l.b16 %v1550
      %v1694 = vpack.c.b16 %v1693, %v1693
      %v1697 = vsel %vm574, %v1692, %v1694
      %v1698 = vld [vmem:[%s5 + $0x20] sm:$0xcc]
      %v1699 = vld [vmem:[%s5 + $0x28] sm:$0x33]
      %v1700 = vld [vmem:[%s6 + $0x24] sm:$0xff]
      %1701 = vst.msk [vmem:[#allocation2] sm:$0xf] %vm1400, 0
      %1702 = vst.msk [vmem:[#allocation2 + $0xc] sm:$0xf] %vm1400, 0
      %1703 = vst.msk [vmem:[#allocation2] sm:$0xf] %vm1402, 0
      %1704 = vst.msk [vmem:[#allocation2 + $0xc] sm:$0xf] %vm1402, 0
      %v1706 = vunpack.c.l.b16 %v1697
      %v1707 = vunpack.c.h.b16 %v1697
      %v1708 = vpack.c.b16 %v1706, %v1706
      %v1709 = vpack.c.b16 %v1707, %v1707
      %1710 = vrot.lane.b32.xlu0 %v1708, 5
      %v1711 = vpop.permute.xlu0 %1710
      %1712 = vrot.lane.b32.xlu0 %v1709, 5
      %v1713 = vpop.permute.xlu0 %1712
      %1716 = vst.msk [vmem:[#allocation2] sm:$0xf] %vm1408, %v1711
      %1717 = vst.msk [vmem:[#allocation2 + $0xc] sm:$0xf] %vm1408, %v1713
      %v1718 = vld [vmem:[#allocation2] sm:$0xf]
      %v1719 = vld [vmem:[#allocation2 + $0xc] sm:$0xf]
      %v1720 = vunpack.c.l.bf16 %v1718
      %v1721 = vunpack.c.l.bf16 %v1719
      %v1722 = vmul.f32 %v1720, %v1432
      %v1723 = vmul.f32 %v1721, %v1432
      %v1724 = vpack.c.bf16 %v1722, %v1722
      %v1725 = vpack.c.bf16 %v1723, %v1723
      %v1726 = vmul.f32 %v1720, %v1438
      %v1727 = vmul.f32 %v1721, %v1438
      %v1728 = vpack.c.bf16 %v1726, %v1726
      %v1729 = vpack.c.bf16 %v1727, %v1727
      %v1730 = vmul.f32 %v1720, %v1444
      %v1731 = vmul.f32 %v1721, %v1444
      %v1732 = vpack.c.bf16 %v1730, %v1730
      %v1733 = vpack.c.bf16 %v1731, %v1731
      %v1734 = vmul.f32 %v1720, %v1449
      %v1735 = vmul.f32 %v1721, %v1449
      %v1736 = vpack.c.bf16 %v1734, %v1734
      %v1737 = vpack.c.bf16 %v1735, %v1735
      %v1738 = vmul.f32 %v1720, %v1454
      %v1739 = vmul.f32 %v1721, %v1454
      %v1740 = vpack.c.bf16 %v1738, %v1738
      %v1741 = vpack.c.bf16 %v1739, %v1739
      %v1742 = vmul.f32 %v1720, %v1459
      %v1743 = vmul.f32 %v1721, %v1459
      %v1744 = vpack.c.bf16 %v1742, %v1742
      %v1745 = vpack.c.bf16 %v1743, %v1743
      %v1748 = vunpack.c.l.b16 %v1724
      %v1749 = vunpack.c.l.b16 %v1725
      %v1750 = vpack.c.b16 %v1749, %v1748
      %v1754 = vunpack.c.l.b16 %v1718
      %v1755 = vunpack.c.l.b16 %v1719
      %v1756 = vpack.c.b16 %v1755, %v1754
      %1757 = vrot.lane.b32.xlu0 %v1756, 127
      %v1758 = vpop.permute.xlu0 %1757
      %v1762 = vunpack.c.l.b16 %v1728
      %v1763 = vunpack.c.l.b16 %v1729
      %v1764 = vpack.c.b16 %v1763, %v1762
      %1765 = vrot.lane.b32.xlu0 %v1764, 126
      %v1766 = vpop.permute.xlu0 %1765
      %v1770 = vunpack.c.l.b16 %v1732
      %v1771 = vunpack.c.l.b16 %v1733
      %v1772 = vpack.c.b16 %v1771, %v1770
      %1773 = vrot.lane.b32.xlu0 %v1772, 124
      %v1774 = vpop.permute.xlu0 %1773
      %1776 = vrot.lane.b32.xlu0 %v1756, 123
      %v1777 = vpop.permute.xlu0 %1776
      %v1781 = vunpack.c.l.b16 %v1736
      %v1782 = vunpack.c.l.b16 %v1737
      %v1783 = vpack.c.b16 %v1782, %v1781
      %1784 = vrot.lane.b32.xlu0 %v1783, 122
      %v1785 = vpop.permute.xlu0 %1784
      %v1789 = vunpack.c.l.b16 %v1740
      %v1790 = vunpack.c.l.b16 %v1741
      %v1791 = vpack.c.b16 %v1790, %v1789
      %1792 = vrot.lane.b32.xlu0 %v1791, 120
      %v1793 = vpop.permute.xlu0 %1792
      %1795 = vrot.lane.b32.xlu0 %v1756, 119
      %v1796 = vpop.permute.xlu0 %1795
      %v1800 = vunpack.c.l.b16 %v1744
      %v1801 = vunpack.c.l.b16 %v1745
      %v1802 = vpack.c.b16 %v1801, %v1800
      %1803 = vrot.lane.b32.xlu0 %v1802, 118
      %v1804 = vpop.permute.xlu0 %1803
      %v1808 = vunpack.c.l.b16 %v1698
      %v1809 = vunpack.c.h.b16 %v1698
      %v1810 = vunpack.c.l.b16 %v1699
      %v1811 = vunpack.c.h.b16 %v1699
      %v1812 = vpack.c.b16 %v1810, %v1808
      %v1813 = vpack.c.b16 %v1811, %v1809
      %v1814 = vrot.slane %v1812, 2
      %v1815 = vrot.slane %v1813, 2
      %v1818 = vsel %vm378, %v1815, 0
      %1820 = vmatpush.bf16.msra.mxu0 %v1796
      %1821 = vmatpush.bf16.msra.mxu0 %v1793
      %1822 = vmatpush.bf16.msra.mxu0 %v1785
      %1823 = vmatpush.bf16.msra.mxu0 %v1777
      %1824 = vmatpush.bf16.msra.mxu0 %v1774
      %1825 = vmatpush.bf16.msra.mxu0 %v1766
      %1826 = vmatpush.bf16.msra.mxu0 %v1758
      %1827 = vmatpush.bf16.msra.mxu0 %v1750
      %1828 = vmatmul.bf16.gmra.mxu0 %v1814
      %v1829 = vpop.f32.mrf.mxu0
      %v1830 = vadd.f32 0.0, %v1829
      %v1831 = vpop.f32.mrf.mxu0
      %1832 = vdwg.mxu0
      %1833 = vmatpush.bf16.msra.mxu0 0
      %1834 = vmatpush.bf16.msra.mxu0 0
      %1835 = vmatpush.bf16.msra.mxu0 0
      %1836 = vmatpush.bf16.msra.mxu0 0
      %1837 = vmatpush.bf16.msra.mxu0 0
      %1838 = vmatpush.bf16.msra.mxu0 0
      %1839 = vmatpush.bf16.msra.mxu0 0
      %1840 = vmatpush.bf16.msra.mxu0 %v1804
      %1841 = vmatmul.bf16.gmra.mxu0 %v1818
      %v1842 = vpop.f32.mrf.mxu0
      %v1843 = vadd.f32 %v1830, %v1842
      %v1844 = vpop.f32.mrf.mxu0
      %1845 = vdwg.mxu0
      %1847 = vset.pattern.permute.xlu0 0
      %1848 = vperm.xlu0 %1847, %v1700
      %v1849 = vpop.permute.xlu0 %1848
      %v1851 = vmul.f32 %v1843, %v1849
      %1852 = vset.pattern.permute.xlu0 1
      %1853 = vperm.xlu0 %1852, %v1700
      %v1854 = vpop.permute.xlu0 %1853
      %v1856 = vadd.f32 %v1851, %v1854
      %v1857 = vmax.f32 %v1856, 0.0
      %v1858 = vld [vmem:[%s3] sm:$0xff]
      %v1859 = vld [vmem:[%s3 + $0x8] sm:$0xff]
      %v1861 = vsel %vm378, %v1857, 0
      %1863 = vmatpush.msra.mxu0 0.0
      %1864 = vmatpush.msra.mxu0 0.0
      %1865 = vmatpush.msra.mxu0 0.0
      %1866 = vmatpush.msra.mxu0 0.0
      %1867 = vmatpush.msra.mxu0 0.0
      %1868 = vmatpush.msra.mxu0 0.0
      %1869 = vmatpush.msra.mxu0 0.0
      %1870 = vmatpush.msra.mxu0 0.0
      %1871 = vmatpush.msra.mxu0 0.0
      %1872 = vmatpush.msra.mxu0 0.0
      %1873 = vmatpush.msra.mxu0 0.0
      %1874 = vmatpush.msra.mxu0 0.0
      %1875 = vmatpush.msra.mxu0 0.0
      %1876 = vmatpush.msra.mxu0 0.0
      %1877 = vmatpush.msra.mxu0 %v1859
      %1878 = vmatpush.msra.mxu0 %v1858
      %1879 = vmatmul.f32.gmra.mxu0 %v1861
      %v1880 = vpop.f32.mrf.mxu0
      %v1881 = vadd.f32 0.0, %v1880
      %1882 = vdwg.mxu0
      %v1883 = vpack.c.bf16 %v1881, %v1881
      %v1885 = vunpack.c.l.b16 %v1336
      %v1886 = vpack.c.b16 %v1885, %v1885
      %v1889 = vsel %vm574, %v1883, %v1886
      %v1890 = vld [vmem:[%s5 + $0x28] sm:$0xcc]
      %v1891 = vld [vmem:[%s5 + $0x30] sm:$0x33]
      %v1892 = vld [vmem:[%s6 + $0x2c] sm:$0xff]
      %1893 = vst.msk [vmem:[#allocation2] sm:$0xf] %vm1185, 0
      %1894 = vst.msk [vmem:[#allocation2 + $0xc] sm:$0xf] %vm1185, 0
      %1895 = vst.msk [vmem:[#allocation2] sm:$0xf] %vm1187, 0
      %1896 = vst.msk [vmem:[#allocation2 + $0xc] sm:$0xf] %vm1187, 0
      %v1898 = vunpack.c.l.b16 %v1889
      %v1899 = vunpack.c.h.b16 %v1889
      %v1900 = vpack.c.b16 %v1898, %v1898
      %v1901 = vpack.c.b16 %v1899, %v1899
      %1902 = vrot.lane.b32.xlu0 %v1900, 9
      %v1903 = vpop.permute.xlu0 %1902
      %1904 = vrot.lane.b32.xlu0 %v1901, 9
      %v1905 = vpop.permute.xlu0 %1904
      %1908 = vst.msk [vmem:[#allocation2] sm:$0xf] %vm1193, %v1903
      %1909 = vst.msk [vmem:[#allocation2 + $0xc] sm:$0xf] %vm1193, %v1905
      %v1910 = vld [vmem:[#allocation2] sm:$0xf]
      %v1911 = vld [vmem:[#allocation2 + $0xc] sm:$0xf]
      %v1912 = vunpack.c.l.bf16 %v1910
      %v1913 = vunpack.c.l.bf16 %v1911
      %v1914 = vmul.f32 %v1912, %v1217
      %v1915 = vmul.f32 %v1913, %v1217
      %v1916 = vpack.c.bf16 %v1914, %v1914
      %v1917 = vpack.c.bf16 %v1915, %v1915
      %v1918 = vmul.f32 %v1912, %v1223
      %v1919 = vmul.f32 %v1913, %v1223
      %v1920 = vpack.c.bf16 %v1918, %v1918
      %v1921 = vpack.c.bf16 %v1919, %v1919
      %v1922 = vmul.f32 %v1912, %v1229
      %v1923 = vmul.f32 %v1913, %v1229
      %v1924 = vpack.c.bf16 %v1922, %v1922
      %v1925 = vpack.c.bf16 %v1923, %v1923
      %v1926 = vmul.f32 %v1912, %v1234
      %v1927 = vmul.f32 %v1913, %v1234
      %v1928 = vpack.c.bf16 %v1926, %v1926
      %v1929 = vpack.c.bf16 %v1927, %v1927
      %v1930 = vmul.f32 %v1912, %v1239
      %v1931 = vmul.f32 %v1913, %v1239
      %v1932 = vpack.c.bf16 %v1930, %v1930
      %v1933 = vpack.c.bf16 %v1931, %v1931
      %v1934 = vmul.f32 %v1912, %v1244
      %v1935 = vmul.f32 %v1913, %v1244
      %v1936 = vpack.c.bf16 %v1934, %v1934
      %v1937 = vpack.c.bf16 %v1935, %v1935
      %v1940 = vunpack.c.l.b16 %v1916
      %v1941 = vunpack.c.l.b16 %v1917
      %v1942 = vpack.c.b16 %v1941, %v1940
      %v1946 = vunpack.c.l.b16 %v1910
      %v1947 = vunpack.c.l.b16 %v1911
      %v1948 = vpack.c.b16 %v1947, %v1946
      %1949 = vrot.lane.b32.xlu0 %v1948, 127
      %v1950 = vpop.permute.xlu0 %1949
      %v1954 = vunpack.c.l.b16 %v1920
      %v1955 = vunpack.c.l.b16 %v1921
      %v1956 = vpack.c.b16 %v1955, %v1954
      %1957 = vrot.lane.b32.xlu0 %v1956, 126
      %v1958 = vpop.permute.xlu0 %1957
      %v1962 = vunpack.c.l.b16 %v1924
      %v1963 = vunpack.c.l.b16 %v1925
      %v1964 = vpack.c.b16 %v1963, %v1962
      %1965 = vrot.lane.b32.xlu0 %v1964, 120
      %v1966 = vpop.permute.xlu0 %1965
      %1968 = vrot.lane.b32.xlu0 %v1948, 119
      %v1969 = vpop.permute.xlu0 %1968
      %v1973 = vunpack.c.l.b16 %v1928
      %v1974 = vunpack.c.l.b16 %v1929
      %v1975 = vpack.c.b16 %v1974, %v1973
      %1976 = vrot.lane.b32.xlu0 %v1975, 118
      %v1977 = vpop.permute.xlu0 %1976
      %v1981 = vunpack.c.l.b16 %v1932
      %v1982 = vunpack.c.l.b16 %v1933
      %v1983 = vpack.c.b16 %v1982, %v1981
      %1984 = vrot.lane.b32.xlu0 %v1983, 112
      %v1985 = vpop.permute.xlu0 %1984
      %1987 = vrot.lane.b32.xlu0 %v1948, 111
      %v1988 = vpop.permute.xlu0 %1987
      %v1992 = vunpack.c.l.b16 %v1936
      %v1993 = vunpack.c.l.b16 %v1937
      %v1994 = vpack.c.b16 %v1993, %v1992
      %1995 = vrot.lane.b32.xlu0 %v1994, 110
      %v1996 = vpop.permute.xlu0 %1995
      %v2000 = vunpack.c.l.b16 %v1890
      %v2001 = vunpack.c.h.b16 %v1890
      %v2002 = vunpack.c.l.b16 %v1891
      %v2003 = vunpack.c.h.b16 %v1891
      %v2004 = vpack.c.b16 %v2002, %v2000
      %v2005 = vpack.c.b16 %v2003, %v2001
      %v2006 = vrot.slane %v2004, 2
      %v2007 = vrot.slane %v2005, 2
      %v2010 = vsel %vm378, %v2007, 0
      %2012 = vmatpush.bf16.msra.mxu0 %v1988
      %2013 = vmatpush.bf16.msra.mxu0 %v1985
      %2014 = vmatpush.bf16.msra.mxu0 %v1977
      %2015 = vmatpush.bf16.msra.mxu0 %v1969
      %2016 = vmatpush.bf16.msra.mxu0 %v1966
      %2017 = vmatpush.bf16.msra.mxu0 %v1958
      %2018 = vmatpush.bf16.msra.mxu0 %v1950
      %2019 = vmatpush.bf16.msra.mxu0 %v1942
      %2020 = vmatmul.bf16.gmra.mxu0 %v2006
      %v2021 = vpop.f32.mrf.mxu0
      %v2022 = vadd.f32 0.0, %v2021
      %v2023 = vpop.f32.mrf.mxu0
      %2024 = vdwg.mxu0
      %2025 = vmatpush.bf16.msra.mxu0 0
      %2026 = vmatpush.bf16.msra.mxu0 0
      %2027 = vmatpush.bf16.msra.mxu0 0
      %2028 = vmatpush.bf16.msra.mxu0 0
      %2029 = vmatpush.bf16.msra.mxu0 0
      %2030 = vmatpush.bf16.msra.mxu0 0
      %2031 = vmatpush.bf16.msra.mxu0 0
      %2032 = vmatpush.bf16.msra.mxu0 %v1996
      %2033 = vmatmul.bf16.gmra.mxu0 %v2010
      %v2034 = vpop.f32.mrf.mxu0
      %v2035 = vadd.f32 %v2022, %v2034
      %v2036 = vpop.f32.mrf.mxu0
      %2037 = vdwg.mxu0
      %2039 = vset.pattern.permute.xlu0 0
      %2040 = vperm.xlu0 %2039, %v1892
      %v2041 = vpop.permute.xlu0 %2040
      %v2043 = vmul.f32 %v2035, %v2041
      %2044 = vset.pattern.permute.xlu0 1
      %2045 = vperm.xlu0 %2044, %v1892
      %v2046 = vpop.permute.xlu0 %2045
      %v2048 = vadd.f32 %v2043, %v2046
      %v2049 = vmax.f32 %v2048, 0.0
      %v2050 = vld [vmem:[%s4] sm:$0xff]
      %v2051 = vld [vmem:[%s4 + $0x8] sm:$0xff]
      %v2052 = vld [vmem:[%s4 + $0x10] sm:$0xff]
      %v2053 = vld [vmem:[%s4 + $0x18] sm:$0xff]
      %v2054 = vld [vmem:[%s4 + $0x20] sm:$0xff]
      %v2055 = vld [vmem:[%s4 + $0x28] sm:$0xff]
      %v2056 = vld [vmem:[%s4 + $0x30] sm:$0xff]
      %v2057 = vld [vmem:[%s4 + $0x38] sm:$0xff]
      %v2058 = vld [vmem:[%s4 + $0x40] sm:$0xff]
      %v2059 = vld [vmem:[%s4 + $0x48] sm:$0xff]
      %v2060 = vld [vmem:[%s4 + $0x50] sm:$0xff]
      %v2061 = vld [vmem:[%s4 + $0x58] sm:$0xff]
      %v2062 = vld [vmem:[%s4 + $0x60] sm:$0xff]
      %v2063 = vld [vmem:[%s4 + $0x68] sm:$0xff]
      %v2064 = vld [vmem:[%s4 + $0x70] sm:$0xff]
      %v2065 = vld [vmem:[%s4 + $0x78] sm:$0xff]
      %v2067 = vsel %vm1369, %v2049, 0
      %2069 = vmatpush.msra.mxu0 0.0
      %2070 = vmatpush.msra.mxu0 0.0
      %2071 = vmatpush.msra.mxu0 0.0
      %2072 = vmatpush.msra.mxu0 0.0
      %2073 = vmatpush.msra.mxu0 0.0
      %2074 = vmatpush.msra.mxu0 0.0
      %2075 = vmatpush.msra.mxu0 0.0
      %2076 = vmatpush.msra.mxu0 0.0
      %2077 = vmatpush.msra.mxu0 %v2064
      %2078 = vmatpush.msra.mxu0 %v2062
      %2079 = vmatpush.msra.mxu0 %v2060
      %2080 = vmatpush.msra.mxu0 %v2058
      %2081 = vmatpush.msra.mxu0 %v2056
      %2082 = vmatpush.msra.mxu0 %v2054
      %2083 = vmatpush.msra.mxu0 %v2052
      %2084 = vmatpush.msra.mxu0 %v2050
      %2085 = vmatmul.f32.gmra.mxu0 %v2067
      %v2086 = vpop.f32.mrf.mxu0
      %v2087 = vadd.f32 0.0, %v2086
      %2088 = vdwg.mxu0
      %2089 = vmatpush.msra.mxu0 0.0
      %2090 = vmatpush.msra.mxu0 0.0
      %2091 = vmatpush.msra.mxu0 0.0
      %2092 = vmatpush.msra.mxu0 0.0
      %2093 = vmatpush.msra.mxu0 0.0
      %2094 = vmatpush.msra.mxu0 0.0
      %2095 = vmatpush.msra.mxu0 0.0
      %2096 = vmatpush.msra.mxu0 0.0
      %2097 = vmatpush.msra.mxu0 %v2065
      %2098 = vmatpush.msra.mxu0 %v2063
      %2099 = vmatpush.msra.mxu0 %v2061
      %2100 = vmatpush.msra.mxu0 %v2059
      %2101 = vmatpush.msra.mxu0 %v2057
      %2102 = vmatpush.msra.mxu0 %v2055
      %2103 = vmatpush.msra.mxu0 %v2053
      %2104 = vmatpush.msra.mxu0 %v2051
      %2105 = vmatmul.f32.gmra.mxu0 %v2067
      %v2106 = vpop.f32.mrf.mxu0
      %v2107 = vadd.f32 0.0, %v2106
      %2108 = vdwg.mxu0
      %v2109 = vpack.c.bf16 %v2107, %v2087
      %v2111 = vunpack.c.l.b16 %v2109
      %v2112 = vunpack.c.h.b16 %v2109
      %v2113 = vpack.c.b16 %v2111, %v2111
      %v2114 = vpack.c.b16 %v2112, %v2112
      %v2117 = vsel %vm574, %v2113, %v954
      %v2120 = vsel %vm574, %v2114, %v955
      %v2121 = vld [vmem:[%s5 + $0x30] sm:$0xcc]
      %v2122 = vld [vmem:[%s6 + $0x34] sm:$0xf]
      %vm2123 = vcmask 134144
      %2124 = vst.msk [vmem:[#allocation2] sm:$0xf] %vm2123, 0
      %2125 = vst.msk [vmem:[#allocation2 + $0xc] sm:$0xf] %vm2123, 0
      %vm2126 = vcmask 273544
      %2127 = vst.msk [vmem:[#allocation2 + $0x8] sm:$0xf] %vm2126, 0
      %2128 = vst.msk [vmem:[#allocation2 + $0x14] sm:$0xf] %vm2126, 0
      %v2131 = vunpack.c.l.b16 %v2117
      %v2132 = vunpack.c.l.b16 %v2120
      %v2133 = vunpack.c.h.b16 %v2117
      %v2134 = vunpack.c.h.b16 %v2120
      %v2135 = vpack.c.b16 %v2132, %v2131
      %v2136 = vpack.c.b16 %v2134, %v2133
      %2137 = vrot.lane.b32.xlu0 %v2135, 17
      %v2138 = vpop.permute.xlu0 %2137
      %2139 = vrot.lane.b32.xlu0 %v2136, 17
      %v2140 = vpop.permute.xlu0 %2139
      %v2141 = vrot.slane %v2138, 4
      %v2142 = vrot.slane %v2140, 4
      %v2143 = vsel %vm294, %v2141, %v2138
      %v2144 = vsel %vm294, %v2142, %v2140
      %vm2149 = vcmask 1043592
      %vm2150 = vcmask 1047556
      %vm2151 = vmor %vm2150, %vm2149
      %2152 = vst.msk [vmem:[#allocation2] sm:$0xff] %vm2151, %v2143
      %2153 = vst.msk [vmem:[#allocation2 + $0x8] sm:$0xf] %vm2123, %v2141
      %2154 = vst.msk [vmem:[#allocation2 + $0xc] sm:$0xff] %vm2151, %v2144
      %2155 = vst.msk [vmem:[#allocation2 + $0x14] sm:$0xf] %vm2123, %v2142
      %v2156 = vld [vmem:[#allocation2] sm:$0xff]
      %v2157 = vld [vmem:[#allocation2 + $0xc] sm:$0xff]
      %v2158 = vunpack.c.l.bf16 %v2156
      %v2159 = vunpack.c.h.bf16 %v2156
      %v2160 = vunpack.c.l.bf16 %v2157
      %v2161 = vunpack.c.h.bf16 %v2157
      %v2162 = vmul.f32 %v2158, %v347
      %v2163 = vmul.f32 %v2159, %v348
      %v2164 = vmul.f32 %v2160, %v347
      %v2165 = vmul.f32 %v2161, %v348
      %v2166 = vpack.c.bf16 %v2163, %v2162
      %v2167 = vpack.c.bf16 %v2165, %v2164
      %v2168 = vld [vmem:[#allocation2 + $0x8] sm:$0xf]
      %v2169 = vld [vmem:[#allocation2 + $0x14] sm:$0xf]
      %v2170 = vunpack.c.l.bf16 %v2168
      %v2171 = vunpack.c.l.bf16 %v2169
      %v2172 = vmul.f32 %v2158, %v359
      %v2173 = vmul.f32 %v2159, %v363
      %v2174 = vmul.f32 %v2170, %v361
      %v2175 = vmul.f32 %v2160, %v359
      %v2176 = vmul.f32 %v2161, %v363
      %v2177 = vmul.f32 %v2171, %v361
      %v2178 = vpack.c.bf16 %v2173, %v2172
      %v2179 = vpack.c.bf16 %v2174, %v2174
      %v2180 = vpack.c.bf16 %v2176, %v2175
      %v2181 = vpack.c.bf16 %v2177, %v2177
      %v2182 = vmul.f32 %v2158, %v375
      %v2183 = vmul.f32 %v2159, %v379
      %v2184 = vmul.f32 %v2170, %v377
      %v2185 = vmul.f32 %v2160, %v375
      %v2186 = vmul.f32 %v2161, %v379
      %v2187 = vmul.f32 %v2171, %v377
      %v2188 = vpack.c.bf16 %v2183, %v2182
      %v2189 = vpack.c.bf16 %v2184, %v2184
      %v2190 = vpack.c.bf16 %v2186, %v2185
      %v2191 = vpack.c.bf16 %v2187, %v2187
      %v2192 = vmul.f32 %v2158, %v389
      %v2193 = vmul.f32 %v2159, %v393
      %v2194 = vmul.f32 %v2170, %v391
      %v2195 = vmul.f32 %v2160, %v389
      %v2196 = vmul.f32 %v2161, %v393
      %v2197 = vmul.f32 %v2171, %v391
      %v2198 = vpack.c.bf16 %v2193, %v2192
      %v2199 = vpack.c.bf16 %v2194, %v2194
      %v2200 = vpack.c.bf16 %v2196, %v2195
      %v2201 = vpack.c.bf16 %v2197, %v2197
      %v2202 = vmul.f32 %v2158, %v403
      %v2203 = vmul.f32 %v2159, %v407
      %v2204 = vmul.f32 %v2170, %v405
      %v2205 = vmul.f32 %v2160, %v403
      %v2206 = vmul.f32 %v2161, %v407
      %v2207 = vmul.f32 %v2171, %v405
      %v2208 = vpack.c.bf16 %v2203, %v2202
      %v2209 = vpack.c.bf16 %v2204, %v2204
      %v2210 = vpack.c.bf16 %v2206, %v2205
      %v2211 = vpack.c.bf16 %v2207, %v2207
      %v2212 = vmul.f32 %v2158, %v417
      %v2213 = vmul.f32 %v2159, %v421
      %v2214 = vmul.f32 %v2170, %v419
      %v2215 = vmul.f32 %v2160, %v417
      %v2216 = vmul.f32 %v2161, %v421
      %v2217 = vmul.f32 %v2171, %v419
      %v2218 = vpack.c.bf16 %v2213, %v2212
      %v2219 = vpack.c.bf16 %v2214, %v2214
      %v2220 = vpack.c.bf16 %v2216, %v2215
      %v2221 = vpack.c.bf16 %v2217, %v2217
      %v2224 = vunpack.c.l.b16 %v2166
      %v2225 = vunpack.c.h.b16 %v2166
      %v2226 = vunpack.c.l.b16 %v2167
      %v2227 = vunpack.c.h.b16 %v2167
      %v2228 = vpack.c.b16 %v2226, %v2224
      %v2229 = vpack.c.b16 %v2227, %v2225
      %v2236 = vunpack.c.l.b16 %v2156
      %v2237 = vunpack.c.h.b16 %v2156
      %v2238 = vunpack.c.l.b16 %v2168
      %v2239 = vunpack.c.l.b16 %v2157
      %v2240 = vunpack.c.h.b16 %v2157
      %v2241 = vunpack.c.l.b16 %v2169
      %v2242 = vpack.c.b16 %v2239, %v2236
      %v2243 = vpack.c.b16 %v2240, %v2237
      %v2244 = vpack.c.b16 %v2241, %v2238
      %2245 = vrot.lane.b32.xlu0 %v2242, 127
      %v2246 = vpop.permute.xlu0 %2245
      %2247 = vrot.lane.b32.xlu0 %v2243, 127
      %v2248 = vpop.permute.xlu0 %2247
      %2249 = vrot.lane.b32.xlu0 %v2244, 127
      %v2250 = vpop.permute.xlu0 %2249
      %v2251 = vsel %vm452, %v2246, %v2248
      %v2252 = vsel %vm452, %v2248, %v2250
      %v2259 = vunpack.c.l.b16 %v2178
      %v2260 = vunpack.c.h.b16 %v2178
      %v2261 = vunpack.c.l.b16 %v2179
      %v2262 = vunpack.c.l.b16 %v2180
      %v2263 = vunpack.c.h.b16 %v2180
      %v2264 = vunpack.c.l.b16 %v2181
      %v2265 = vpack.c.b16 %v2262, %v2259
      %v2266 = vpack.c.b16 %v2263, %v2260
      %v2267 = vpack.c.b16 %v2264, %v2261
      %2268 = vrot.lane.b32.xlu0 %v2265, 126
      %v2269 = vpop.permute.xlu0 %2268
      %2270 = vrot.lane.b32.xlu0 %v2266, 126
      %v2271 = vpop.permute.xlu0 %2270
      %2272 = vrot.lane.b32.xlu0 %v2267, 126
      %v2273 = vpop.permute.xlu0 %2272
      %v2274 = vsel %vm469, %v2269, %v2271
      %v2275 = vsel %vm469, %v2271, %v2273
      %v2282 = vunpack.c.l.b16 %v2188
      %v2283 = vunpack.c.h.b16 %v2188
      %v2284 = vunpack.c.l.b16 %v2189
      %v2285 = vunpack.c.l.b16 %v2190
      %v2286 = vunpack.c.h.b16 %v2190
      %v2287 = vunpack.c.l.b16 %v2191
      %v2288 = vpack.c.b16 %v2285, %v2282
      %v2289 = vpack.c.b16 %v2286, %v2283
      %v2290 = vpack.c.b16 %v2287, %v2284
      %2291 = vrot.lane.b32.xlu0 %v2288, 112
      %v2292 = vpop.permute.xlu0 %2291
      %2293 = vrot.lane.b32.xlu0 %v2289, 112
      %v2294 = vpop.permute.xlu0 %2293
      %2295 = vrot.lane.b32.xlu0 %v2290, 112
      %v2296 = vpop.permute.xlu0 %2295
      %v2297 = vsel %vm489, %v2292, %v2294
      %v2298 = vsel %vm489, %v2294, %v2296
      %2301 = vrot.lane.b32.xlu0 %v2242, 111
      %v2302 = vpop.permute.xlu0 %2301
      %2303 = vrot.lane.b32.xlu0 %v2243, 111
      %v2304 = vpop.permute.xlu0 %2303
      %2305 = vrot.lane.b32.xlu0 %v2244, 111
      %v2306 = vpop.permute.xlu0 %2305
      %v2307 = vsel %vm498, %v2302, %v2304
      %v2308 = vsel %vm498, %v2304, %v2306
      %v2315 = vunpack.c.l.b16 %v2198
      %v2316 = vunpack.c.h.b16 %v2198
      %v2317 = vunpack.c.l.b16 %v2199
      %v2318 = vunpack.c.l.b16 %v2200
      %v2319 = vunpack.c.h.b16 %v2200
      %v2320 = vunpack.c.l.b16 %v2201
      %v2321 = vpack.c.b16 %v2318, %v2315
      %v2322 = vpack.c.b16 %v2319, %v2316
      %v2323 = vpack.c.b16 %v2320, %v2317
      %2324 = vrot.lane.b32.xlu0 %v2321, 110
      %v2325 = vpop.permute.xlu0 %2324
      %2326 = vrot.lane.b32.xlu0 %v2322, 110
      %v2327 = vpop.permute.xlu0 %2326
      %2328 = vrot.lane.b32.xlu0 %v2323, 110
      %v2329 = vpop.permute.xlu0 %2328
      %v2330 = vsel %vm518, %v2325, %v2327
      %v2331 = vsel %vm518, %v2327, %v2329
      %v2338 = vunpack.c.l.b16 %v2208
      %v2339 = vunpack.c.h.b16 %v2208
      %v2340 = vunpack.c.l.b16 %v2209
      %v2341 = vunpack.c.l.b16 %v2210
      %v2342 = vunpack.c.h.b16 %v2210
      %v2343 = vunpack.c.l.b16 %v2211
      %v2344 = vpack.c.b16 %v2341, %v2338
      %v2345 = vpack.c.b16 %v2342, %v2339
      %v2346 = vpack.c.b16 %v2343, %v2340
      %2347 = vrot.lane.b32.xlu0 %v2344, 96
      %v2348 = vpop.permute.xlu0 %2347
      %2349 = vrot.lane.b32.xlu0 %v2345, 96
      %v2350 = vpop.permute.xlu0 %2349
      %2351 = vrot.lane.b32.xlu0 %v2346, 96
      %v2352 = vpop.permute.xlu0 %2351
      %v2353 = vsel %vm535, %v2348, %v2350
      %v2354 = vsel %vm535, %v2350, %v2352
      %2357 = vrot.lane.b32.xlu0 %v2242, 95
      %v2358 = vpop.permute.xlu0 %2357
      %2359 = vrot.lane.b32.xlu0 %v2243, 95
      %v2360 = vpop.permute.xlu0 %2359
      %2361 = vrot.lane.b32.xlu0 %v2244, 95
      %v2362 = vpop.permute.xlu0 %2361
      %v2363 = vsel %vm547, %v2358, %v2360
      %v2364 = vsel %vm547, %v2360, %v2362
      %v2371 = vunpack.c.l.b16 %v2218
      %v2372 = vunpack.c.h.b16 %v2218
      %v2373 = vunpack.c.l.b16 %v2219
      %v2374 = vunpack.c.l.b16 %v2220
      %v2375 = vunpack.c.h.b16 %v2220
      %v2376 = vunpack.c.l.b16 %v2221
      %v2377 = vpack.c.b16 %v2374, %v2371
      %v2378 = vpack.c.b16 %v2375, %v2372
      %v2379 = vpack.c.b16 %v2376, %v2373
      %2380 = vrot.lane.b32.xlu0 %v2377, 94
      %v2381 = vpop.permute.xlu0 %2380
      %2382 = vrot.lane.b32.xlu0 %v2378, 94
      %v2383 = vpop.permute.xlu0 %2382
      %2384 = vrot.lane.b32.xlu0 %v2379, 94
      %v2385 = vpop.permute.xlu0 %2384
      %v2386 = vsel %vm564, %v2381, %v2383
      %v2387 = vsel %vm564, %v2383, %v2385
      %v2391 = vunpack.c.l.b16 %v2121
      %v2392 = vunpack.c.h.b16 %v2121
      %v2393 = vpack.c.b16 %v2391, %v2391
      %v2394 = vpack.c.b16 %v2392, %v2392
      %v2395 = vrot.slane %v2393, 2
      %v2396 = vrot.slane %v2394, 2
      %v2399 = vsel %vm378, %v2396, 0
      %2401 = vmatpush.bf16.msra.mxu0 %v2363
      %2402 = vmatpush.bf16.msra.mxu0 %v2353
      %2403 = vmatpush.bf16.msra.mxu0 %v2330
      %2404 = vmatpush.bf16.msra.mxu0 %v2307
      %2405 = vmatpush.bf16.msra.mxu0 %v2297
      %2406 = vmatpush.bf16.msra.mxu0 %v2274
      %2407 = vmatpush.bf16.msra.mxu0 %v2251
      %2408 = vmatpush.bf16.msra.mxu0 %v2228
      %2409 = vmatmul.bf16.gmra.mxu0 %v2395
      %v2410 = vpop.f32.mrf.mxu0
      %v2411 = vadd.f32 0.0, %v2410
      %v2412 = vpop.f32.mrf.mxu0
      %2413 = vdwg.mxu0
      %2414 = vmatpush.bf16.msra.mxu0 0
      %2415 = vmatpush.bf16.msra.mxu0 0
      %2416 = vmatpush.bf16.msra.mxu0 0
      %2417 = vmatpush.bf16.msra.mxu0 0
      %2418 = vmatpush.bf16.msra.mxu0 0
      %2419 = vmatpush.bf16.msra.mxu0 0
      %2420 = vmatpush.bf16.msra.mxu0 0
      %2421 = vmatpush.bf16.msra.mxu0 %v2386
      %2422 = vmatmul.bf16.gmra.mxu0 %v2399
      %v2423 = vpop.f32.mrf.mxu0
      %v2424 = vadd.f32 %v2411, %v2423
      %v2425 = vpop.f32.mrf.mxu0
      %2426 = vdwg.mxu0
      %2427 = vmatpush.bf16.msra.mxu0 %v2364
      %2428 = vmatpush.bf16.msra.mxu0 %v2354
      %2429 = vmatpush.bf16.msra.mxu0 %v2331
      %2430 = vmatpush.bf16.msra.mxu0 %v2308
      %2431 = vmatpush.bf16.msra.mxu0 %v2298
      %2432 = vmatpush.bf16.msra.mxu0 %v2275
      %2433 = vmatpush.bf16.msra.mxu0 %v2252
      %2434 = vmatpush.bf16.msra.mxu0 %v2229
      %2435 = vmatmul.bf16.gmra.mxu0 %v2395
      %v2436 = vpop.f32.mrf.mxu0
      %v2437 = vadd.f32 0.0, %v2436
      %v2438 = vpop.f32.mrf.mxu0
      %2439 = vdwg.mxu0
      %2440 = vmatpush.bf16.msra.mxu0 0
      %2441 = vmatpush.bf16.msra.mxu0 0
      %2442 = vmatpush.bf16.msra.mxu0 0
      %2443 = vmatpush.bf16.msra.mxu0 0
      %2444 = vmatpush.bf16.msra.mxu0 0
      %2445 = vmatpush.bf16.msra.mxu0 0
      %2446 = vmatpush.bf16.msra.mxu0 0
      %2447 = vmatpush.bf16.msra.mxu0 %v2387
      %2448 = vmatmul.bf16.gmra.mxu0 %v2399
      %v2449 = vpop.f32.mrf.mxu0
      %v2450 = vadd.f32 %v2437, %v2449
      %v2451 = vpop.f32.mrf.mxu0
      %2452 = vdwg.mxu0
      %2454 = vset.pattern.permute.xlu0 0
      %2455 = vperm.xlu0 %2454, %v2122
      %v2456 = vpop.permute.xlu0 %2455
      %v2458 = vmul.f32 %v2424, %v2456
      %v2459 = vmul.f32 %v2450, %v2456
      %2460 = vset.pattern.permute.xlu0 1
      %2461 = vperm.xlu0 %2460, %v2122
      %v2462 = vpop.permute.xlu0 %2461
      %v2464 = vadd.f32 %v2458, %v2462
      %v2465 = vadd.f32 %v2459, %v2462
      %v2466 = vmax.f32 %v2464, 0.0
      %v2467 = vmax.f32 %v2465, 0.0
      %v2468 = vadd.f32 %v2466, %v651
      %v2469 = vadd.f32 %v2467, %v652
      %v2472 = vrot.slane %v2469, 4
      %v2473 = vsel %vm574, %v2468, %v2472
      %2475 = vst [vmem:[%s278] sm:$0xff] %v2473
      %p2476 = scmp.lt.s32.totalorder %s18, 1
      %s2477 = scalar_select %p2476, %s18, 1
      %s2478 = smul.addr %s2477, 2
      %s2479 = smul.addr %s2478, 4
      %s2480 = scalar_lea.vmem %s7, %s2479
      // Predicated region
      $region49: #{rsu4_forward.1} parent=47 // pred_check
        %p2481 = pneg %p188
      $region50: #{rsu4_forward.1} parent=47 // pred_check_branch
        %2483 = sbr.rel (%p2481) target = $region52
      $region51: #{rsu4_forward.1} parent=47 // pred_region
        _
      $region52: #{rsu4_forward.1} parent=47 // pred_fallthru
        _
    $region48: #{rsu4_forward.1} parent=5 // pred_fallthru
      _
    %p2484 = scmp.le.s32.totalorder 2, %s13
    // Predicated region
    $region53: #{rsu4_forward.1} parent=5 // pred_check
      %p2485 = pneg %p2484
    $region54: #{rsu4_forward.1} parent=5 // pred_check_branch
      %2487 = sbr.rel (%p2485) target = $region56
    $region55: #{rsu4_forward.1} parent=5 // pred_region
      %s2488 = ssub.s32 %s13, 2
      // Predicated region
      $region57: #{rsu4_forward.1} parent=55 // pred_check
        %p2489 = pneg %p194
      $region58: #{rsu4_forward.1} parent=55 // pred_check_branch
        %2491 = sbr.rel (%p2489) target = $region60
      $region59: #{rsu4_forward.1} parent=55 // pred_region
        %p2492 = scmp.lt.s32.totalorder %s19, 1
        %s2493 = scalar_select %p2492, %s19, 1
        %s2494 = smul.addr %s2493, 2
        %s2495 = smul.addr %s2494, 4
        %s2496 = scalar_lea.vmem %s7, %s2495
      $region60: #{rsu4_forward.1} parent=55 // pred_fallthru
        _
    $region56: #{rsu4_forward.1} parent=5 // pred_fallthru
      _
  $region6: #{rsu4_forward.1} parent=0 // loop_footer
    %s17 = sadd.s32 1, %s13
  $region7: #{rsu4_forward.1} parent=0 // loop_footer_branch
    %12 = sbr.rel target = $region3
  $region8: #{rsu4_forward.1} parent=0 // loop_exit
    _

</llo_original>
